<compile_context>
chip_gen: v7x
topology: tpu7x:2x2x1
jax: 0.10.0
libtpu: 0.0.40
codegen_flags: <defaults>
</compile_context>

<pallas_src>
import functools

import jax
import jax.numpy as jnp
from jax.experimental import pallas as pl
from jax.experimental.pallas import tpu as pltpu

EPS = 1e-5


# --------------------------------------------------------------------------
# Kernels (all operate on channel-major (C, pixels) blocks)
# --------------------------------------------------------------------------
def _conv1x1_stats_kernel(x_ref, w_ref, h_ref, st_ref):
    # conv1: (width, C_in) @ (C_in, T) in bf16, f32 accumulation on the MXU.
    h = jnp.dot(w_ref[...], x_ref[...].astype(jnp.bfloat16),
                preferred_element_type=jnp.float32)              # (width, T) f32
    hb = h.astype(jnp.bfloat16)
    h_ref[...] = hb                                              # bf16 intermediate
    # BN partials from exactly the (bf16-rounded) values that get normalized.
    hf = hb.astype(jnp.float32)
    s = jnp.sum(hf, axis=-1, keepdims=True)
    q = jnp.sum(hf * hf, axis=-1, keepdims=True)
    st_ref[...] = jnp.concatenate([s, q], axis=-1)               # (width, 2)


def _bn_relu_conv3x3_kernel(h1_ref, s_ref, b_ref, w_ref, h2_ref, st_ref,
                            *, H, W, width):
    # bn1 (folded scale/bias) + relu, then cast to bf16 BEFORE halo/taps so all
    # the copy traffic of the spatial re-layout moves half the bytes.
    a = jnp.maximum(h1_ref[...].astype(jnp.float32) * s_ref[...] + b_ref[...], 0.0)
    a = a.astype(jnp.bfloat16).reshape(width, H, W)
    zr = jnp.zeros((width, 1, W), jnp.bfloat16)
    a = jnp.concatenate([zr, a, zr], axis=1)                     # (width, H+2, W)
    zc = jnp.zeros((width, H + 2, 1), jnp.bfloat16)
    a = jnp.concatenate([zc, a, zc], axis=2)                     # (width, H+2, W+2)

    # Nine accumulated per-tap matmuls (no materialized im2col buffer); the
    # MXU is nearly idle in this stage so small K per tap is irrelevant.
    acc = jnp.zeros((width, H * W), jnp.float32)
    t = 0
    for dy in range(3):
        for dx in range(3):
            tap = a[:, dy:dy + H, dx:dx + W].reshape(width, H * W)
            acc = acc + jnp.dot(w_ref[t], tap,
                                preferred_element_type=jnp.float32)
            t += 1

    hb = acc.astype(jnp.bfloat16)
    h2_ref[...] = hb                                             # bf16 intermediate
    hf = hb.astype(jnp.float32)
    s = jnp.sum(hf, axis=-1, keepdims=True)
    q = jnp.sum(hf * hf, axis=-1, keepdims=True)
    st_ref[...] = jnp.concatenate([s, q], axis=-1)               # (width, 2)


def _bn_relu_conv1x1_kernel(h2_ref, s_ref, b_ref, w_ref, h3_ref, st_ref):
    # bn2 + relu, then conv3: (C_out, width) @ (width, T).
    a = jnp.maximum(h2_ref[...].astype(jnp.float32) * s_ref[...] + b_ref[...], 0.0)
    h = jnp.dot(w_ref[...], a.astype(jnp.bfloat16),
                preferred_element_type=jnp.float32)              # (C_out, T) f32
    hb = h.astype(jnp.bfloat16)
    h3_ref[...] = hb                                             # bf16 intermediate
    hf = hb.astype(jnp.float32)
    s = jnp.sum(hf, axis=-1, keepdims=True)
    q = jnp.sum(hf * hf, axis=-1, keepdims=True)
    st_ref[...] = jnp.concatenate([s, q], axis=-1)               # (C_out, 2)


def _bn_add_relu_kernel(h3_ref, x_ref, s_ref, b_ref, o_ref):
    # bn3 (folded) + residual add + relu; output written directly in NCHW.
    o_ref[...] = jnp.maximum(
        h3_ref[...].astype(jnp.float32) * s_ref[...] + b_ref[...] + x_ref[...], 0.0)


# --------------------------------------------------------------------------
# Wrapper helpers
# --------------------------------------------------------------------------
def _vmem_limit_bytes():
    """Per-generation VMEM budget (v7x: ~48 MiB, v5e/v6e: ~96 MiB)."""
    try:
        phys = int(pltpu.get_tpu_info().vmem_capacity_bytes)
    except Exception:                              # not a TPU / older API
        phys = 64 * 1024 * 1024                    # conservative (v7x-sized)
    return max(32 * 1024 * 1024, min((phys * 3) // 4, 100 * 1024 * 1024))


def _pick_tile_hw(hw, cap_px):
    """Largest spatial tile that divides hw, fits the budget and keeps lane-dense
    stores (multiple of 128) when possible."""
    if hw <= cap_px:
        return hw
    best = None
    d = 128
    while d <= cap_px:
        if hw % d == 0:
            best = d
        d += 128
    return best if best is not None else hw


def _stats_index_map(j_tiles):
    def im(n, j):
        return (n * j_tiles + j, 0)
    return im


def _bn_affine(stats, count, gamma, beta):
    """Reduce per-tile (sum, sum_sq) partials -> folded BN scale/bias (C, 1)."""
    c = gamma.shape[0]
    st = stats.reshape(-1, c, 2).sum(axis=0)                     # (C, 2)
    mean = st[:, 0] / count
    ex2 = st[:, 1] / count
    var = ex2 - mean * mean                                      # biased variance
    scale = gamma * jax.lax.rsqrt(var + EPS)
    bias = beta - mean * scale
    return scale.reshape(c, 1), bias.reshape(c, 1)


# --------------------------------------------------------------------------
# Forward pass
# --------------------------------------------------------------------------
def bottleneck_forward(x_nchw, params, *, tile_hw=None):
    """x_nchw: (N, C_in, H, W) float32.  Returns (N, C_out, H, W) float32."""
    w1, g1, b1, w2, g2, b2, w3, g3, b3 = params
    x = x_nchw.astype(jnp.float32)
    N, C_in, H, W = x.shape
    width = w1.shape[1]
    C_out = w3.shape[1]
    assert C_in == C_out, "downsample=None requires C_out == C_in for the residual"

    HW = H * W
    R = N * HW
    c_max = max(C_in, C_out)

    vmem_limit = _vmem_limit_bytes()
    if tile_hw is None:
        # keep double-buffered per-step blocks comfortably inside the budget
        cap_px = max(vmem_limit // (36 * c_max), 256)
        tile_hw = _pick_tile_hw(HW, cap_px)
    T = tile_hw
    assert HW % T == 0, (HW, T)
    J = HW // T

    cp2 = pltpu.CompilerParams(dimension_semantics=("parallel", "parallel"),
                               vmem_limit_bytes=vmem_limit)
    cp1 = pltpu.CompilerParams(dimension_semantics=("parallel",),
                               vmem_limit_bytes=vmem_limit)

    # Weights prepacked once in the wrapper, output-channel major, bf16.
    w1t = w1.T.astype(jnp.bfloat16)                              # (width, C_in)
    w2t = jnp.transpose(w2, (0, 1, 3, 2)).reshape(
        9, width, width).astype(jnp.bfloat16)                    # (tap, out, in)
    w3t = w3.T.astype(jnp.bfloat16)                              # (C_out, width)

    x2d = x.reshape(N * C_in, HW)                                # free view (NCHW)

    # ---- stage 1: conv1 (1x1) + bn1 partial stats -------------------------
    h1, st1 = pl.pallas_call(
        _conv1x1_stats_kernel,
        grid=(N, J),
        in_specs=[pl.BlockSpec((C_in, T), lambda n, j: (n, j)),
                  pl.BlockSpec((width, C_in), lambda n, j: (0, 0))],
        out_specs=(pl.BlockSpec((width, T), lambda n, j: (n, j)),
                   pl.BlockSpec((width, 2), _stats_index_map(J))),
        out_shape=(jax.ShapeDtypeStruct((N * width, HW), jnp.bfloat16),
                   jax.ShapeDtypeStruct((N * J * width, 2), jnp.float32)),
        compiler_params=cp2,
    )(x2d, w1t)
    scale1, bias1 = _bn_affine(st1, R, g1, b1)

    # ---- stage 2: bn1+relu -> conv2 (3x3, per-tap accumulation) -----------
    h2, st2 = pl.pallas_call(
        functools.partial(_bn_relu_conv3x3_kernel, H=H, W=W, width=width),
        grid=(N,),
        in_specs=[pl.BlockSpec((width, HW), lambda n: (n, 0)),
                  pl.BlockSpec((width, 1), lambda n: (0, 0)),
                  pl.BlockSpec((width, 1), lambda n: (0, 0)),
                  pl.BlockSpec((9, width, width), lambda n: (0, 0, 0))],
        out_specs=(pl.BlockSpec((width, HW), lambda n: (n, 0)),
                   pl.BlockSpec((width, 2), lambda n: (n, 0))),
        out_shape=(jax.ShapeDtypeStruct((N * width, HW), jnp.bfloat16),
                   jax.ShapeDtypeStruct((N * width, 2), jnp.float32)),
        compiler_params=cp1,
    )(h1, scale1, bias1, w2t)
    scale2, bias2 = _bn_affine(st2, R, g2, b2)

    # ---- stage 3: bn2+relu -> conv3 (1x1) + bn3 partial stats --------------
    h3, st3 = pl.pallas_call(
        _bn_relu_conv1x1_kernel,
        grid=(N, J),
        in_specs=[pl.BlockSpec((width, T), lambda n, j: (n, j)),
                  pl.BlockSpec((width, 1), lambda n, j: (0, 0)),
                  pl.BlockSpec((width, 1), lambda n, j: (0, 0)),
                  pl.BlockSpec((C_out, width), lambda n, j: (0, 0))],
        out_specs=(pl.BlockSpec((C_out, T), lambda n, j: (n, j)),
                   pl.BlockSpec((C_out, 2), _stats_index_map(J))),
        out_shape=(jax.ShapeDtypeStruct((N * C_out, HW), jnp.bfloat16),
                   jax.ShapeDtypeStruct((N * J * C_out, 2), jnp.float32)),
        compiler_params=cp2,
    )(h2, scale2, bias2, w3t)
    scale3, bias3 = _bn_affine(st3, R, g3, b3)

    # ---- stage 4: bn3 + residual add + relu, output directly in NCHW ------
    out2d = pl.pallas_call(
        _bn_add_relu_kernel,
        grid=(N, J),
        in_specs=[pl.BlockSpec((C_out, T), lambda n, j: (n, j)),
                  pl.BlockSpec((C_out, T), lambda n, j: (n, j)),
                  pl.BlockSpec((C_out, 1), lambda n, j: (0, 0)),
                  pl.BlockSpec((C_out, 1), lambda n, j: (0, 0))],
        out_specs=pl.BlockSpec((C_out, T), lambda n, j: (n, j)),
        out_shape=jax.ShapeDtypeStruct((N * C_out, HW), jnp.float32),
        compiler_params=cp2,
    )(h3, x2d, scale3, bias3)

    return out2d.reshape(N, C_out, H, W)                         # free view


# --------------------------------------------------------------------------
# Pure-JAX f32 reference (ground truth for checking)
# --------------------------------------------------------------------------
def _bn_ref(h_nhwc, g, b):
    mean = h_nhwc.mean(axis=(0, 1, 2), keepdims=True)
    var = ((h_nhwc - mean) ** 2).mean(axis=(0, 1, 2), keepdims=True)
    return (h_nhwc - mean) * (g.reshape(1, 1, 1, -1) / jnp.sqrt(var + EPS)) \
        + b.reshape(1, 1, 1, -1)


def bottleneck_ref(x_nchw, params):
    w1, g1, b1, w2, g2, b2, w3, g3, b3 = params
    x = jnp.transpose(x_nchw, (0, 2, 3, 1)).astype(jnp.float32)
    h = jnp.einsum('nhwc,cd->nhwd', x, w1)
    h = jnp.maximum(_bn_ref(h, g1, b1), 0.0)
    h = jax.lax.conv_general_dilated(h, w2, window_strides=(1, 1), padding='SAME',
                                     dimension_numbers=('NHWC', 'HWIO', 'NHWC'))
    h = jnp.maximum(_bn_ref(h, g2, b2), 0.0)
    h = jnp.einsum('nhwc,cd->nhwd', h, w3)
    h = _bn_ref(h, g3, b3)
    out = jnp.maximum(h + x, 0.0)
    return jnp.transpose(out, (0, 3, 1, 2))


if __name__ == "__main__":
    # Bottleneck(inplanes=64, planes=16): width = 16, out_channels = 64
    # (== inplanes, required because downsample=None).
    inplanes, planes = 64, 16
    width = planes                       # base_width=64, groups=1
    c_out = planes * 4
    N, H, W = 2, 16, 16

    key = jax.random.PRNGKey(0)
    ks = jax.random.split(key, 10)
    x = jax.random.normal(ks[0], (N, inplanes, H, W), jnp.float32)

    # Kernel-friendly weight layouts:
    #   conv1.weight (width, inplanes, 1, 1) -> w1 (inplanes, width)
    #   conv2.weight (width, width, 3, 3)    -> w2 (3, 3, width, width) HWIO
    #   conv3.weight (c_out, width, 1, 1)    -> w3 (width, c_out)
    w1 = 0.1 * jax.random.normal(ks[1], (inplanes, width), jnp.float32)
    g1 = 1.0 + 0.1 * jax.random.normal(ks[2], (width,), jnp.float32)
    b1 = 0.1 * jax.random.normal(ks[3], (width,), jnp.float32)
    w2 = 0.1 * jax.random.normal(ks[4], (3, 3, width, width), jnp.float32)
    g2 = 1.0 + 0.1 * jax.random.normal(ks[5], (width,), jnp.float32)
    b2 = 0.1 * jax.random.normal(ks[6], (width,), jnp.float32)
    w3 = 0.1 * jax.random.normal(ks[7], (width, c_out), jnp.float32)
    g3 = 1.0 + 0.1 * jax.random.normal(ks[8], (c_out,), jnp.float32)
    b3 = 0.1 * jax.random.normal(ks[9], (c_out,), jnp.float32)
    params = (w1, g1, b1, w2, g2, b2, w3, g3, b3)

    out = jax.block_until_ready(jax.jit(bottleneck_forward)(x, params))
    ref = jax.block_until_ready(bottleneck_ref(x, params))

    assert out.shape == (N, c_out, H, W), out.shape
    max_err = float(jnp.max(jnp.abs(out - ref)))
    # bf16 MXU inputs + bf16-stored intermediates (f32 accumulation) -> ~1e-2
    # relative error vs the pure-f32 reference is expected.
    assert jnp.allclose(out, ref, rtol=3e-2, atol=3e-2), max_err

    print("KERNEL_OK")
</pallas_src>

<mosaic_0001>
module attributes {stable_mosaic.version = 11 : i64} {
  func.func @_conv1x1_stats_kernel(%arg0: i32, %arg1: i32, %arg2: memref<64x256xf32, #tpu.memory_space<vmem>>, %arg3: memref<16x64xbf16, #tpu.memory_space<vmem>>, %arg4: memref<16x256xbf16, #tpu.memory_space<vmem>>, %arg5: memref<16x2xf32, #tpu.memory_space<vmem>>) attributes {dimension_semantics = [#tpu.dimension_semantics<parallel>, #tpu.dimension_semantics<parallel>], iteration_bounds = array<i64: 2, 1>, scalar_prefetch = 0 : i64, scratch_operands = 0 : i64, tpu.core_type = #tpu.core_type<tc>, window_params = [{transform_indices = @transform_0, window_bounds = array<i64: 64, 256>}, {pipeline_mode = #tpu.pipeline_mode<synchronous>, transform_indices = @transform_1, window_bounds = array<i64: 16, 64>}, {transform_indices = @transform_2, window_bounds = array<i64: 16, 256>}, {transform_indices = @transform_3, window_bounds = array<i64: 16, 2>}]} {
    %c0 = arith.constant 0 : index
    %c0_0 = arith.constant 0 : index
    %0 = vector.load %arg3[%c0, %c0_0] : memref<16x64xbf16, #tpu.memory_space<vmem>>, vector<16x64xbf16>
    %c0_1 = arith.constant 0 : index
    %c0_2 = arith.constant 0 : index
    %1 = vector.load %arg2[%c0_1, %c0_2] : memref<64x256xf32, #tpu.memory_space<vmem>>, vector<64x256xf32>
    %2 = arith.truncf %1 : vector<64x256xf32> to vector<64x256xbf16>
    %cst = arith.constant dense<0.000000e+00> : vector<16x256xf32>
    %3 = tpu.matmul %0, %2, %cst {dimension_numbers = #tpu.dot_dimension_numbers<[1], [0], [0], [1], [0, 0, 1, 1], [], []>} : vector<16x64xbf16>, vector<64x256xbf16>, vector<16x256xf32> -> vector<16x256xf32>
    %4 = arith.truncf %3 : vector<16x256xf32> to vector<16x256xbf16>
    %c0_3 = arith.constant 0 : index
    %c0_4 = arith.constant 0 : index
    %5 = vector.load %arg4[%c0_3, %c0_4] : memref<16x256xbf16, #tpu.memory_space<vmem>>, vector<16x256xbf16>
    tpu.vector_store %arg4[%c0_3, %c0_4], %4 {strides = array<i32>} : memref<16x256xbf16, #tpu.memory_space<vmem>>, vector<16x256xbf16>,
    %6 = arith.extf %4 : vector<16x256xbf16> to vector<16x256xf32>
    %cst_5 = arith.constant dense<0.000000e+00> : vector<16xf32>
    %7 = vector.multi_reduction <add>, %6, %cst_5 [1] : vector<16x256xf32> to vector<16xf32>
    %8 = vector.shape_cast %7 : vector<16xf32> to vector<16x1xf32>
    %9 = arith.mulf %6, %6 : vector<16x256xf32>
    %cst_6 = arith.constant dense<0.000000e+00> : vector<16xf32>
    %10 = vector.multi_reduction <add>, %9, %cst_6 [1] : vector<16x256xf32> to vector<16xf32>
    %11 = vector.shape_cast %10 : vector<16xf32> to vector<16x1xf32>
    %12 = tpu.concatenate %8, %11 in 1 : vector<16x1xf32>, vector<16x1xf32> -> vector<16x2xf32>
    %c0_7 = arith.constant 0 : index
    %c0_8 = arith.constant 0 : index
    %13 = vector.load %arg5[%c0_7, %c0_8] : memref<16x2xf32, #tpu.memory_space<vmem>>, vector<16x2xf32>
    tpu.vector_store %arg5[%c0_7, %c0_8], %12 {strides = array<i32>} : memref<16x2xf32, #tpu.memory_space<vmem>>, vector<16x2xf32>,
    return
  }
  func.func @transform_0(%arg0: i32, %arg1: i32) -> (i32, i32) {
    %c0_i32 = arith.constant 0 : i32
    return %arg0, %arg1 : i32, i32
  }
  func.func @transform_1(%arg0: i32, %arg1: i32) -> (i32, i32) {
    %c0_i32 = arith.constant 0 : i32
    %c0_i32_0 = arith.constant 0 : i32
    %c0_i32_1 = arith.constant 0 : i32
    return %c0_i32, %c0_i32_0 : i32, i32
  }
  func.func @transform_2(%arg0: i32, %arg1: i32) -> (i32, i32) {
    %c0_i32 = arith.constant 0 : i32
    return %arg0, %arg1 : i32, i32
  }
  func.func @transform_3(%arg0: i32, %arg1: i32) -> (i32, i32) {
    %c1_i32 = arith.constant 1 : i32
    %0 = arith.muli %arg0, %c1_i32 : i32
    %1 = arith.addi %0, %arg1 : i32
    %c0_i32 = arith.constant 0 : i32
    %c0_i32_0 = arith.constant 0 : i32
    return %1, %c0_i32 : i32, i32
  }
}

module attributes {stable_mosaic.version = 11 : i64} {
  func.func @_bn_relu_conv3x3_kernel(%arg0: i32, %arg1: memref<16x256xbf16, #tpu.memory_space<vmem>>, %arg2: memref<16x1xf32, #tpu.memory_space<vmem>>, %arg3: memref<16x1xf32, #tpu.memory_space<vmem>>, %arg4: memref<9x16x16xbf16, #tpu.memory_space<vmem>>, %arg5: memref<16x256xbf16, #tpu.memory_space<vmem>>, %arg6: memref<16x2xf32, #tpu.memory_space<vmem>>) attributes {dimension_semantics = [#tpu.dimension_semantics<parallel>], iteration_bounds = array<i64: 2>, scalar_prefetch = 0 : i64, scratch_operands = 0 : i64, tpu.core_type = #tpu.core_type<tc>, window_params = [{transform_indices = @transform_0, window_bounds = array<i64: 16, 256>}, {pipeline_mode = #tpu.pipeline_mode<synchronous>, transform_indices = @transform_1, window_bounds = array<i64: 16, 1>}, {pipeline_mode = #tpu.pipeline_mode<synchronous>, transform_indices = @transform_2, window_bounds = array<i64: 16, 1>}, {pipeline_mode = #tpu.pipeline_mode<synchronous>, transform_indices = @transform_3, window_bounds = array<i64: 9, 16, 16>}, {transform_indices = @transform_4, window_bounds = array<i64: 16, 256>}, {transform_indices = @transform_5, window_bounds = array<i64: 16, 2>}]} {
    %c0 = arith.constant 0 : index
    %c0_0 = arith.constant 0 : index
    %0 = vector.load %arg1[%c0, %c0_0] : memref<16x256xbf16, #tpu.memory_space<vmem>>, vector<16x256xbf16>
    %1 = arith.extf %0 : vector<16x256xbf16> to vector<16x256xf32>
    %c0_1 = arith.constant 0 : index
    %c0_2 = arith.constant 0 : index
    %2 = vector.load %arg2[%c0_1, %c0_2] : memref<16x1xf32, #tpu.memory_space<vmem>>, vector<16x1xf32>
    %3 = vector.broadcast %2 : vector<16x1xf32> to vector<16x256xf32>
    %4 = arith.mulf %1, %3 : vector<16x256xf32>
    %c0_3 = arith.constant 0 : index
    %c0_4 = arith.constant 0 : index
    %5 = vector.load %arg3[%c0_3, %c0_4] : memref<16x1xf32, #tpu.memory_space<vmem>>, vector<16x1xf32>
    %6 = vector.broadcast %5 : vector<16x1xf32> to vector<16x256xf32>
    %7 = arith.addf %4, %6 : vector<16x256xf32>
    %cst = arith.constant 0.000000e+00 : f32
    %8 = vector.broadcast %cst : f32 to vector<16x256xf32>
    %9 = arith.maximumf %7, %8 : vector<16x256xf32>
    %10 = arith.truncf %9 : vector<16x256xf32> to vector<16x256xbf16>
    %11 = vector.shape_cast %10 : vector<16x256xbf16> to vector<16x16x16xbf16>
    %cst_5 = arith.constant 0.000000e+00 : bf16
    %12 = vector.broadcast %cst_5 : bf16 to vector<16x1x16xbf16>
    %13 = tpu.concatenate %12, %11, %12 in 1 : vector<16x1x16xbf16>, vector<16x16x16xbf16>, vector<16x1x16xbf16> -> vector<16x18x16xbf16>
    %cst_6 = arith.constant 0.000000e+00 : bf16
    %14 = vector.broadcast %cst_6 : bf16 to vector<16x18x1xbf16>
    %15 = tpu.concatenate %14, %13, %14 in 2 : vector<16x18x1xbf16>, vector<16x18x16xbf16>, vector<16x18x1xbf16> -> vector<16x18x18xbf16>
    %cst_7 = arith.constant 0.000000e+00 : f32
    %16 = vector.broadcast %cst_7 : f32 to vector<16x256xf32>
    %17 = vector.extract_strided_slice %15 {offsets = [0, 0, 0], sizes = [16, 16, 16], strides = [1, 1, 1]} : vector<16x18x18xbf16> to vector<16x16x16xbf16>
    %18 = vector.shape_cast %17 : vector<16x16x16xbf16> to vector<16x256xbf16>
    %c0_8 = arith.constant 0 : index
    %c0_9 = arith.constant 0 : index
    %c0_10 = arith.constant 0 : index
    %19 = vector.load %arg4[%c0_8, %c0_9, %c0_10] : memref<9x16x16xbf16, #tpu.memory_space<vmem>>, vector<1x16x16xbf16>
    %20 = vector.shape_cast %19 : vector<1x16x16xbf16> to vector<16x16xbf16>
    %cst_11 = arith.constant dense<0.000000e+00> : vector<16x256xf32>
    %21 = tpu.matmul %20, %18, %cst_11 {dimension_numbers = #tpu.dot_dimension_numbers<[1], [0], [0], [1], [0, 0, 1, 1], [], []>} : vector<16x16xbf16>, vector<16x256xbf16>, vector<16x256xf32> -> vector<16x256xf32>
    %22 = arith.addf %16, %21 : vector<16x256xf32>
    %23 = vector.extract_strided_slice %15 {offsets = [0, 0, 1], sizes = [16, 16, 16], strides = [1, 1, 1]} : vector<16x18x18xbf16> to vector<16x16x16xbf16>
    %24 = vector.shape_cast %23 : vector<16x16x16xbf16> to vector<16x256xbf16>
    %c1 = arith.constant 1 : index
    %c0_12 = arith.constant 0 : index
    %c0_13 = arith.constant 0 : index
    %25 = vector.load %arg4[%c1, %c0_12, %c0_13] : memref<9x16x16xbf16, #tpu.memory_space<vmem>>, vector<1x16x16xbf16>
    %26 = vector.shape_cast %25 : vector<1x16x16xbf16> to vector<16x16xbf16>
    %cst_14 = arith.constant dense<0.000000e+00> : vector<16x256xf32>
    %27 = tpu.matmul %26, %24, %cst_14 {dimension_numbers = #tpu.dot_dimension_numbers<[1], [0], [0], [1], [0, 0, 1, 1], [], []>} : vector<16x16xbf16>, vector<16x256xbf16>, vector<16x256xf32> -> vector<16x256xf32>
    %28 = arith.addf %22, %27 : vector<16x256xf32>
    %29 = vector.extract_strided_slice %15 {offsets = [0, 0, 2], sizes = [16, 16, 16], strides = [1, 1, 1]} : vector<16x18x18xbf16> to vector<16x16x16xbf16>
    %30 = vector.shape_cast %29 : vector<16x16x16xbf16> to vector<16x256xbf16>
    %c2 = arith.constant 2 : index
    %c0_15 = arith.constant 0 : index
    %c0_16 = arith.constant 0 : index
    %31 = vector.load %arg4[%c2, %c0_15, %c0_16] : memref<9x16x16xbf16, #tpu.memory_space<vmem>>, vector<1x16x16xbf16>
    %32 = vector.shape_cast %31 : vector<1x16x16xbf16> to vector<16x16xbf16>
    %cst_17 = arith.constant dense<0.000000e+00> : vector<16x256xf32>
    %33 = tpu.matmul %32, %30, %cst_17 {dimension_numbers = #tpu.dot_dimension_numbers<[1], [0], [0], [1], [0, 0, 1, 1], [], []>} : vector<16x16xbf16>, vector<16x256xbf16>, vector<16x256xf32> -> vector<16x256xf32>
    %34 = arith.addf %28, %33 : vector<16x256xf32>
    %35 = vector.extract_strided_slice %15 {offsets = [0, 1, 0], sizes = [16, 16, 16], strides = [1, 1, 1]} : vector<16x18x18xbf16> to vector<16x16x16xbf16>
    %36 = vector.shape_cast %35 : vector<16x16x16xbf16> to vector<16x256xbf16>
    %c3 = arith.constant 3 : index
    %c0_18 = arith.constant 0 : index
    %c0_19 = arith.constant 0 : index
    %37 = vector.load %arg4[%c3, %c0_18, %c0_19] : memref<9x16x16xbf16, #tpu.memory_space<vmem>>, vector<1x16x16xbf16>
    %38 = vector.shape_cast %37 : vector<1x16x16xbf16> to vector<16x16xbf16>
    %cst_20 = arith.constant dense<0.000000e+00> : vector<16x256xf32>
    %39 = tpu.matmul %38, %36, %cst_20 {dimension_numbers = #tpu.dot_dimension_numbers<[1], [0], [0], [1], [0, 0, 1, 1], [], []>} : vector<16x16xbf16>, vector<16x256xbf16>, vector<16x256xf32> -> vector<16x256xf32>
    %40 = arith.addf %34, %39 : vector<16x256xf32>
    %41 = vector.extract_strided_slice %15 {offsets = [0, 1, 1], sizes = [16, 16, 16], strides = [1, 1, 1]} : vector<16x18x18xbf16> to vector<16x16x16xbf16>
    %42 = vector.shape_cast %41 : vector<16x16x16xbf16> to vector<16x256xbf16>
    %c4 = arith.constant 4 : index
    %c0_21 = arith.constant 0 : index
    %c0_22 = arith.constant 0 : index
    %43 = vector.load %arg4[%c4, %c0_21, %c0_22] : memref<9x16x16xbf16, #tpu.memory_space<vmem>>, vector<1x16x16xbf16>
    %44 = vector.shape_cast %43 : vector<1x16x16xbf16> to vector<16x16xbf16>
    %cst_23 = arith.constant dense<0.000000e+00> : vector<16x256xf32>
    %45 = tpu.matmul %44, %42, %cst_23 {dimension_numbers = #tpu.dot_dimension_numbers<[1], [0], [0], [1], [0, 0, 1, 1], [], []>} : vector<16x16xbf16>, vector<16x256xbf16>, vector<16x256xf32> -> vector<16x256xf32>
    %46 = arith.addf %40, %45 : vector<16x256xf32>
    %47 = vector.extract_strided_slice %15 {offsets = [0, 1, 2], sizes = [16, 16, 16], strides = [1, 1, 1]} : vector<16x18x18xbf16> to vector<16x16x16xbf16>
    %48 = vector.shape_cast %47 : vector<16x16x16xbf16> to vector<16x256xbf16>
    %c5 = arith.constant 5 : index
    %c0_24 = arith.constant 0 : index
    %c0_25 = arith.constant 0 : index
    %49 = vector.load %arg4[%c5, %c0_24, %c0_25] : memref<9x16x16xbf16, #tpu.memory_space<vmem>>, vector<1x16x16xbf16>
    %50 = vector.shape_cast %49 : vector<1x16x16xbf16> to vector<16x16xbf16>
    %cst_26 = arith.constant dense<0.000000e+00> : vector<16x256xf32>
    %51 = tpu.matmul %50, %48, %cst_26 {dimension_numbers = #tpu.dot_dimension_numbers<[1], [0], [0], [1], [0, 0, 1, 1], [], []>} : vector<16x16xbf16>, vector<16x256xbf16>, vector<16x256xf32> -> vector<16x256xf32>
    %52 = arith.addf %46, %51 : vector<16x256xf32>
    %53 = vector.extract_strided_slice %15 {offsets = [0, 2, 0], sizes = [16, 16, 16], strides = [1, 1, 1]} : vector<16x18x18xbf16> to vector<16x16x16xbf16>
    %54 = vector.shape_cast %53 : vector<16x16x16xbf16> to vector<16x256xbf16>
    %c6 = arith.constant 6 : index
    %c0_27 = arith.constant 0 : index
    %c0_28 = arith.constant 0 : index
    %55 = vector.load %arg4[%c6, %c0_27, %c0_28] : memref<9x16x16xbf16, #tpu.memory_space<vmem>>, vector<1x16x16xbf16>
    %56 = vector.shape_cast %55 : vector<1x16x16xbf16> to vector<16x16xbf16>
    %cst_29 = arith.constant dense<0.000000e+00> : vector<16x256xf32>
    %57 = tpu.matmul %56, %54, %cst_29 {dimension_numbers = #tpu.dot_dimension_numbers<[1], [0], [0], [1], [0, 0, 1, 1], [], []>} : vector<16x16xbf16>, vector<16x256xbf16>, vector<16x256xf32> -> vector<16x256xf32>
    %58 = arith.addf %52, %57 : vector<16x256xf32>
    %59 = vector.extract_strided_slice %15 {offsets = [0, 2, 1], sizes = [16, 16, 16], strides = [1, 1, 1]} : vector<16x18x18xbf16> to vector<16x16x16xbf16>
    %60 = vector.shape_cast %59 : vector<16x16x16xbf16> to vector<16x256xbf16>
    %c7 = arith.constant 7 : index
    %c0_30 = arith.constant 0 : index
    %c0_31 = arith.constant 0 : index
    %61 = vector.load %arg4[%c7, %c0_30, %c0_31] : memref<9x16x16xbf16, #tpu.memory_space<vmem>>, vector<1x16x16xbf16>
    %62 = vector.shape_cast %61 : vector<1x16x16xbf16> to vector<16x16xbf16>
    %cst_32 = arith.constant dense<0.000000e+00> : vector<16x256xf32>
    %63 = tpu.matmul %62, %60, %cst_32 {dimension_numbers = #tpu.dot_dimension_numbers<[1], [0], [0], [1], [0, 0, 1, 1], [], []>} : vector<16x16xbf16>, vector<16x256xbf16>, vector<16x256xf32> -> vector<16x256xf32>
    %64 = arith.addf %58, %63 : vector<16x256xf32>
    %65 = vector.extract_strided_slice %15 {offsets = [0, 2, 2], sizes = [16, 16, 16], strides = [1, 1, 1]} : vector<16x18x18xbf16> to vector<16x16x16xbf16>
    %66 = vector.shape_cast %65 : vector<16x16x16xbf16> to vector<16x256xbf16>
    %c8 = arith.constant 8 : index
    %c0_33 = arith.constant 0 : index
    %c0_34 = arith.constant 0 : index
    %67 = vector.load %arg4[%c8, %c0_33, %c0_34] : memref<9x16x16xbf16, #tpu.memory_space<vmem>>, vector<1x16x16xbf16>
    %68 = vector.shape_cast %67 : vector<1x16x16xbf16> to vector<16x16xbf16>
    %cst_35 = arith.constant dense<0.000000e+00> : vector<16x256xf32>
    %69 = tpu.matmul %68, %66, %cst_35 {dimension_numbers = #tpu.dot_dimension_numbers<[1], [0], [0], [1], [0, 0, 1, 1], [], []>} : vector<16x16xbf16>, vector<16x256xbf16>, vector<16x256xf32> -> vector<16x256xf32>
    %70 = arith.addf %64, %69 : vector<16x256xf32>
    %71 = arith.truncf %70 : vector<16x256xf32> to vector<16x256xbf16>
    %c0_36 = arith.constant 0 : index
    %c0_37 = arith.constant 0 : index
    %72 = vector.load %arg5[%c0_36, %c0_37] : memref<16x256xbf16, #tpu.memory_space<vmem>>, vector<16x256xbf16>
    tpu.vector_store %arg5[%c0_36, %c0_37], %71 {strides = array<i32>} : memref<16x256xbf16, #tpu.memory_space<vmem>>, vector<16x256xbf16>,
    %73 = arith.extf %71 : vector<16x256xbf16> to vector<16x256xf32>
    %cst_38 = arith.constant dense<0.000000e+00> : vector<16xf32>
    %74 = vector.multi_reduction <add>, %73, %cst_38 [1] : vector<16x256xf32> to vector<16xf32>
    %75 = vector.shape_cast %74 : vector<16xf32> to vector<16x1xf32>
    %76 = arith.mulf %73, %73 : vector<16x256xf32>
    %cst_39 = arith.constant dense<0.000000e+00> : vector<16xf32>
    %77 = vector.multi_reduction <add>, %76, %cst_39 [1] : vector<16x256xf32> to vector<16xf32>
    %78 = vector.shape_cast %77 : vector<16xf32> to vector<16x1xf32>
    %79 = tpu.concatenate %75, %78 in 1 : vector<16x1xf32>, vector<16x1xf32> -> vector<16x2xf32>
    %c0_40 = arith.constant 0 : index
    %c0_41 = arith.constant 0 : index
    %80 = vector.load %arg6[%c0_40, %c0_41] : memref<16x2xf32, #tpu.memory_space<vmem>>, vector<16x2xf32>
    tpu.vector_store %arg6[%c0_40, %c0_41], %79 {strides = array<i32>} : memref<16x2xf32, #tpu.memory_space<vmem>>, vector<16x2xf32>,
    return
  }
  func.func @transform_0(%arg0: i32) -> (i32, i32) {
    %c0_i32 = arith.constant 0 : i32
    %c0_i32_0 = arith.constant 0 : i32
    return %arg0, %c0_i32 : i32, i32
  }
  func.func @transform_1(%arg0: i32) -> (i32, i32) {
    %c0_i32 = arith.constant 0 : i32
    %c0_i32_0 = arith.constant 0 : i32
    %c0_i32_1 = arith.constant 0 : i32
    return %c0_i32, %c0_i32_0 : i32, i32
  }
  func.func @transform_2(%arg0: i32) -> (i32, i32) {
    %c0_i32 = arith.constant 0 : i32
    %c0_i32_0 = arith.constant 0 : i32
    %c0_i32_1 = arith.constant 0 : i32
    return %c0_i32, %c0_i32_0 : i32, i32
  }
  func.func @transform_3(%arg0: i32) -> (i32, i32, i32) {
    %c0_i32 = arith.constant 0 : i32
    %c0_i32_0 = arith.constant 0 : i32
    %c0_i32_1 = arith.constant 0 : i32
    %c0_i32_2 = arith.constant 0 : i32
    return %c0_i32, %c0_i32_0, %c0_i32_1 : i32, i32, i32
  }
  func.func @transform_4(%arg0: i32) -> (i32, i32) {
    %c0_i32 = arith.constant 0 : i32
    %c0_i32_0 = arith.constant 0 : i32
    return %arg0, %c0_i32 : i32, i32
  }
  func.func @transform_5(%arg0: i32) -> (i32, i32) {
    %c0_i32 = arith.constant 0 : i32
    %c0_i32_0 = arith.constant 0 : i32
    return %arg0, %c0_i32 : i32, i32
  }
}

module attributes {stable_mosaic.version = 11 : i64} {
  func.func @_bn_relu_conv1x1_kernel(%arg0: i32, %arg1: i32, %arg2: memref<16x256xbf16, #tpu.memory_space<vmem>>, %arg3: memref<16x1xf32, #tpu.memory_space<vmem>>, %arg4: memref<16x1xf32, #tpu.memory_space<vmem>>, %arg5: memref<64x16xbf16, #tpu.memory_space<vmem>>, %arg6: memref<64x256xbf16, #tpu.memory_space<vmem>>, %arg7: memref<64x2xf32, #tpu.memory_space<vmem>>) attributes {dimension_semantics = [#tpu.dimension_semantics<parallel>, #tpu.dimension_semantics<parallel>], iteration_bounds = array<i64: 2, 1>, scalar_prefetch = 0 : i64, scratch_operands = 0 : i64, tpu.core_type = #tpu.core_type<tc>, window_params = [{transform_indices = @transform_0, window_bounds = array<i64: 16, 256>}, {pipeline_mode = #tpu.pipeline_mode<synchronous>, transform_indices = @transform_1, window_bounds = array<i64: 16, 1>}, {pipeline_mode = #tpu.pipeline_mode<synchronous>, transform_indices = @transform_2, window_bounds = array<i64: 16, 1>}, {pipeline_mode = #tpu.pipeline_mode<synchronous>, transform_indices = @transform_3, window_bounds = array<i64: 64, 16>}, {transform_indices = @transform_4, window_bounds = array<i64: 64, 256>}, {transform_indices = @transform_5, window_bounds = array<i64: 64, 2>}]} {
    %c0 = arith.constant 0 : index
    %c0_0 = arith.constant 0 : index
    %0 = vector.load %arg2[%c0, %c0_0] : memref<16x256xbf16, #tpu.memory_space<vmem>>, vector<16x256xbf16>
    %1 = arith.extf %0 : vector<16x256xbf16> to vector<16x256xf32>
    %c0_1 = arith.constant 0 : index
    %c0_2 = arith.constant 0 : index
    %2 = vector.load %arg3[%c0_1, %c0_2] : memref<16x1xf32, #tpu.memory_space<vmem>>, vector<16x1xf32>
    %3 = vector.broadcast %2 : vector<16x1xf32> to vector<16x256xf32>
    %4 = arith.mulf %1, %3 : vector<16x256xf32>
    %c0_3 = arith.constant 0 : index
    %c0_4 = arith.constant 0 : index
    %5 = vector.load %arg4[%c0_3, %c0_4] : memref<16x1xf32, #tpu.memory_space<vmem>>, vector<16x1xf32>
    %6 = vector.broadcast %5 : vector<16x1xf32> to vector<16x256xf32>
    %7 = arith.addf %4, %6 : vector<16x256xf32>
    %cst = arith.constant 0.000000e+00 : f32
    %8 = vector.broadcast %cst : f32 to vector<16x256xf32>
    %9 = arith.maximumf %7, %8 : vector<16x256xf32>
    %c0_5 = arith.constant 0 : index
    %c0_6 = arith.constant 0 : index
    %10 = vector.load %arg5[%c0_5, %c0_6] : memref<64x16xbf16, #tpu.memory_space<vmem>>, vector<64x16xbf16>
    %11 = arith.truncf %9 : vector<16x256xf32> to vector<16x256xbf16>
    %cst_7 = arith.constant dense<0.000000e+00> : vector<64x256xf32>
    %12 = tpu.matmul %10, %11, %cst_7 {dimension_numbers = #tpu.dot_dimension_numbers<[1], [0], [0], [1], [0, 0, 1, 1], [], []>} : vector<64x16xbf16>, vector<16x256xbf16>, vector<64x256xf32> -> vector<64x256xf32>
    %13 = arith.truncf %12 : vector<64x256xf32> to vector<64x256xbf16>
    %c0_8 = arith.constant 0 : index
    %c0_9 = arith.constant 0 : index
    %14 = vector.load %arg6[%c0_8, %c0_9] : memref<64x256xbf16, #tpu.memory_space<vmem>>, vector<64x256xbf16>
    tpu.vector_store %arg6[%c0_8, %c0_9], %13 {strides = array<i32>} : memref<64x256xbf16, #tpu.memory_space<vmem>>, vector<64x256xbf16>,
    %15 = arith.extf %13 : vector<64x256xbf16> to vector<64x256xf32>
    %cst_10 = arith.constant dense<0.000000e+00> : vector<64xf32>
    %16 = vector.multi_reduction <add>, %15, %cst_10 [1] : vector<64x256xf32> to vector<64xf32>
    %17 = vector.shape_cast %16 : vector<64xf32> to vector<64x1xf32>
    %18 = arith.mulf %15, %15 : vector<64x256xf32>
    %cst_11 = arith.constant dense<0.000000e+00> : vector<64xf32>
    %19 = vector.multi_reduction <add>, %18, %cst_11 [1] : vector<64x256xf32> to vector<64xf32>
    %20 = vector.shape_cast %19 : vector<64xf32> to vector<64x1xf32>
    %21 = tpu.concatenate %17, %20 in 1 : vector<64x1xf32>, vector<64x1xf32> -> vector<64x2xf32>
    %c0_12 = arith.constant 0 : index
    %c0_13 = arith.constant 0 : index
    %22 = vector.load %arg7[%c0_12, %c0_13] : memref<64x2xf32, #tpu.memory_space<vmem>>, vector<64x2xf32>
    tpu.vector_store %arg7[%c0_12, %c0_13], %21 {strides = array<i32>} : memref<64x2xf32, #tpu.memory_space<vmem>>, vector<64x2xf32>,
    return
  }
  func.func @transform_0(%arg0: i32, %arg1: i32) -> (i32, i32) {
    %c0_i32 = arith.constant 0 : i32
    return %arg0, %arg1 : i32, i32
  }
  func.func @transform_1(%arg0: i32, %arg1: i32) -> (i32, i32) {
    %c0_i32 = arith.constant 0 : i32
    %c0_i32_0 = arith.constant 0 : i32
    %c0_i32_1 = arith.constant 0 : i32
    return %c0_i32, %c0_i32_0 : i32, i32
  }
  func.func @transform_2(%arg0: i32, %arg1: i32) -> (i32, i32) {
    %c0_i32 = arith.constant 0 : i32
    %c0_i32_0 = arith.constant 0 : i32
    %c0_i32_1 = arith.constant 0 : i32
    return %c0_i32, %c0_i32_0 : i32, i32
  }
  func.func @transform_3(%arg0: i32, %arg1: i32) -> (i32, i32) {
    %c0_i32 = arith.constant 0 : i32
    %c0_i32_0 = arith.constant 0 : i32
    %c0_i32_1 = arith.constant 0 : i32
    return %c0_i32, %c0_i32_0 : i32, i32
  }
  func.func @transform_4(%arg0: i32, %arg1: i32) -> (i32, i32) {
    %c0_i32 = arith.constant 0 : i32
    return %arg0, %arg1 : i32, i32
  }
  func.func @transform_5(%arg0: i32, %arg1: i32) -> (i32, i32) {
    %c1_i32 = arith.constant 1 : i32
    %0 = arith.muli %arg0, %c1_i32 : i32
    %1 = arith.addi %0, %arg1 : i32
    %c0_i32 = arith.constant 0 : i32
    %c0_i32_0 = arith.constant 0 : i32
    return %1, %c0_i32 : i32, i32
  }
}

module attributes {stable_mosaic.version = 11 : i64} {
  func.func @_bn_add_relu_kernel(%arg0: i32, %arg1: i32, %arg2: memref<64x256xbf16, #tpu.memory_space<vmem>>, %arg3: memref<64x256xf32, #tpu.memory_space<vmem>>, %arg4: memref<64x1xf32, #tpu.memory_space<vmem>>, %arg5: memref<64x1xf32, #tpu.memory_space<vmem>>, %arg6: memref<64x256xf32, #tpu.memory_space<vmem>>) attributes {dimension_semantics = [#tpu.dimension_semantics<parallel>, #tpu.dimension_semantics<parallel>], iteration_bounds = array<i64: 2, 1>, scalar_prefetch = 0 : i64, scratch_operands = 0 : i64, tpu.core_type = #tpu.core_type<tc>, window_params = [{transform_indices = @transform_0, window_bounds = array<i64: 64, 256>}, {transform_indices = @transform_1, window_bounds = array<i64: 64, 256>}, {pipeline_mode = #tpu.pipeline_mode<synchronous>, transform_indices = @transform_2, window_bounds = array<i64: 64, 1>}, {pipeline_mode = #tpu.pipeline_mode<synchronous>, transform_indices = @transform_3, window_bounds = array<i64: 64, 1>}, {transform_indices = @transform_4, window_bounds = array<i64: 64, 256>}]} {
    %c0 = arith.constant 0 : index
    %c0_0 = arith.constant 0 : index
    %0 = vector.load %arg2[%c0, %c0_0] : memref<64x256xbf16, #tpu.memory_space<vmem>>, vector<64x256xbf16>
    %1 = arith.extf %0 : vector<64x256xbf16> to vector<64x256xf32>
    %c0_1 = arith.constant 0 : index
    %c0_2 = arith.constant 0 : index
    %2 = vector.load %arg4[%c0_1, %c0_2] : memref<64x1xf32, #tpu.memory_space<vmem>>, vector<64x1xf32>
    %3 = vector.broadcast %2 : vector<64x1xf32> to vector<64x256xf32>
    %4 = arith.mulf %1, %3 : vector<64x256xf32>
    %c0_3 = arith.constant 0 : index
    %c0_4 = arith.constant 0 : index
    %5 = vector.load %arg5[%c0_3, %c0_4] : memref<64x1xf32, #tpu.memory_space<vmem>>, vector<64x1xf32>
    %6 = vector.broadcast %5 : vector<64x1xf32> to vector<64x256xf32>
    %7 = arith.addf %4, %6 : vector<64x256xf32>
    %c0_5 = arith.constant 0 : index
    %c0_6 = arith.constant 0 : index
    %8 = vector.load %arg3[%c0_5, %c0_6] : memref<64x256xf32, #tpu.memory_space<vmem>>, vector<64x256xf32>
    %9 = arith.addf %7, %8 : vector<64x256xf32>
    %cst = arith.constant 0.000000e+00 : f32
    %10 = vector.broadcast %cst : f32 to vector<64x256xf32>
    %11 = arith.maximumf %9, %10 : vector<64x256xf32>
    %c0_7 = arith.constant 0 : index
    %c0_8 = arith.constant 0 : index
    %12 = vector.load %arg6[%c0_7, %c0_8] : memref<64x256xf32, #tpu.memory_space<vmem>>, vector<64x256xf32>
    tpu.vector_store %arg6[%c0_7, %c0_8], %11 {strides = array<i32>} : memref<64x256xf32, #tpu.memory_space<vmem>>, vector<64x256xf32>,
    return
  }
  func.func @transform_0(%arg0: i32, %arg1: i32) -> (i32, i32) {
    %c0_i32 = arith.constant 0 : i32
    return %arg0, %arg1 : i32, i32
  }
  func.func @transform_1(%arg0: i32, %arg1: i32) -> (i32, i32) {
    %c0_i32 = arith.constant 0 : i32
    return %arg0, %arg1 : i32, i32
  }
  func.func @transform_2(%arg0: i32, %arg1: i32) -> (i32, i32) {
    %c0_i32 = arith.constant 0 : i32
    %c0_i32_0 = arith.constant 0 : i32
    %c0_i32_1 = arith.constant 0 : i32
    return %c0_i32, %c0_i32_0 : i32, i32
  }
  func.func @transform_3(%arg0: i32, %arg1: i32) -> (i32, i32) {
    %c0_i32 = arith.constant 0 : i32
    %c0_i32_0 = arith.constant 0 : i32
    %c0_i32_1 = arith.constant 0 : i32
    return %c0_i32, %c0_i32_0 : i32, i32
  }
  func.func @transform_4(%arg0: i32, %arg1: i32) -> (i32, i32) {
    %c0_i32 = arith.constant 0 : i32
    return %arg0, %arg1 : i32, i32
  }
}

</mosaic_0001>

<llo_original>
// kernel: bottleneck_forward.4
$region0: #{bottleneck_forward.4}
  #allocation0 [shape = 'u32[]', space=smem, size = 0x4, offset = 0x4, fixed_abs, tag = 'smem constant byte address 0x4 - core index']
  #allocation1 [shape = 'u32[144,128]{1,0:T(1,128)}', space=vmem, size = 0x12000, scoped, tag = 'internal scratch']
  %s0 = inlined_call_operand.vmem [shape: f32[128,256], index: 0, kind: input, shape index: {}]
  %s1 = inlined_call_operand.vmem [shape: bf16[16,64], index: 1, kind: input, shape index: {}]
  %s2 = inlined_call_operand.vmem [shape: bf16[32,256], index: 2, kind: output, shape index: {0}]
  %s3 = inlined_call_operand.vmem [shape: f32[32,2], index: 3, kind: output, shape index: {1}]
  %4 = xla_tuple %s2, %s3
  %s5 = sld [smem:[#allocation0]]
  $region49: #{bottleneck_forward.4} parent=0
    _
  %s7 = ssub.s32 1, %s5
  %s8 = scalar_select 0, %s7, %s5
  loop: start=0, step=1, limit=4
  $region2: #{bottleneck_forward.4} parent=0 // loop_pre_header
    _
  $region3: #{bottleneck_forward.4} parent=0 // loop_header
    %s10 = sphi 0, %s14
    %p11 = scmp.ge.s32.totalorder %s10, 4
    %s17 = sphi 0, %s29
    %s18 = sphi 0, %s25
    %s19 = sphi 0, %s17
    %s20 = sphi 0, %s18
    %s21 = sphi 0, %s19
    %s22 = sphi 0, %s20
    %s34 = sphi 0, %s36
    %s37 = sphi 0, %s34
    %s38 = sphi 0, %s37
    %s54 = sphi 0, %s38
    %s58 = sphi 0, %s58
    %s60 = sphi 0, %s58
    %s61 = sphi 0, %s60
    %s75 = sphi 0, %s61
    %s83 = sphi 0, %s85
    %s86 = sphi 0, %s83
    %s87 = sphi 0, %s86
    %s103 = sphi 0, %s87
    %s111 = sphi 0, %s113
    %s114 = sphi 0, %s111
    %s115 = sphi 0, %s114
    %s131 = sphi 0, %s115
  $region4: #{bottleneck_forward.4} parent=0 // loop_header_branch
    %13 = sbr.rel (%p11) target = $region8
  $region5: #{bottleneck_forward.4} parent=0 // loop_body
    %s15 = ssub.s32 %s10, 1
    %s16 = ssub.s32 %s10, 2
    %s23 = sadd.s32 1, %s18
    %p24 = scmp.ge.s32.totalorder %s23, 1
    %s25 = scalar_select %p24, 0, %s23
    %s26 = sadd.s32 1, %s17
    %s27 = scalar_select %p24, %s26, %s17
    %p28 = scmp.ge.s32.totalorder %s27, 2
    %s29 = scalar_select %p28, 0, %s27
    %s30 = ssub.s32 %s17, %s29
    %s31 = ssub.s32 %s18, %s25
    %s32 = sor.u32 %s30, %s31
    %p33 = scmp.eq.s32.totalorder %s32, 0
    %s35 = sadd.s32 %s34, 1
    %s36 = scalar_select %p33, %s34, %s35
    %p39 = pneg %p33
    %p40 = scmp.eq.s32.totalorder %s10, 1
    %p41 = por %p39, %p40
    %p42 = scmp.ne.s32.totalorder %s34, %s37
    %p43 = scmp.eq.s32.totalorder %s10, 0
    %p44 = por %p42, %p43
    %p45 = scmp.ne.s32.totalorder %s34, %s37
    %p46 = scmp.eq.s32.totalorder %s15, 1
    %p47 = por %p45, %p46
    %p48 = scmp.ne.s32.totalorder %s37, %s38
    %p49 = scmp.eq.s32.totalorder %s15, 0
    %p50 = por %p48, %p49
    %p51 = scmp.ne.s32.totalorder %s37, %s38
    %p52 = scmp.eq.s32.totalorder %s16, 1
    %p53 = por %p51, %p52
    %p55 = scmp.ne.s32.totalorder %s38, %s54
    %p56 = scmp.eq.s32.totalorder %s16, 0
    %p57 = por %p55, %p56
    %s59 = sadd.s32 %s58, 1
    %p62 = scmp.eq.s32.totalorder %s10, 1
    %p63 = scmp.ne.s32.totalorder %s58, %s60
    %p64 = scmp.eq.s32.totalorder %s10, 0
    %p65 = por %p63, %p64
    %p66 = scmp.ne.s32.totalorder %s58, %s60
    %p67 = scmp.eq.s32.totalorder %s15, 1
    %p68 = por %p66, %p67
    %p69 = scmp.ne.s32.totalorder %s60, %s61
    %p70 = scmp.eq.s32.totalorder %s15, 0
    %p71 = por %p69, %p70
    %p72 = scmp.ne.s32.totalorder %s60, %s61
    %p73 = scmp.eq.s32.totalorder %s16, 1
    %p74 = por %p72, %p73
    %p76 = scmp.ne.s32.totalorder %s61, %s75
    %p77 = scmp.eq.s32.totalorder %s16, 0
    %p78 = por %p76, %p77
    %s79 = ssub.s32 %s17, %s29
    %s80 = ssub.s32 %s18, %s25
    %s81 = sor.u32 %s79, %s80
    %p82 = scmp.eq.s32.totalorder %s81, 0
    %s84 = sadd.s32 %s83, 1
    %s85 = scalar_select %p82, %s83, %s84
    %p88 = pneg %p82
    %p89 = scmp.eq.s32.totalorder %s10, 1
    %p90 = por %p88, %p89
    %p91 = scmp.ne.s32.totalorder %s83, %s86
    %p92 = scmp.eq.s32.totalorder %s10, 0
    %p93 = por %p91, %p92
    %p94 = scmp.ne.s32.totalorder %s83, %s86
    %p95 = scmp.eq.s32.totalorder %s15, 1
    %p96 = por %p94, %p95
    %p97 = scmp.ne.s32.totalorder %s86, %s87
    %p98 = scmp.eq.s32.totalorder %s15, 0
    %p99 = por %p97, %p98
    %p100 = scmp.ne.s32.totalorder %s86, %s87
    %p101 = scmp.eq.s32.totalorder %s16, 1
    %p102 = por %p100, %p101
    %p104 = scmp.ne.s32.totalorder %s87, %s103
    %p105 = scmp.eq.s32.totalorder %s16, 0
    %p106 = por %p104, %p105
    %s107 = sadd.s32 %s17, %s18
    %s108 = sadd.s32 %s29, %s25
    %s109 = ssub.s32 %s107, %s108
    %p110 = scmp.eq.s32.totalorder %s109, 0
    %s112 = sadd.s32 %s111, 1
    %s113 = scalar_select %p110, %s111, %s112
    %p116 = pneg %p110
    %p117 = scmp.eq.s32.totalorder %s10, 1
    %p118 = por %p116, %p117
    %p119 = scmp.ne.s32.totalorder %s111, %s114
    %p120 = scmp.eq.s32.totalorder %s10, 0
    %p121 = por %p119, %p120
    %p122 = scmp.ne.s32.totalorder %s111, %s114
    %p123 = scmp.eq.s32.totalorder %s15, 1
    %p124 = por %p122, %p123
    %p125 = scmp.ne.s32.totalorder %s114, %s115
    %p126 = scmp.eq.s32.totalorder %s15, 0
    %p127 = por %p125, %p126
    %p128 = scmp.ne.s32.totalorder %s114, %s115
    %p129 = scmp.eq.s32.totalorder %s16, 1
    %p130 = por %p128, %p129
    %p132 = scmp.ne.s32.totalorder %s115, %s131
    %p133 = scmp.eq.s32.totalorder %s16, 0
    %p134 = por %p132, %p133
    %p135 = scmp.le.s32.totalorder 1, %s10
    %p136 = scmp.lt.s32.totalorder %s10, 3
    %p137 = pnand %p135, %p136
    %p138 = pneg %p137
    // Predicated region
    $region9: #{bottleneck_forward.4} parent=5 // pred_check
      _
    $region10: #{bottleneck_forward.4} parent=5 // pred_check_branch
      %140 = sbr.rel (%p137) target = $region12
    $region11: #{bottleneck_forward.4} parent=5 // pred_region
      %s141 = ssub.s32 %s10, 1
      // Predicated region
      $region13: #{bottleneck_forward.4} parent=11 // pred_check
        %p142 = pneg %p71
      $region14: #{bottleneck_forward.4} parent=11 // pred_check_branch
        %144 = sbr.rel (%p142) target = $region16
      $region15: #{bottleneck_forward.4} parent=11 // pred_region
        _
      $region16: #{bottleneck_forward.4} parent=11 // pred_fallthru
        _
    $region12: #{bottleneck_forward.4} parent=5 // pred_fallthru
      _
    %p145 = scmp.lt.s32.totalorder %s10, 2
    // Predicated region
    $region17: #{bottleneck_forward.4} parent=5 // pred_check
      %p146 = pneg %p145
    $region18: #{bottleneck_forward.4} parent=5 // pred_check_branch
      %148 = sbr.rel (%p146) target = $region20
    $region19: #{bottleneck_forward.4} parent=5 // pred_region
      // Predicated region
      $region21: #{bottleneck_forward.4} parent=19 // pred_check
        %p149 = pneg %p44
      $region22: #{bottleneck_forward.4} parent=19 // pred_check_branch
        %151 = sbr.rel (%p149) target = $region24
      $region23: #{bottleneck_forward.4} parent=19 // pred_region
        %s152 = smul.u32 8, %s17
        %s153 = smul.u32 2, %s18
        %p154 = scmp.lt.s32.totalorder %s152, 15
        %s155 = scalar_select %p154, %s152, 15
        %p156 = scmp.lt.s32.totalorder %s153, 1
        %s157 = scalar_select %p156, %s153, 1
        %s158 = smul.addr %s155, 2
        %s159 = sadd.s32 %s157, %s158
        %s160 = smul.addr %s159, 8
        %s161 = scalar_lea.vmem %s0, %s160
        %s162 = smul.u32 8, %s17
        %s163 = smul.u32 2, %s18
      $region24: #{bottleneck_forward.4} parent=19 // pred_fallthru
        _
    $region20: #{bottleneck_forward.4} parent=5 // pred_fallthru
      _
    %p164 = scmp.le.s32.totalorder 1, %s10
    %p165 = scmp.lt.s32.totalorder %s10, 3
    %p166 = pnand %p164, %p165
    %p167 = pneg %p166
    // Predicated region
    $region25: #{bottleneck_forward.4} parent=5 // pred_check
      _
    $region26: #{bottleneck_forward.4} parent=5 // pred_check_branch
      %169 = sbr.rel (%p166) target = $region28
    $region27: #{bottleneck_forward.4} parent=5 // pred_region
      %s170 = ssub.s32 %s10, 1
      %s171 = smul.u32 8, %s19
      %s172 = smul.u32 2, %s20
      %p173 = scmp.lt.s32.totalorder %s171, 15
      %s174 = scalar_select %p173, %s171, 15
      %p175 = scmp.lt.s32.totalorder %s172, 1
      %s176 = scalar_select %p175, %s172, 1
      %s177 = smul.addr %s174, 2
      %s178 = sadd.s32 %s176, %s177
      %s179 = smul.addr %s178, 8
      %s180 = scalar_lea.vmem %s0, %s179
      %p181 = pneg %p50
      %p182 = pneg %p47
      %p183 = pneg %p71
      %p184 = pneg %p68
      %p185 = pneg %p99
      %p186 = pneg %p96
      %s187 = smul.u32 2, %s19
      %s188 = smul.u32 2, %s20
      %p189 = scmp.lt.s32.totalorder %s187, 3
      %s190 = scalar_select %p189, %s187, 3
      %p191 = scmp.lt.s32.totalorder %s188, 1
      %s192 = scalar_select %p191, %s188, 1
      %s193 = smul.addr %s190, 2
      %s194 = sadd.s32 %s192, %s193
      %s195 = smul.addr %s194, 4
      %s196 = scalar_lea.vmem %s2, %s195
      %p197 = pneg %p127
      %p198 = pneg %p124
      %s199 = sadd.s32 %s19, %s20
      %s200 = smul.u32 2, %s199
      %p201 = scmp.lt.s32.totalorder %s200, 3
      %s202 = scalar_select %p201, %s200, 3
      %s203 = smul.addr %s202, 8
      %s204 = scalar_lea.vmem %s3, %s203
      %s205 = smul.u32 8, %s19
      %s206 = smul.u32 2, %s20
      %p207 = scmp.lt.s32.totalorder %s205, 15
      %s208 = scalar_select %p207, %s205, 15
      %p209 = scmp.lt.s32.totalorder %s206, 1
      %s210 = scalar_select %p209, %s206, 1
      %s211 = smul.addr %s208, 2
      %s212 = sadd.s32 %s210, %s211
      %s213 = smul.addr %s212, 8
      %s214 = scalar_lea.vmem %s0, %s213
      %s215 = smul.u32 8, %s19
      %s216 = smul.u32 2, %s20
      %s217 = smul.u32 2, %s19
      %s218 = smul.u32 2, %s20
      %p219 = scmp.lt.s32.totalorder %s217, 3
      %s220 = scalar_select %p219, %s217, 3
      %p221 = scmp.lt.s32.totalorder %s218, 1
      %s222 = scalar_select %p221, %s218, 1
      %s223 = smul.addr %s220, 2
      %s224 = sadd.s32 %s222, %s223
      %s225 = smul.addr %s224, 4
      %s226 = scalar_lea.vmem %s2, %s225
      %s227 = smul.u32 2, %s19
      %s228 = smul.u32 2, %s20
      %s229 = sadd.s32 %s19, %s20
      %s230 = smul.u32 2, %s229
      %p231 = scmp.lt.s32.totalorder %s230, 3
      %s232 = scalar_select %p231, %s230, 3
      %s233 = smul.addr %s232, 8
      %s234 = scalar_lea.vmem %s3, %s233
      %s235 = sadd.s32 %s19, %s20
      %s236 = smul.u32 2, %s235
      %v238 = vld [vmem:[%s1] sm:$0xf]
      %v239 = vld [vmem:[%s1 + $0x4] sm:$0xf]
      %v240 = vld [vmem:[%s214] sm:$0xff]
      %v241 = vld [vmem:[%s214 + $0x8] sm:$0xff]
      %v242 = vld [vmem:[%s214 + $0x10] sm:$0xff]
      %v243 = vld [vmem:[%s214 + $0x18] sm:$0xff]
      %v244 = vld [vmem:[%s214 + $0x20] sm:$0xff]
      %v245 = vld [vmem:[%s214 + $0x28] sm:$0xff]
      %v246 = vld [vmem:[%s214 + $0x30] sm:$0xff]
      %v247 = vld [vmem:[%s214 + $0x38] sm:$0xff]
      %v248 = vld [vmem:[%s214 + $0x40] sm:$0xff]
      %v249 = vld [vmem:[%s214 + $0x48] sm:$0xff]
      %v250 = vld [vmem:[%s214 + $0x50] sm:$0xff]
      %v251 = vld [vmem:[%s214 + $0x58] sm:$0xff]
      %v252 = vld [vmem:[%s214 + $0x60] sm:$0xff]
      %v253 = vld [vmem:[%s214 + $0x68] sm:$0xff]
      %v254 = vld [vmem:[%s214 + $0x70] sm:$0xff]
      %v255 = vld [vmem:[%s214 + $0x78] sm:$0xff]
      %v256 = vpack.c.bf16 %v242, %v240
      %v257 = vpack.c.bf16 %v243, %v241
      %v258 = vpack.c.bf16 %v246, %v244
      %v259 = vpack.c.bf16 %v247, %v245
      %v260 = vpack.c.bf16 %v250, %v248
      %v261 = vpack.c.bf16 %v251, %v249
      %v262 = vpack.c.bf16 %v254, %v252
      %v263 = vpack.c.bf16 %v255, %v253
      %v266 = vunpack.c.l.b16 %v238
      %v267 = vunpack.c.l.b16 %v239
      %v268 = vpack.c.b16 %v267, %v266
      %vm269 = vcmask 523264
      %v271 = vsel %vm269, %v268, 0
      %273 = vmatprep.subr.bf16.mxu0 %v257
      %274 = vmatpush1.bf16.msra.mxu0 %v256
      %275 = vmatprep.subr.bf16.mxu0 %v259
      %276 = vmatpush1.bf16.msra.mxu0 %v258
      %277 = vmatprep.subr.bf16.mxu0 %v261
      %278 = vmatpush1.bf16.msra.mxu0 %v260
      %279 = vmatprep.subr.bf16.mxu0 %v263
      %280 = vmatpush1.bf16.msra.mxu0 %v262
      %281 = vmatprep.subr.bf16.mxu0 0
      %282 = vmatpush1.bf16.msra.mxu0 0
      %283 = vmatprep.subr.bf16.mxu0 0
      %284 = vmatpush1.bf16.msra.mxu0 0
      %285 = vmatprep.subr.bf16.mxu0 0
      %286 = vmatpush1.bf16.msra.mxu0 0
      %287 = vmatprep.subr.bf16.mxu0 0
      %288 = vmatpush1.bf16.msra.mxu0 0
      %289 = vmatprep.subr.bf16.mxu0 0
      %290 = vmatpush1.bf16.msra.mxu0 0
      %291 = vmatprep.subr.bf16.mxu0 0
      %292 = vmatpush1.bf16.msra.mxu0 0
      %293 = vmatprep.subr.bf16.mxu0 0
      %294 = vmatpush1.bf16.msra.mxu0 0
      %295 = vmatprep.subr.bf16.mxu0 0
      %296 = vmatpush1.bf16.msra.mxu0 0
      %297 = vmatprep.subr.bf16.mxu0 0
      %298 = vmatpush1.bf16.msra.mxu0 0
      %299 = vmatprep.subr.bf16.mxu0 0
      %300 = vmatpush1.bf16.msra.mxu0 0
      %301 = vmatprep.subr.bf16.mxu0 0
      %302 = vmatpush1.bf16.msra.mxu0 0
      %303 = vmatprep.subr.bf16.mxu0 0
      %304 = vmatpush1.bf16.msra.mxu0 0
      %305 = vmatprep.mubr.bf16.mxu0 0
      %306 = vmatmul.mubr.bf16.gmra.mrb[0].mxu0 %v271
      %v307 = vpop.f32.mrb[0].mxu0
      %v308 = vadd.f32 0.0, %v307
      %v309 = vpop.f32.mrb[0].mxu0
      %v310 = vadd.f32 0.0, %v309
      %v311 = vpop.f32.mrb[0].mxu0
      %v312 = vadd.f32 0.0, %v311
      %v313 = vpop.f32.mrb[0].mxu0
      %v314 = vadd.f32 0.0, %v313
      %315 = vdwg.mxu0
      %v316 = vpack.c.bf16 %v312, %v308
      %v317 = vpack.c.bf16 %v314, %v310
      %v320 = vunpack.c.l.b16 %v316
      %v321 = vunpack.c.l.b16 %v317
      %v322 = vunpack.c.h.b16 %v316
      %v323 = vunpack.c.h.b16 %v317
      %v324 = vpack.c.b16 %v321, %v320
      %v325 = vpack.c.b16 %v323, %v322
      %328 = vst [vmem:[%s226] sm:$0xff] %v324
      %329 = vst [vmem:[%s226 + $0x8] sm:$0xff] %v325
      %v330 = vunpack.c.l.bf16 %v316
      %v331 = vunpack.c.l.bf16 %v317
      %v332 = vunpack.c.h.bf16 %v316
      %v333 = vunpack.c.h.bf16 %v317
      %v334 = vadd.f32 %v330, %v331
      %335 = vadd.xlane.f32.xlu0 %v334
      %v336 = vpop.xlane.xlu0 %335
      %v337 = vadd.f32 %v332, %v333
      %338 = vadd.xlane.f32.xlu0 %v337
      %v339 = vpop.xlane.xlu0 %338
      %v340 = vmul.f32 %v330, %v330
      %v341 = vmul.f32 %v331, %v331
      %v342 = vmul.f32 %v332, %v332
      %v343 = vmul.f32 %v333, %v333
      %v344 = vadd.f32 %v340, %v341
      %345 = vadd.xlane.f32.xlu0 %v344
      %v346 = vpop.xlane.xlu0 %345
      %v347 = vadd.f32 %v342, %v343
      %348 = vadd.xlane.f32.xlu0 %v347
      %v349 = vpop.xlane.xlu0 %348
      %vm350 = vcmask 7168
      %v351 = vsel %vm350, %v336, %v346
      %v352 = vsel %vm350, %v339, %v349
      %vm353 = vcmask 15360
      %354 = vst.msk [vmem:[%s234] sm:$0xff] %vm353, %v351
      %355 = vst.msk [vmem:[%s234 + $0x8] sm:$0xff] %vm353, %v352
      %s356 = smul.u32 2, %s19
      %s357 = smul.u32 2, %s20
      %p358 = scmp.lt.s32.totalorder %s356, 3
      %s359 = scalar_select %p358, %s356, 3
      %p360 = scmp.lt.s32.totalorder %s357, 1
      %s361 = scalar_select %p360, %s357, 1
      %s362 = smul.addr %s359, 2
      %s363 = sadd.s32 %s361, %s362
      %s364 = smul.addr %s363, 4
      %s365 = scalar_lea.vmem %s2, %s364
      %s366 = sadd.s32 %s19, %s20
      %s367 = smul.u32 2, %s366
      %p368 = scmp.lt.s32.totalorder %s367, 3
      %s369 = scalar_select %p368, %s367, 3
      %s370 = smul.addr %s369, 8
      %s371 = scalar_lea.vmem %s3, %s370
      // Predicated region
      $region29: #{bottleneck_forward.4} parent=27 // pred_check
        %p372 = pneg %p96
      $region30: #{bottleneck_forward.4} parent=27 // pred_check_branch
        %374 = sbr.rel (%p372) target = $region32
      $region31: #{bottleneck_forward.4} parent=27 // pred_region
        %s375 = smul.u32 2, %s19
        %s376 = smul.u32 2, %s20
      $region32: #{bottleneck_forward.4} parent=27 // pred_fallthru
        _
      // Predicated region
      $region33: #{bottleneck_forward.4} parent=27 // pred_check
        %p377 = pneg %p124
      $region34: #{bottleneck_forward.4} parent=27 // pred_check_branch
        %379 = sbr.rel (%p377) target = $region36
      $region35: #{bottleneck_forward.4} parent=27 // pred_region
        %s380 = sadd.s32 %s19, %s20
        %s381 = smul.u32 2, %s380
      $region36: #{bottleneck_forward.4} parent=27 // pred_fallthru
        _
    $region28: #{bottleneck_forward.4} parent=5 // pred_fallthru
      _
    %p382 = scmp.le.s32.totalorder 2, %s10
    // Predicated region
    $region37: #{bottleneck_forward.4} parent=5 // pred_check
      %p383 = pneg %p382
    $region38: #{bottleneck_forward.4} parent=5 // pred_check_branch
      %385 = sbr.rel (%p383) target = $region40
    $region39: #{bottleneck_forward.4} parent=5 // pred_region
      %s386 = ssub.s32 %s10, 2
      // Predicated region
      $region41: #{bottleneck_forward.4} parent=39 // pred_check
        %p387 = pneg %p102
      $region42: #{bottleneck_forward.4} parent=39 // pred_check_branch
        %389 = sbr.rel (%p387) target = $region44
      $region43: #{bottleneck_forward.4} parent=39 // pred_region
        %s390 = smul.u32 2, %s21
        %s391 = smul.u32 2, %s22
        %p392 = scmp.lt.s32.totalorder %s390, 3
        %s393 = scalar_select %p392, %s390, 3
        %p394 = scmp.lt.s32.totalorder %s391, 1
        %s395 = scalar_select %p394, %s391, 1
        %s396 = smul.addr %s393, 2
        %s397 = sadd.s32 %s395, %s396
        %s398 = smul.addr %s397, 4
        %s399 = scalar_lea.vmem %s2, %s398
      $region44: #{bottleneck_forward.4} parent=39 // pred_fallthru
        _
      // Predicated region
      $region45: #{bottleneck_forward.4} parent=39 // pred_check
        %p400 = pneg %p130
      $region46: #{bottleneck_forward.4} parent=39 // pred_check_branch
        %402 = sbr.rel (%p400) target = $region48
      $region47: #{bottleneck_forward.4} parent=39 // pred_region
        %s403 = sadd.s32 %s21, %s22
        %s404 = smul.u32 2, %s403
        %p405 = scmp.lt.s32.totalorder %s404, 3
        %s406 = scalar_select %p405, %s404, 3
        %s407 = smul.addr %s406, 8
        %s408 = scalar_lea.vmem %s3, %s407
      $region48: #{bottleneck_forward.4} parent=39 // pred_fallthru
        _
    $region40: #{bottleneck_forward.4} parent=5 // pred_fallthru
      _
  $region6: #{bottleneck_forward.4} parent=0 // loop_footer
    %s14 = sadd.s32 1, %s10
  $region7: #{bottleneck_forward.4} parent=0 // loop_footer_branch
    %9 = sbr.rel target = $region3
  $region8: #{bottleneck_forward.4} parent=0 // loop_exit
    _

// kernel: bottleneck_forward.6
$region0: #{bottleneck_forward.6}
  #allocation0 [shape = 'u32[]', space=smem, size = 0x4, offset = 0x4, fixed_abs, tag = 'smem constant byte address 0x4 - core index']
  #allocation1 [shape = 'u32[144,128]{1,0:T(1,128)}', space=vmem, size = 0x12000, scoped, tag = 'internal scratch']
  %s0 = inlined_call_operand.vmem [shape: bf16[32,256], index: 0, kind: input, shape index: {}]
  %s1 = inlined_call_operand.vmem [shape: f32[16,1], index: 1, kind: input, shape index: {}]
  %s2 = inlined_call_operand.vmem [shape: f32[16,1], index: 2, kind: input, shape index: {}]
  %s3 = inlined_call_operand.vmem [shape: bf16[64,16], index: 3, kind: input, shape index: {}]
  %s4 = inlined_call_operand.vmem [shape: bf16[128,256], index: 4, kind: output, shape index: {0}]
  %s5 = inlined_call_operand.vmem [shape: f32[128,2], index: 5, kind: output, shape index: {1}]
  %6 = xla_tuple %s4, %s5
  %s7 = sld [smem:[#allocation0]]
  $region57: #{bottleneck_forward.6} parent=0
    _
  %s9 = ssub.s32 1, %s7
  %s10 = scalar_select 0, %s9, %s7
  loop: start=0, step=1, limit=4
  $region2: #{bottleneck_forward.6} parent=0 // loop_pre_header
    _
  $region3: #{bottleneck_forward.6} parent=0 // loop_header
    %s12 = sphi 0, %s16
    %p13 = scmp.ge.s32.totalorder %s12, 4
    %s19 = sphi 0, %s31
    %s20 = sphi 0, %s27
    %s21 = sphi 0, %s19
    %s22 = sphi 0, %s20
    %s23 = sphi 0, %s21
    %s24 = sphi 0, %s22
    %s36 = sphi 0, %s38
    %s39 = sphi 0, %s36
    %s40 = sphi 0, %s39
    %s56 = sphi 0, %s40
    %s60 = sphi 0, %s60
    %s62 = sphi 0, %s60
    %s63 = sphi 0, %s62
    %s77 = sphi 0, %s63
    %s81 = sphi 0, %s81
    %s83 = sphi 0, %s81
    %s84 = sphi 0, %s83
    %s98 = sphi 0, %s84
    %s102 = sphi 0, %s102
    %s104 = sphi 0, %s102
    %s105 = sphi 0, %s104
    %s119 = sphi 0, %s105
    %s127 = sphi 0, %s129
    %s130 = sphi 0, %s127
    %s131 = sphi 0, %s130
    %s147 = sphi 0, %s131
    %s155 = sphi 0, %s157
    %s158 = sphi 0, %s155
    %s159 = sphi 0, %s158
    %s175 = sphi 0, %s159
  $region4: #{bottleneck_forward.6} parent=0 // loop_header_branch
    %15 = sbr.rel (%p13) target = $region8
  $region5: #{bottleneck_forward.6} parent=0 // loop_body
    %s17 = ssub.s32 %s12, 1
    %s18 = ssub.s32 %s12, 2
    %s25 = sadd.s32 1, %s20
    %p26 = scmp.ge.s32.totalorder %s25, 1
    %s27 = scalar_select %p26, 0, %s25
    %s28 = sadd.s32 1, %s19
    %s29 = scalar_select %p26, %s28, %s19
    %p30 = scmp.ge.s32.totalorder %s29, 2
    %s31 = scalar_select %p30, 0, %s29
    %s32 = ssub.s32 %s19, %s31
    %s33 = ssub.s32 %s20, %s27
    %s34 = sor.u32 %s32, %s33
    %p35 = scmp.eq.s32.totalorder %s34, 0
    %s37 = sadd.s32 %s36, 1
    %s38 = scalar_select %p35, %s36, %s37
    %p41 = pneg %p35
    %p42 = scmp.eq.s32.totalorder %s12, 1
    %p43 = por %p41, %p42
    %p44 = scmp.ne.s32.totalorder %s36, %s39
    %p45 = scmp.eq.s32.totalorder %s12, 0
    %p46 = por %p44, %p45
    %p47 = scmp.ne.s32.totalorder %s36, %s39
    %p48 = scmp.eq.s32.totalorder %s17, 1
    %p49 = por %p47, %p48
    %p50 = scmp.ne.s32.totalorder %s39, %s40
    %p51 = scmp.eq.s32.totalorder %s17, 0
    %p52 = por %p50, %p51
    %p53 = scmp.ne.s32.totalorder %s39, %s40
    %p54 = scmp.eq.s32.totalorder %s18, 1
    %p55 = por %p53, %p54
    %p57 = scmp.ne.s32.totalorder %s40, %s56
    %p58 = scmp.eq.s32.totalorder %s18, 0
    %p59 = por %p57, %p58
    %s61 = sadd.s32 %s60, 1
    %p64 = scmp.eq.s32.totalorder %s12, 1
    %p65 = scmp.ne.s32.totalorder %s60, %s62
    %p66 = scmp.eq.s32.totalorder %s12, 0
    %p67 = por %p65, %p66
    %p68 = scmp.ne.s32.totalorder %s60, %s62
    %p69 = scmp.eq.s32.totalorder %s17, 1
    %p70 = por %p68, %p69
    %p71 = scmp.ne.s32.totalorder %s62, %s63
    %p72 = scmp.eq.s32.totalorder %s17, 0
    %p73 = por %p71, %p72
    %p74 = scmp.ne.s32.totalorder %s62, %s63
    %p75 = scmp.eq.s32.totalorder %s18, 1
    %p76 = por %p74, %p75
    %p78 = scmp.ne.s32.totalorder %s63, %s77
    %p79 = scmp.eq.s32.totalorder %s18, 0
    %p80 = por %p78, %p79
    %s82 = sadd.s32 %s81, 1
    %p85 = scmp.eq.s32.totalorder %s12, 1
    %p86 = scmp.ne.s32.totalorder %s81, %s83
    %p87 = scmp.eq.s32.totalorder %s12, 0
    %p88 = por %p86, %p87
    %p89 = scmp.ne.s32.totalorder %s81, %s83
    %p90 = scmp.eq.s32.totalorder %s17, 1
    %p91 = por %p89, %p90
    %p92 = scmp.ne.s32.totalorder %s83, %s84
    %p93 = scmp.eq.s32.totalorder %s17, 0
    %p94 = por %p92, %p93
    %p95 = scmp.ne.s32.totalorder %s83, %s84
    %p96 = scmp.eq.s32.totalorder %s18, 1
    %p97 = por %p95, %p96
    %p99 = scmp.ne.s32.totalorder %s84, %s98
    %p100 = scmp.eq.s32.totalorder %s18, 0
    %p101 = por %p99, %p100
    %s103 = sadd.s32 %s102, 1
    %p106 = scmp.eq.s32.totalorder %s12, 1
    %p107 = scmp.ne.s32.totalorder %s102, %s104
    %p108 = scmp.eq.s32.totalorder %s12, 0
    %p109 = por %p107, %p108
    %p110 = scmp.ne.s32.totalorder %s102, %s104
    %p111 = scmp.eq.s32.totalorder %s17, 1
    %p112 = por %p110, %p111
    %p113 = scmp.ne.s32.totalorder %s104, %s105
    %p114 = scmp.eq.s32.totalorder %s17, 0
    %p115 = por %p113, %p114
    %p116 = scmp.ne.s32.totalorder %s104, %s105
    %p117 = scmp.eq.s32.totalorder %s18, 1
    %p118 = por %p116, %p117
    %p120 = scmp.ne.s32.totalorder %s105, %s119
    %p121 = scmp.eq.s32.totalorder %s18, 0
    %p122 = por %p120, %p121
    %s123 = ssub.s32 %s19, %s31
    %s124 = ssub.s32 %s20, %s27
    %s125 = sor.u32 %s123, %s124
    %p126 = scmp.eq.s32.totalorder %s125, 0
    %s128 = sadd.s32 %s127, 1
    %s129 = scalar_select %p126, %s127, %s128
    %p132 = pneg %p126
    %p133 = scmp.eq.s32.totalorder %s12, 1
    %p134 = por %p132, %p133
    %p135 = scmp.ne.s32.totalorder %s127, %s130
    %p136 = scmp.eq.s32.totalorder %s12, 0
    %p137 = por %p135, %p136
    %p138 = scmp.ne.s32.totalorder %s127, %s130
    %p139 = scmp.eq.s32.totalorder %s17, 1
    %p140 = por %p138, %p139
    %p141 = scmp.ne.s32.totalorder %s130, %s131
    %p142 = scmp.eq.s32.totalorder %s17, 0
    %p143 = por %p141, %p142
    %p144 = scmp.ne.s32.totalorder %s130, %s131
    %p145 = scmp.eq.s32.totalorder %s18, 1
    %p146 = por %p144, %p145
    %p148 = scmp.ne.s32.totalorder %s131, %s147
    %p149 = scmp.eq.s32.totalorder %s18, 0
    %p150 = por %p148, %p149
    %s151 = sadd.s32 %s19, %s20
    %s152 = sadd.s32 %s31, %s27
    %s153 = ssub.s32 %s151, %s152
    %p154 = scmp.eq.s32.totalorder %s153, 0
    %s156 = sadd.s32 %s155, 1
    %s157 = scalar_select %p154, %s155, %s156
    %p160 = pneg %p154
    %p161 = scmp.eq.s32.totalorder %s12, 1
    %p162 = por %p160, %p161
    %p163 = scmp.ne.s32.totalorder %s155, %s158
    %p164 = scmp.eq.s32.totalorder %s12, 0
    %p165 = por %p163, %p164
    %p166 = scmp.ne.s32.totalorder %s155, %s158
    %p167 = scmp.eq.s32.totalorder %s17, 1
    %p168 = por %p166, %p167
    %p169 = scmp.ne.s32.totalorder %s158, %s159
    %p170 = scmp.eq.s32.totalorder %s17, 0
    %p171 = por %p169, %p170
    %p172 = scmp.ne.s32.totalorder %s158, %s159
    %p173 = scmp.eq.s32.totalorder %s18, 1
    %p174 = por %p172, %p173
    %p176 = scmp.ne.s32.totalorder %s159, %s175
    %p177 = scmp.eq.s32.totalorder %s18, 0
    %p178 = por %p176, %p177
    %p179 = scmp.le.s32.totalorder 1, %s12
    %p180 = scmp.lt.s32.totalorder %s12, 3
    %p181 = pnand %p179, %p180
    %p182 = pneg %p181
    // Predicated region
    $region9: #{bottleneck_forward.6} parent=5 // pred_check
      _
    $region10: #{bottleneck_forward.6} parent=5 // pred_check_branch
      %184 = sbr.rel (%p181) target = $region12
    $region11: #{bottleneck_forward.6} parent=5 // pred_region
      %s185 = ssub.s32 %s12, 1
      // Predicated region
      $region13: #{bottleneck_forward.6} parent=11 // pred_check
        %p186 = pneg %p73
      $region14: #{bottleneck_forward.6} parent=11 // pred_check_branch
        %188 = sbr.rel (%p186) target = $region16
      $region15: #{bottleneck_forward.6} parent=11 // pred_region
        _
      $region16: #{bottleneck_forward.6} parent=11 // pred_fallthru
        _
      // Predicated region
      $region17: #{bottleneck_forward.6} parent=11 // pred_check
        %p189 = pneg %p94
      $region18: #{bottleneck_forward.6} parent=11 // pred_check_branch
        %191 = sbr.rel (%p189) target = $region20
      $region19: #{bottleneck_forward.6} parent=11 // pred_region
        _
      $region20: #{bottleneck_forward.6} parent=11 // pred_fallthru
        _
      // Predicated region
      $region21: #{bottleneck_forward.6} parent=11 // pred_check
        %p192 = pneg %p115
      $region22: #{bottleneck_forward.6} parent=11 // pred_check_branch
        %194 = sbr.rel (%p192) target = $region24
      $region23: #{bottleneck_forward.6} parent=11 // pred_region
        _
      $region24: #{bottleneck_forward.6} parent=11 // pred_fallthru
        _
    $region12: #{bottleneck_forward.6} parent=5 // pred_fallthru
      _
    %p195 = scmp.lt.s32.totalorder %s12, 2
    // Predicated region
    $region25: #{bottleneck_forward.6} parent=5 // pred_check
      %p196 = pneg %p195
    $region26: #{bottleneck_forward.6} parent=5 // pred_check_branch
      %198 = sbr.rel (%p196) target = $region28
    $region27: #{bottleneck_forward.6} parent=5 // pred_region
      // Predicated region
      $region29: #{bottleneck_forward.6} parent=27 // pred_check
        %p199 = pneg %p46
      $region30: #{bottleneck_forward.6} parent=27 // pred_check_branch
        %201 = sbr.rel (%p199) target = $region32
      $region31: #{bottleneck_forward.6} parent=27 // pred_region
        %s202 = smul.u32 2, %s19
        %s203 = smul.u32 2, %s20
        %p204 = scmp.lt.s32.totalorder %s202, 3
        %s205 = scalar_select %p204, %s202, 3
        %p206 = scmp.lt.s32.totalorder %s203, 1
        %s207 = scalar_select %p206, %s203, 1
        %s208 = smul.addr %s205, 2
        %s209 = sadd.s32 %s207, %s208
        %s210 = smul.addr %s209, 4
        %s211 = scalar_lea.vmem %s0, %s210
        %s212 = smul.u32 2, %s19
        %s213 = smul.u32 2, %s20
      $region32: #{bottleneck_forward.6} parent=27 // pred_fallthru
        _
    $region28: #{bottleneck_forward.6} parent=5 // pred_fallthru
      _
    %p214 = scmp.le.s32.totalorder 1, %s12
    %p215 = scmp.lt.s32.totalorder %s12, 3
    %p216 = pnand %p214, %p215
    %p217 = pneg %p216
    // Predicated region
    $region33: #{bottleneck_forward.6} parent=5 // pred_check
      _
    $region34: #{bottleneck_forward.6} parent=5 // pred_check_branch
      %219 = sbr.rel (%p216) target = $region36
    $region35: #{bottleneck_forward.6} parent=5 // pred_region
      %s220 = ssub.s32 %s12, 1
      %s221 = smul.u32 2, %s21
      %s222 = smul.u32 2, %s22
      %p223 = scmp.lt.s32.totalorder %s221, 3
      %s224 = scalar_select %p223, %s221, 3
      %p225 = scmp.lt.s32.totalorder %s222, 1
      %s226 = scalar_select %p225, %s222, 1
      %s227 = smul.addr %s224, 2
      %s228 = sadd.s32 %s226, %s227
      %s229 = smul.addr %s228, 4
      %s230 = scalar_lea.vmem %s0, %s229
      %p231 = pneg %p52
      %p232 = pneg %p49
      %p233 = pneg %p73
      %p234 = pneg %p70
      %p235 = pneg %p94
      %p236 = pneg %p91
      %p237 = pneg %p115
      %p238 = pneg %p112
      %p239 = pneg %p143
      %p240 = pneg %p140
      %s241 = smul.u32 8, %s21
      %s242 = smul.u32 2, %s22
      %p243 = scmp.lt.s32.totalorder %s241, 15
      %s244 = scalar_select %p243, %s241, 15
      %p245 = scmp.lt.s32.totalorder %s242, 1
      %s246 = scalar_select %p245, %s242, 1
      %s247 = smul.addr %s244, 2
      %s248 = sadd.s32 %s246, %s247
      %s249 = smul.addr %s248, 4
      %s250 = scalar_lea.vmem %s4, %s249
      %p251 = pneg %p171
      %p252 = pneg %p168
      %s253 = sadd.s32 %s21, %s22
      %s254 = smul.u32 8, %s253
      %p255 = scmp.lt.s32.totalorder %s254, 15
      %s256 = scalar_select %p255, %s254, 15
      %s257 = smul.addr %s256, 8
      %s258 = scalar_lea.vmem %s5, %s257
      %s259 = smul.u32 2, %s21
      %s260 = smul.u32 2, %s22
      %p261 = scmp.lt.s32.totalorder %s259, 3
      %s262 = scalar_select %p261, %s259, 3
      %p263 = scmp.lt.s32.totalorder %s260, 1
      %s264 = scalar_select %p263, %s260, 1
      %s265 = smul.addr %s262, 2
      %s266 = sadd.s32 %s264, %s265
      %s267 = smul.addr %s266, 4
      %s268 = scalar_lea.vmem %s0, %s267
      %s269 = smul.u32 2, %s21
      %s270 = smul.u32 2, %s22
      %s271 = smul.u32 8, %s21
      %s272 = smul.u32 2, %s22
      %p273 = scmp.lt.s32.totalorder %s271, 15
      %s274 = scalar_select %p273, %s271, 15
      %p275 = scmp.lt.s32.totalorder %s272, 1
      %s276 = scalar_select %p275, %s272, 1
      %s277 = smul.addr %s274, 2
      %s278 = sadd.s32 %s276, %s277
      %s279 = smul.addr %s278, 4
      %s280 = scalar_lea.vmem %s4, %s279
      %s281 = smul.u32 8, %s21
      %s282 = smul.u32 2, %s22
      %s283 = sadd.s32 %s21, %s22
      %s284 = smul.u32 8, %s283
      %p285 = scmp.lt.s32.totalorder %s284, 15
      %s286 = scalar_select %p285, %s284, 15
      %s287 = smul.addr %s286, 8
      %s288 = scalar_lea.vmem %s5, %s287
      %s289 = sadd.s32 %s21, %s22
      %s290 = smul.u32 8, %s289
      %v292 = vld [vmem:[%s268] sm:$0xff]
      %v293 = vld [vmem:[%s268 + $0x8] sm:$0xff]
      %v294 = vunpack.c.l.bf16 %v292
      %v295 = vunpack.c.h.bf16 %v292
      %v296 = vunpack.c.l.bf16 %v293
      %v297 = vunpack.c.h.bf16 %v293
      %v298 = vld [vmem:[%s1] sm:$0xff]
      %v299 = vld [vmem:[%s1 + $0x8] sm:$0xff]
      %301 = vset.pattern.permute.xlu0 0
      %302 = vperm.xlu0 %301, %v298
      %v303 = vpop.permute.xlu0 %302
      %306 = vset.pattern.permute.xlu0 0
      %307 = vperm.xlu0 %306, %v299
      %v308 = vpop.permute.xlu0 %307
      %v310 = vmul.f32 %v294, %v303
      %v311 = vmul.f32 %v295, %v303
      %v312 = vmul.f32 %v296, %v308
      %v313 = vmul.f32 %v297, %v308
      %v314 = vld [vmem:[%s2] sm:$0xff]
      %v315 = vld [vmem:[%s2 + $0x8] sm:$0xff]
      %317 = vset.pattern.permute.xlu0 0
      %318 = vperm.xlu0 %317, %v314
      %v319 = vpop.permute.xlu0 %318
      %322 = vset.pattern.permute.xlu0 0
      %323 = vperm.xlu0 %322, %v315
      %v324 = vpop.permute.xlu0 %323
      %v326 = vadd.f32 %v310, %v319
      %v327 = vadd.f32 %v311, %v319
      %v328 = vadd.f32 %v312, %v324
      %v329 = vadd.f32 %v313, %v324
      %v330 = vmax.f32 %v326, 0.0
      %v331 = vmax.f32 %v327, 0.0
      %v332 = vmax.f32 %v328, 0.0
      %v333 = vmax.f32 %v329, 0.0
      %v334 = vld [vmem:[%s3] sm:$0xf]
      %v335 = vld [vmem:[%s3 + $0x4] sm:$0xf]
      %v336 = vld [vmem:[%s3 + $0x8] sm:$0xf]
      %v337 = vld [vmem:[%s3 + $0xc] sm:$0xf]
      %v338 = vld [vmem:[%s3 + $0x10] sm:$0xf]
      %v339 = vld [vmem:[%s3 + $0x14] sm:$0xf]
      %v340 = vld [vmem:[%s3 + $0x18] sm:$0xf]
      %v341 = vld [vmem:[%s3 + $0x1c] sm:$0xf]
      %v342 = vpack.c.bf16 %v332, %v330
      %v343 = vpack.c.bf16 %v333, %v331
      %v352 = vunpack.c.l.b16 %v334
      %v353 = vunpack.c.l.b16 %v335
      %v354 = vunpack.c.l.b16 %v336
      %v355 = vunpack.c.l.b16 %v337
      %v356 = vunpack.c.l.b16 %v338
      %v357 = vunpack.c.l.b16 %v339
      %v358 = vunpack.c.l.b16 %v340
      %v359 = vunpack.c.l.b16 %v341
      %v360 = vpack.c.b16 %v353, %v352
      %v361 = vpack.c.b16 %v355, %v354
      %v362 = vpack.c.b16 %v357, %v356
      %v363 = vpack.c.b16 %v359, %v358
      %vm364 = vcmask 130048
      %v366 = vsel %vm364, %v360, 0
      %v369 = vsel %vm364, %v361, 0
      %v372 = vsel %vm364, %v362, 0
      %v375 = vsel %vm364, %v363, 0
      %377 = vmatprep.subr.bf16.mxu0 %v343
      %378 = vmatpush1.bf16.msra.mxu0 %v342
      %379 = vmatprep.subr.bf16.mxu0 0
      %380 = vmatpush1.bf16.msra.mxu0 0
      %381 = vmatprep.subr.bf16.mxu0 0
      %382 = vmatpush1.bf16.msra.mxu0 0
      %383 = vmatprep.subr.bf16.mxu0 0
      %384 = vmatpush1.bf16.msra.mxu0 0
      %385 = vmatprep.subr.bf16.mxu0 0
      %386 = vmatpush1.bf16.msra.mxu0 0
      %387 = vmatprep.subr.bf16.mxu0 0
      %388 = vmatpush1.bf16.msra.mxu0 0
      %389 = vmatprep.subr.bf16.mxu0 0
      %390 = vmatpush1.bf16.msra.mxu0 0
      %391 = vmatprep.subr.bf16.mxu0 0
      %392 = vmatpush1.bf16.msra.mxu0 0
      %393 = vmatprep.subr.bf16.mxu0 0
      %394 = vmatpush1.bf16.msra.mxu0 0
      %395 = vmatprep.subr.bf16.mxu0 0
      %396 = vmatpush1.bf16.msra.mxu0 0
      %397 = vmatprep.subr.bf16.mxu0 0
      %398 = vmatpush1.bf16.msra.mxu0 0
      %399 = vmatprep.subr.bf16.mxu0 0
      %400 = vmatpush1.bf16.msra.mxu0 0
      %401 = vmatprep.subr.bf16.mxu0 0
      %402 = vmatpush1.bf16.msra.mxu0 0
      %403 = vmatprep.subr.bf16.mxu0 0
      %404 = vmatpush1.bf16.msra.mxu0 0
      %405 = vmatprep.subr.bf16.mxu0 0
      %406 = vmatpush1.bf16.msra.mxu0 0
      %407 = vmatprep.subr.bf16.mxu0 0
      %408 = vmatpush1.bf16.msra.mxu0 0
      %409 = vmatprep.mubr.bf16.mxu0 0
      %410 = vmatmul.mubr.bf16.gmra.mrb[0].mxu0 %v366
      %v411 = vpop.f32.mrb[0].mxu0
      %v412 = vadd.f32 0.0, %v411
      %v413 = vpop.f32.mrb[0].mxu0
      %v414 = vadd.f32 0.0, %v413
      %v415 = vpop.f32.mrb[0].mxu0
      %v416 = vadd.f32 0.0, %v415
      %v417 = vpop.f32.mrb[0].mxu0
      %v418 = vadd.f32 0.0, %v417
      %419 = vmatprep.mubr.bf16.mxu0 0
      %420 = vmatmul.mubr.bf16.gmra.mrb[0].mxu0 %v369
      %v421 = vpop.f32.mrb[0].mxu0
      %v422 = vadd.f32 0.0, %v421
      %v423 = vpop.f32.mrb[0].mxu0
      %v424 = vadd.f32 0.0, %v423
      %v425 = vpop.f32.mrb[0].mxu0
      %v426 = vadd.f32 0.0, %v425
      %v427 = vpop.f32.mrb[0].mxu0
      %v428 = vadd.f32 0.0, %v427
      %429 = vmatprep.mubr.bf16.mxu0 0
      %430 = vmatmul.mubr.bf16.gmra.mrb[0].mxu0 %v372
      %v431 = vpop.f32.mrb[0].mxu0
      %v432 = vadd.f32 0.0, %v431
      %v433 = vpop.f32.mrb[0].mxu0
      %v434 = vadd.f32 0.0, %v433
      %v435 = vpop.f32.mrb[0].mxu0
      %v436 = vadd.f32 0.0, %v435
      %v437 = vpop.f32.mrb[0].mxu0
      %v438 = vadd.f32 0.0, %v437
      %439 = vmatprep.mubr.bf16.mxu0 0
      %440 = vmatmul.mubr.bf16.gmra.mrb[0].mxu0 %v375
      %v441 = vpop.f32.mrb[0].mxu0
      %v442 = vadd.f32 0.0, %v441
      %v443 = vpop.f32.mrb[0].mxu0
      %v444 = vadd.f32 0.0, %v443
      %v445 = vpop.f32.mrb[0].mxu0
      %v446 = vadd.f32 0.0, %v445
      %v447 = vpop.f32.mrb[0].mxu0
      %v448 = vadd.f32 0.0, %v447
      %449 = vdwg.mxu0
      %v450 = vpack.c.bf16 %v416, %v412
      %v451 = vpack.c.bf16 %v418, %v414
      %v452 = vpack.c.bf16 %v426, %v422
      %v453 = vpack.c.bf16 %v428, %v424
      %v454 = vpack.c.bf16 %v436, %v432
      %v455 = vpack.c.bf16 %v438, %v434
      %v456 = vpack.c.bf16 %v446, %v442
      %v457 = vpack.c.bf16 %v448, %v444
      %v466 = vunpack.c.l.b16 %v450
      %v467 = vunpack.c.l.b16 %v451
      %v468 = vunpack.c.h.b16 %v450
      %v469 = vunpack.c.h.b16 %v451
      %v470 = vunpack.c.l.b16 %v452
      %v471 = vunpack.c.l.b16 %v453
      %v472 = vunpack.c.h.b16 %v452
      %v473 = vunpack.c.h.b16 %v453
      %v474 = vunpack.c.l.b16 %v454
      %v475 = vunpack.c.l.b16 %v455
      %v476 = vunpack.c.h.b16 %v454
      %v477 = vunpack.c.h.b16 %v455
      %v478 = vunpack.c.l.b16 %v456
      %v479 = vunpack.c.l.b16 %v457
      %v480 = vunpack.c.h.b16 %v456
      %v481 = vunpack.c.h.b16 %v457
      %v482 = vpack.c.b16 %v467, %v466
      %v483 = vpack.c.b16 %v469, %v468
      %v484 = vpack.c.b16 %v471, %v470
      %v485 = vpack.c.b16 %v473, %v472
      %v486 = vpack.c.b16 %v475, %v474
      %v487 = vpack.c.b16 %v477, %v476
      %v488 = vpack.c.b16 %v479, %v478
      %v489 = vpack.c.b16 %v481, %v480
      %498 = vst [vmem:[%s280] sm:$0xff] %v482
      %499 = vst [vmem:[%s280 + $0x8] sm:$0xff] %v483
      %500 = vst [vmem:[%s280 + $0x10] sm:$0xff] %v484
      %501 = vst [vmem:[%s280 + $0x18] sm:$0xff] %v485
      %502 = vst [vmem:[%s280 + $0x20] sm:$0xff] %v486
      %503 = vst [vmem:[%s280 + $0x28] sm:$0xff] %v487
      %504 = vst [vmem:[%s280 + $0x30] sm:$0xff] %v488
      %505 = vst [vmem:[%s280 + $0x38] sm:$0xff] %v489
      %v506 = vunpack.c.l.bf16 %v450
      %v507 = vunpack.c.l.bf16 %v451
      %v508 = vunpack.c.h.bf16 %v450
      %v509 = vunpack.c.h.bf16 %v451
      %v510 = vunpack.c.l.bf16 %v452
      %v511 = vunpack.c.l.bf16 %v453
      %v512 = vunpack.c.h.bf16 %v452
      %v513 = vunpack.c.h.bf16 %v453
      %v514 = vunpack.c.l.bf16 %v454
      %v515 = vunpack.c.l.bf16 %v455
      %v516 = vunpack.c.h.bf16 %v454
      %v517 = vunpack.c.h.bf16 %v455
      %v518 = vunpack.c.l.bf16 %v456
      %v519 = vunpack.c.l.bf16 %v457
      %v520 = vunpack.c.h.bf16 %v456
      %v521 = vunpack.c.h.bf16 %v457
      %v522 = vadd.f32 %v506, %v507
      %523 = vadd.xlane.f32.xlu0 %v522
      %v524 = vpop.xlane.xlu0 %523
      %v525 = vadd.f32 %v508, %v509
      %526 = vadd.xlane.f32.xlu0 %v525
      %v527 = vpop.xlane.xlu0 %526
      %v528 = vadd.f32 %v510, %v511
      %529 = vadd.xlane.f32.xlu0 %v528
      %v530 = vpop.xlane.xlu0 %529
      %v531 = vadd.f32 %v512, %v513
      %532 = vadd.xlane.f32.xlu0 %v531
      %v533 = vpop.xlane.xlu0 %532
      %v534 = vadd.f32 %v514, %v515
      %535 = vadd.xlane.f32.xlu0 %v534
      %v536 = vpop.xlane.xlu0 %535
      %v537 = vadd.f32 %v516, %v517
      %538 = vadd.xlane.f32.xlu0 %v537
      %v539 = vpop.xlane.xlu0 %538
      %v540 = vadd.f32 %v518, %v519
      %541 = vadd.xlane.f32.xlu0 %v540
      %v542 = vpop.xlane.xlu0 %541
      %v543 = vadd.f32 %v520, %v521
      %544 = vadd.xlane.f32.xlu0 %v543
      %v545 = vpop.xlane.xlu0 %544
      %v546 = vmul.f32 %v506, %v506
      %v547 = vmul.f32 %v507, %v507
      %v548 = vmul.f32 %v508, %v508
      %v549 = vmul.f32 %v509, %v509
      %v550 = vmul.f32 %v510, %v510
      %v551 = vmul.f32 %v511, %v511
      %v552 = vmul.f32 %v512, %v512
      %v553 = vmul.f32 %v513, %v513
      %v554 = vmul.f32 %v514, %v514
      %v555 = vmul.f32 %v515, %v515
      %v556 = vmul.f32 %v516, %v516
      %v557 = vmul.f32 %v517, %v517
      %v558 = vmul.f32 %v518, %v518
      %v559 = vmul.f32 %v519, %v519
      %v560 = vmul.f32 %v520, %v520
      %v561 = vmul.f32 %v521, %v521
      %v562 = vadd.f32 %v546, %v547
      %563 = vadd.xlane.f32.xlu0 %v562
      %v564 = vpop.xlane.xlu0 %563
      %v565 = vadd.f32 %v548, %v549
      %566 = vadd.xlane.f32.xlu0 %v565
      %v567 = vpop.xlane.xlu0 %566
      %v568 = vadd.f32 %v550, %v551
      %569 = vadd.xlane.f32.xlu0 %v568
      %v570 = vpop.xlane.xlu0 %569
      %v571 = vadd.f32 %v552, %v553
      %572 = vadd.xlane.f32.xlu0 %v571
      %v573 = vpop.xlane.xlu0 %572
      %v574 = vadd.f32 %v554, %v555
      %575 = vadd.xlane.f32.xlu0 %v574
      %v576 = vpop.xlane.xlu0 %575
      %v577 = vadd.f32 %v556, %v557
      %578 = vadd.xlane.f32.xlu0 %v577
      %v579 = vpop.xlane.xlu0 %578
      %v580 = vadd.f32 %v558, %v559
      %581 = vadd.xlane.f32.xlu0 %v580
      %v582 = vpop.xlane.xlu0 %581
      %v583 = vadd.f32 %v560, %v561
      %584 = vadd.xlane.f32.xlu0 %v583
      %v585 = vpop.xlane.xlu0 %584
      %vm586 = vcmask 7168
      %v587 = vsel %vm586, %v524, %v564
      %v588 = vsel %vm586, %v527, %v567
      %v589 = vsel %vm586, %v530, %v570
      %v590 = vsel %vm586, %v533, %v573
      %v591 = vsel %vm586, %v536, %v576
      %v592 = vsel %vm586, %v539, %v579
      %v593 = vsel %vm586, %v542, %v582
      %v594 = vsel %vm586, %v545, %v585
      %vm595 = vcmask 15360
      %596 = vst.msk [vmem:[%s288] sm:$0xff] %vm595, %v587
      %597 = vst.msk [vmem:[%s288 + $0x8] sm:$0xff] %vm595, %v588
      %598 = vst.msk [vmem:[%s288 + $0x10] sm:$0xff] %vm595, %v589
      %599 = vst.msk [vmem:[%s288 + $0x18] sm:$0xff] %vm595, %v590
      %600 = vst.msk [vmem:[%s288 + $0x20] sm:$0xff] %vm595, %v591
      %601 = vst.msk [vmem:[%s288 + $0x28] sm:$0xff] %vm595, %v592
      %602 = vst.msk [vmem:[%s288 + $0x30] sm:$0xff] %vm595, %v593
      %603 = vst.msk [vmem:[%s288 + $0x38] sm:$0xff] %vm595, %v594
      %s604 = smul.u32 8, %s21
      %s605 = smul.u32 2, %s22
      %p606 = scmp.lt.s32.totalorder %s604, 15
      %s607 = scalar_select %p606, %s604, 15
      %p608 = scmp.lt.s32.totalorder %s605, 1
      %s609 = scalar_select %p608, %s605, 1
      %s610 = smul.addr %s607, 2
      %s611 = sadd.s32 %s609, %s610
      %s612 = smul.addr %s611, 4
      %s613 = scalar_lea.vmem %s4, %s612
      %s614 = sadd.s32 %s21, %s22
      %s615 = smul.u32 8, %s614
      %p616 = scmp.lt.s32.totalorder %s615, 15
      %s617 = scalar_select %p616, %s615, 15
      %s618 = smul.addr %s617, 8
      %s619 = scalar_lea.vmem %s5, %s618
      // Predicated region
      $region37: #{bottleneck_forward.6} parent=35 // pred_check
        %p620 = pneg %p140
      $region38: #{bottleneck_forward.6} parent=35 // pred_check_branch
        %622 = sbr.rel (%p620) target = $region40
      $region39: #{bottleneck_forward.6} parent=35 // pred_region
        %s623 = smul.u32 8, %s21
        %s624 = smul.u32 2, %s22
      $region40: #{bottleneck_forward.6} parent=35 // pred_fallthru
        _
      // Predicated region
      $region41: #{bottleneck_forward.6} parent=35 // pred_check
        %p625 = pneg %p168
      $region42: #{bottleneck_forward.6} parent=35 // pred_check_branch
        %627 = sbr.rel (%p625) target = $region44
      $region43: #{bottleneck_forward.6} parent=35 // pred_region
        %s628 = sadd.s32 %s21, %s22
        %s629 = smul.u32 8, %s628
      $region44: #{bottleneck_forward.6} parent=35 // pred_fallthru
        _
    $region36: #{bottleneck_forward.6} parent=5 // pred_fallthru
      _
    %p630 = scmp.le.s32.totalorder 2, %s12
    // Predicated region
    $region45: #{bottleneck_forward.6} parent=5 // pred_check
      %p631 = pneg %p630
    $region46: #{bottleneck_forward.6} parent=5 // pred_check_branch
      %633 = sbr.rel (%p631) target = $region48
    $region47: #{bottleneck_forward.6} parent=5 // pred_region
      %s634 = ssub.s32 %s12, 2
      // Predicated region
      $region49: #{bottleneck_forward.6} parent=47 // pred_check
        %p635 = pneg %p146
      $region50: #{bottleneck_forward.6} parent=47 // pred_check_branch
        %637 = sbr.rel (%p635) target = $region52
      $region51: #{bottleneck_forward.6} parent=47 // pred_region
        %s638 = smul.u32 8, %s23
        %s639 = smul.u32 2, %s24
        %p640 = scmp.lt.s32.totalorder %s638, 15
        %s641 = scalar_select %p640, %s638, 15
        %p642 = scmp.lt.s32.totalorder %s639, 1
        %s643 = scalar_select %p642, %s639, 1
        %s644 = smul.addr %s641, 2
        %s645 = sadd.s32 %s643, %s644
        %s646 = smul.addr %s645, 4
        %s647 = scalar_lea.vmem %s4, %s646
      $region52: #{bottleneck_forward.6} parent=47 // pred_fallthru
        _
      // Predicated region
      $region53: #{bottleneck_forward.6} parent=47 // pred_check
        %p648 = pneg %p174
      $region54: #{bottleneck_forward.6} parent=47 // pred_check_branch
        %650 = sbr.rel (%p648) target = $region56
      $region55: #{bottleneck_forward.6} parent=47 // pred_region
        %s651 = sadd.s32 %s23, %s24
        %s652 = smul.u32 8, %s651
        %p653 = scmp.lt.s32.totalorder %s652, 15
        %s654 = scalar_select %p653, %s652, 15
        %s655 = smul.addr %s654, 8
        %s656 = scalar_lea.vmem %s5, %s655
      $region56: #{bottleneck_forward.6} parent=47 // pred_fallthru
        _
    $region48: #{bottleneck_forward.6} parent=5 // pred_fallthru
      _
  $region6: #{bottleneck_forward.6} parent=0 // loop_footer
    %s16 = sadd.s32 1, %s12
  $region7: #{bottleneck_forward.6} parent=0 // loop_footer_branch
    %11 = sbr.rel target = $region3
  $region8: #{bottleneck_forward.6} parent=0 // loop_exit
    _

// kernel: bottleneck_forward.7
$region0: #{bottleneck_forward.7}
  #allocation0 [shape = 'u32[]', space=smem, size = 0x4, offset = 0x4, fixed_abs, tag = 'smem constant byte address 0x4 - core index']
  #allocation1 [shape = 'u32[144,128]{1,0:T(1,128)}', space=vmem, size = 0x12000, scoped, tag = 'internal scratch']
  %s0 = inlined_call_operand.vmem [shape: bf16[128,256], index: 0, kind: input, shape index: {}]
  %s1 = inlined_call_operand.vmem [shape: f32[128,256], index: 1, kind: input, shape index: {}]
  %s2 = inlined_call_operand.vmem [shape: f32[64,1], index: 2, kind: input, shape index: {}]
  %s3 = inlined_call_operand.vmem [shape: f32[64,1], index: 3, kind: input, shape index: {}]
  %s4 = inlined_call_operand.vmem [shape: f32[128,256], index: 4, kind: output, shape index: {}]
  %s5 = sld [smem:[#allocation0]]
  $region49: #{bottleneck_forward.7} parent=0
    _
  %s7 = ssub.s32 1, %s5
  %s8 = scalar_select 0, %s7, %s5
  loop: start=0, step=1, limit=4
  $region2: #{bottleneck_forward.7} parent=0 // loop_pre_header
    _
  $region3: #{bottleneck_forward.7} parent=0 // loop_header
    %s10 = sphi 0, %s14
    %p11 = scmp.ge.s32.totalorder %s10, 4
    %s17 = sphi 0, %s29
    %s18 = sphi 0, %s25
    %s19 = sphi 0, %s17
    %s20 = sphi 0, %s18
    %s21 = sphi 0, %s19
    %s22 = sphi 0, %s20
    %s34 = sphi 0, %s36
    %s37 = sphi 0, %s34
    %s38 = sphi 0, %s37
    %s54 = sphi 0, %s38
    %s62 = sphi 0, %s64
    %s65 = sphi 0, %s62
    %s66 = sphi 0, %s65
    %s82 = sphi 0, %s66
    %s86 = sphi 0, %s86
    %s88 = sphi 0, %s86
    %s89 = sphi 0, %s88
    %s103 = sphi 0, %s89
    %s107 = sphi 0, %s107
    %s109 = sphi 0, %s107
    %s110 = sphi 0, %s109
    %s124 = sphi 0, %s110
    %s132 = sphi 0, %s134
    %s135 = sphi 0, %s132
    %s136 = sphi 0, %s135
    %s152 = sphi 0, %s136
  $region4: #{bottleneck_forward.7} parent=0 // loop_header_branch
    %13 = sbr.rel (%p11) target = $region8
  $region5: #{bottleneck_forward.7} parent=0 // loop_body
    %s15 = ssub.s32 %s10, 1
    %s16 = ssub.s32 %s10, 2
    %s23 = sadd.s32 1, %s18
    %p24 = scmp.ge.s32.totalorder %s23, 1
    %s25 = scalar_select %p24, 0, %s23
    %s26 = sadd.s32 1, %s17
    %s27 = scalar_select %p24, %s26, %s17
    %p28 = scmp.ge.s32.totalorder %s27, 2
    %s29 = scalar_select %p28, 0, %s27
    %s30 = ssub.s32 %s17, %s29
    %s31 = ssub.s32 %s18, %s25
    %s32 = sor.u32 %s30, %s31
    %p33 = scmp.eq.s32.totalorder %s32, 0
    %s35 = sadd.s32 %s34, 1
    %s36 = scalar_select %p33, %s34, %s35
    %p39 = pneg %p33
    %p40 = scmp.eq.s32.totalorder %s10, 1
    %p41 = por %p39, %p40
    %p42 = scmp.ne.s32.totalorder %s34, %s37
    %p43 = scmp.eq.s32.totalorder %s10, 0
    %p44 = por %p42, %p43
    %p45 = scmp.ne.s32.totalorder %s34, %s37
    %p46 = scmp.eq.s32.totalorder %s15, 1
    %p47 = por %p45, %p46
    %p48 = scmp.ne.s32.totalorder %s37, %s38
    %p49 = scmp.eq.s32.totalorder %s15, 0
    %p50 = por %p48, %p49
    %p51 = scmp.ne.s32.totalorder %s37, %s38
    %p52 = scmp.eq.s32.totalorder %s16, 1
    %p53 = por %p51, %p52
    %p55 = scmp.ne.s32.totalorder %s38, %s54
    %p56 = scmp.eq.s32.totalorder %s16, 0
    %p57 = por %p55, %p56
    %s58 = ssub.s32 %s17, %s29
    %s59 = ssub.s32 %s18, %s25
    %s60 = sor.u32 %s58, %s59
    %p61 = scmp.eq.s32.totalorder %s60, 0
    %s63 = sadd.s32 %s62, 1
    %s64 = scalar_select %p61, %s62, %s63
    %p67 = pneg %p61
    %p68 = scmp.eq.s32.totalorder %s10, 1
    %p69 = por %p67, %p68
    %p70 = scmp.ne.s32.totalorder %s62, %s65
    %p71 = scmp.eq.s32.totalorder %s10, 0
    %p72 = por %p70, %p71
    %p73 = scmp.ne.s32.totalorder %s62, %s65
    %p74 = scmp.eq.s32.totalorder %s15, 1
    %p75 = por %p73, %p74
    %p76 = scmp.ne.s32.totalorder %s65, %s66
    %p77 = scmp.eq.s32.totalorder %s15, 0
    %p78 = por %p76, %p77
    %p79 = scmp.ne.s32.totalorder %s65, %s66
    %p80 = scmp.eq.s32.totalorder %s16, 1
    %p81 = por %p79, %p80
    %p83 = scmp.ne.s32.totalorder %s66, %s82
    %p84 = scmp.eq.s32.totalorder %s16, 0
    %p85 = por %p83, %p84
    %s87 = sadd.s32 %s86, 1
    %p90 = scmp.eq.s32.totalorder %s10, 1
    %p91 = scmp.ne.s32.totalorder %s86, %s88
    %p92 = scmp.eq.s32.totalorder %s10, 0
    %p93 = por %p91, %p92
    %p94 = scmp.ne.s32.totalorder %s86, %s88
    %p95 = scmp.eq.s32.totalorder %s15, 1
    %p96 = por %p94, %p95
    %p97 = scmp.ne.s32.totalorder %s88, %s89
    %p98 = scmp.eq.s32.totalorder %s15, 0
    %p99 = por %p97, %p98
    %p100 = scmp.ne.s32.totalorder %s88, %s89
    %p101 = scmp.eq.s32.totalorder %s16, 1
    %p102 = por %p100, %p101
    %p104 = scmp.ne.s32.totalorder %s89, %s103
    %p105 = scmp.eq.s32.totalorder %s16, 0
    %p106 = por %p104, %p105
    %s108 = sadd.s32 %s107, 1
    %p111 = scmp.eq.s32.totalorder %s10, 1
    %p112 = scmp.ne.s32.totalorder %s107, %s109
    %p113 = scmp.eq.s32.totalorder %s10, 0
    %p114 = por %p112, %p113
    %p115 = scmp.ne.s32.totalorder %s107, %s109
    %p116 = scmp.eq.s32.totalorder %s15, 1
    %p117 = por %p115, %p116
    %p118 = scmp.ne.s32.totalorder %s109, %s110
    %p119 = scmp.eq.s32.totalorder %s15, 0
    %p120 = por %p118, %p119
    %p121 = scmp.ne.s32.totalorder %s109, %s110
    %p122 = scmp.eq.s32.totalorder %s16, 1
    %p123 = por %p121, %p122
    %p125 = scmp.ne.s32.totalorder %s110, %s124
    %p126 = scmp.eq.s32.totalorder %s16, 0
    %p127 = por %p125, %p126
    %s128 = ssub.s32 %s17, %s29
    %s129 = ssub.s32 %s18, %s25
    %s130 = sor.u32 %s128, %s129
    %p131 = scmp.eq.s32.totalorder %s130, 0
    %s133 = sadd.s32 %s132, 1
    %s134 = scalar_select %p131, %s132, %s133
    %p137 = pneg %p131
    %p138 = scmp.eq.s32.totalorder %s10, 1
    %p139 = por %p137, %p138
    %p140 = scmp.ne.s32.totalorder %s132, %s135
    %p141 = scmp.eq.s32.totalorder %s10, 0
    %p142 = por %p140, %p141
    %p143 = scmp.ne.s32.totalorder %s132, %s135
    %p144 = scmp.eq.s32.totalorder %s15, 1
    %p145 = por %p143, %p144
    %p146 = scmp.ne.s32.totalorder %s135, %s136
    %p147 = scmp.eq.s32.totalorder %s15, 0
    %p148 = por %p146, %p147
    %p149 = scmp.ne.s32.totalorder %s135, %s136
    %p150 = scmp.eq.s32.totalorder %s16, 1
    %p151 = por %p149, %p150
    %p153 = scmp.ne.s32.totalorder %s136, %s152
    %p154 = scmp.eq.s32.totalorder %s16, 0
    %p155 = por %p153, %p154
    %p156 = scmp.le.s32.totalorder 1, %s10
    %p157 = scmp.lt.s32.totalorder %s10, 3
    %p158 = pnand %p156, %p157
    %p159 = pneg %p158
    // Predicated region
    $region9: #{bottleneck_forward.7} parent=5 // pred_check
      _
    $region10: #{bottleneck_forward.7} parent=5 // pred_check_branch
      %161 = sbr.rel (%p158) target = $region12
    $region11: #{bottleneck_forward.7} parent=5 // pred_region
      %s162 = ssub.s32 %s10, 1
      // Predicated region
      $region13: #{bottleneck_forward.7} parent=11 // pred_check
        %p163 = pneg %p99
      $region14: #{bottleneck_forward.7} parent=11 // pred_check_branch
        %165 = sbr.rel (%p163) target = $region16
      $region15: #{bottleneck_forward.7} parent=11 // pred_region
        _
      $region16: #{bottleneck_forward.7} parent=11 // pred_fallthru
        _
      // Predicated region
      $region17: #{bottleneck_forward.7} parent=11 // pred_check
        %p166 = pneg %p120
      $region18: #{bottleneck_forward.7} parent=11 // pred_check_branch
        %168 = sbr.rel (%p166) target = $region20
      $region19: #{bottleneck_forward.7} parent=11 // pred_region
        _
      $region20: #{bottleneck_forward.7} parent=11 // pred_fallthru
        _
    $region12: #{bottleneck_forward.7} parent=5 // pred_fallthru
      _
    %p169 = scmp.lt.s32.totalorder %s10, 2
    // Predicated region
    $region21: #{bottleneck_forward.7} parent=5 // pred_check
      %p170 = pneg %p169
    $region22: #{bottleneck_forward.7} parent=5 // pred_check_branch
      %172 = sbr.rel (%p170) target = $region24
    $region23: #{bottleneck_forward.7} parent=5 // pred_region
      // Predicated region
      $region25: #{bottleneck_forward.7} parent=23 // pred_check
        %p173 = pneg %p44
      $region26: #{bottleneck_forward.7} parent=23 // pred_check_branch
        %175 = sbr.rel (%p173) target = $region28
      $region27: #{bottleneck_forward.7} parent=23 // pred_region
        %s176 = smul.u32 8, %s17
        %s177 = smul.u32 2, %s18
        %p178 = scmp.lt.s32.totalorder %s176, 15
        %s179 = scalar_select %p178, %s176, 15
        %p180 = scmp.lt.s32.totalorder %s177, 1
        %s181 = scalar_select %p180, %s177, 1
        %s182 = smul.addr %s179, 2
        %s183 = sadd.s32 %s181, %s182
        %s184 = smul.addr %s183, 4
        %s185 = scalar_lea.vmem %s0, %s184
        %s186 = smul.u32 8, %s17
        %s187 = smul.u32 2, %s18
      $region28: #{bottleneck_forward.7} parent=23 // pred_fallthru
        _
      // Predicated region
      $region29: #{bottleneck_forward.7} parent=23 // pred_check
        %p188 = pneg %p72
      $region30: #{bottleneck_forward.7} parent=23 // pred_check_branch
        %190 = sbr.rel (%p188) target = $region32
      $region31: #{bottleneck_forward.7} parent=23 // pred_region
        %s191 = smul.u32 8, %s17
        %s192 = smul.u32 2, %s18
        %p193 = scmp.lt.s32.totalorder %s191, 15
        %s194 = scalar_select %p193, %s191, 15
        %p195 = scmp.lt.s32.totalorder %s192, 1
        %s196 = scalar_select %p195, %s192, 1
        %s197 = smul.addr %s194, 2
        %s198 = sadd.s32 %s196, %s197
        %s199 = smul.addr %s198, 8
        %s200 = scalar_lea.vmem %s1, %s199
        %s201 = smul.u32 8, %s17
        %s202 = smul.u32 2, %s18
      $region32: #{bottleneck_forward.7} parent=23 // pred_fallthru
        _
    $region24: #{bottleneck_forward.7} parent=5 // pred_fallthru
      _
    %p203 = scmp.le.s32.totalorder 1, %s10
    %p204 = scmp.lt.s32.totalorder %s10, 3
    %p205 = pnand %p203, %p204
    %p206 = pneg %p205
    // Predicated region
    $region33: #{bottleneck_forward.7} parent=5 // pred_check
      _
    $region34: #{bottleneck_forward.7} parent=5 // pred_check_branch
      %208 = sbr.rel (%p205) target = $region36
    $region35: #{bottleneck_forward.7} parent=5 // pred_region
      %s209 = ssub.s32 %s10, 1
      %s210 = smul.u32 8, %s19
      %s211 = smul.u32 2, %s20
      %p212 = scmp.lt.s32.totalorder %s210, 15
      %s213 = scalar_select %p212, %s210, 15
      %p214 = scmp.lt.s32.totalorder %s211, 1
      %s215 = scalar_select %p214, %s211, 1
      %s216 = smul.addr %s213, 2
      %s217 = sadd.s32 %s215, %s216
      %s218 = smul.addr %s217, 4
      %s219 = scalar_lea.vmem %s0, %s218
      %p220 = pneg %p50
      %p221 = pneg %p47
      %s222 = smul.u32 8, %s19
      %s223 = smul.u32 2, %s20
      %p224 = scmp.lt.s32.totalorder %s222, 15
      %s225 = scalar_select %p224, %s222, 15
      %p226 = scmp.lt.s32.totalorder %s223, 1
      %s227 = scalar_select %p226, %s223, 1
      %s228 = smul.addr %s225, 2
      %s229 = sadd.s32 %s227, %s228
      %s230 = smul.addr %s229, 8
      %s231 = scalar_lea.vmem %s1, %s230
      %p232 = pneg %p78
      %p233 = pneg %p75
      %p234 = pneg %p99
      %p235 = pneg %p96
      %p236 = pneg %p120
      %p237 = pneg %p117
      %p238 = pneg %p148
      %p239 = pneg %p145
      %s240 = smul.u32 8, %s19
      %s241 = smul.u32 2, %s20
      %p242 = scmp.lt.s32.totalorder %s240, 15
      %s243 = scalar_select %p242, %s240, 15
      %p244 = scmp.lt.s32.totalorder %s241, 1
      %s245 = scalar_select %p244, %s241, 1
      %s246 = smul.addr %s243, 2
      %s247 = sadd.s32 %s245, %s246
      %s248 = smul.addr %s247, 8
      %s249 = scalar_lea.vmem %s4, %s248
      %s250 = smul.u32 8, %s19
      %s251 = smul.u32 2, %s20
      %p252 = scmp.lt.s32.totalorder %s250, 15
      %s253 = scalar_select %p252, %s250, 15
      %p254 = scmp.lt.s32.totalorder %s251, 1
      %s255 = scalar_select %p254, %s251, 1
      %s256 = smul.addr %s253, 2
      %s257 = sadd.s32 %s255, %s256
      %s258 = smul.addr %s257, 4
      %s259 = scalar_lea.vmem %s0, %s258
      %s260 = smul.u32 8, %s19
      %s261 = smul.u32 2, %s20
      %s262 = smul.u32 8, %s19
      %s263 = smul.u32 2, %s20
      %p264 = scmp.lt.s32.totalorder %s262, 15
      %s265 = scalar_select %p264, %s262, 15
      %p266 = scmp.lt.s32.totalorder %s263, 1
      %s267 = scalar_select %p266, %s263, 1
      %s268 = smul.addr %s265, 2
      %s269 = sadd.s32 %s267, %s268
      %s270 = smul.addr %s269, 8
      %s271 = scalar_lea.vmem %s1, %s270
      %s272 = smul.u32 8, %s19
      %s273 = smul.u32 2, %s20
      %s274 = smul.u32 8, %s19
      %s275 = smul.u32 2, %s20
      %p276 = scmp.lt.s32.totalorder %s274, 15
      %s277 = scalar_select %p276, %s274, 15
      %p278 = scmp.lt.s32.totalorder %s275, 1
      %s279 = scalar_select %p278, %s275, 1
      %s280 = smul.addr %s277, 2
      %s281 = sadd.s32 %s279, %s280
      %s282 = smul.addr %s281, 8
      %s283 = scalar_lea.vmem %s4, %s282
      %s284 = smul.u32 8, %s19
      %s285 = smul.u32 2, %s20
      %v286 = vld [vmem:[%s259] sm:$0xff]
      %v287 = vld [vmem:[%s259 + $0x8] sm:$0xff]
      %v288 = vld [vmem:[%s259 + $0x10] sm:$0xff]
      %v289 = vld [vmem:[%s259 + $0x18] sm:$0xff]
      %v290 = vld [vmem:[%s259 + $0x20] sm:$0xff]
      %v291 = vld [vmem:[%s259 + $0x28] sm:$0xff]
      %v292 = vld [vmem:[%s259 + $0x30] sm:$0xff]
      %v293 = vld [vmem:[%s259 + $0x38] sm:$0xff]
      %v294 = vunpack.c.l.bf16 %v286
      %v295 = vunpack.c.h.bf16 %v286
      %v296 = vunpack.c.l.bf16 %v287
      %v297 = vunpack.c.h.bf16 %v287
      %v298 = vunpack.c.l.bf16 %v288
      %v299 = vunpack.c.h.bf16 %v288
      %v300 = vunpack.c.l.bf16 %v289
      %v301 = vunpack.c.h.bf16 %v289
      %v302 = vunpack.c.l.bf16 %v290
      %v303 = vunpack.c.h.bf16 %v290
      %v304 = vunpack.c.l.bf16 %v291
      %v305 = vunpack.c.h.bf16 %v291
      %v306 = vunpack.c.l.bf16 %v292
      %v307 = vunpack.c.h.bf16 %v292
      %v308 = vunpack.c.l.bf16 %v293
      %v309 = vunpack.c.h.bf16 %v293
      %v310 = vld [vmem:[%s2] sm:$0xff]
      %v311 = vld [vmem:[%s2 + $0x8] sm:$0xff]
      %v312 = vld [vmem:[%s2 + $0x10] sm:$0xff]
      %v313 = vld [vmem:[%s2 + $0x18] sm:$0xff]
      %v314 = vld [vmem:[%s2 + $0x20] sm:$0xff]
      %v315 = vld [vmem:[%s2 + $0x28] sm:$0xff]
      %v316 = vld [vmem:[%s2 + $0x30] sm:$0xff]
      %v317 = vld [vmem:[%s2 + $0x38] sm:$0xff]
      %319 = vset.pattern.permute.xlu0 0
      %320 = vperm.xlu0 %319, %v310
      %v321 = vpop.permute.xlu0 %320
      %324 = vset.pattern.permute.xlu0 0
      %325 = vperm.xlu0 %324, %v311
      %v326 = vpop.permute.xlu0 %325
      %329 = vset.pattern.permute.xlu0 0
      %330 = vperm.xlu0 %329, %v312
      %v331 = vpop.permute.xlu0 %330
      %334 = vset.pattern.permute.xlu0 0
      %335 = vperm.xlu0 %334, %v313
      %v336 = vpop.permute.xlu0 %335
      %339 = vset.pattern.permute.xlu0 0
      %340 = vperm.xlu0 %339, %v314
      %v341 = vpop.permute.xlu0 %340
      %344 = vset.pattern.permute.xlu0 0
      %345 = vperm.xlu0 %344, %v315
      %v346 = vpop.permute.xlu0 %345
      %349 = vset.pattern.permute.xlu0 0
      %350 = vperm.xlu0 %349, %v316
      %v351 = vpop.permute.xlu0 %350
      %354 = vset.pattern.permute.xlu0 0
      %355 = vperm.xlu0 %354, %v317
      %v356 = vpop.permute.xlu0 %355
      %v358 = vmul.f32 %v294, %v321
      %v359 = vmul.f32 %v295, %v321
      %v360 = vmul.f32 %v296, %v326
      %v361 = vmul.f32 %v297, %v326
      %v362 = vmul.f32 %v298, %v331
      %v363 = vmul.f32 %v299, %v331
      %v364 = vmul.f32 %v300, %v336
      %v365 = vmul.f32 %v301, %v336
      %v366 = vmul.f32 %v302, %v341
      %v367 = vmul.f32 %v303, %v341
      %v368 = vmul.f32 %v304, %v346
      %v369 = vmul.f32 %v305, %v346
      %v370 = vmul.f32 %v306, %v351
      %v371 = vmul.f32 %v307, %v351
      %v372 = vmul.f32 %v308, %v356
      %v373 = vmul.f32 %v309, %v356
      %v374 = vld [vmem:[%s3] sm:$0xff]
      %v375 = vld [vmem:[%s3 + $0x8] sm:$0xff]
      %v376 = vld [vmem:[%s3 + $0x10] sm:$0xff]
      %v377 = vld [vmem:[%s3 + $0x18] sm:$0xff]
      %v378 = vld [vmem:[%s3 + $0x20] sm:$0xff]
      %v379 = vld [vmem:[%s3 + $0x28] sm:$0xff]
      %v380 = vld [vmem:[%s3 + $0x30] sm:$0xff]
      %v381 = vld [vmem:[%s3 + $0x38] sm:$0xff]
      %383 = vset.pattern.permute.xlu0 0
      %384 = vperm.xlu0 %383, %v374
      %v385 = vpop.permute.xlu0 %384
      %388 = vset.pattern.permute.xlu0 0
      %389 = vperm.xlu0 %388, %v375
      %v390 = vpop.permute.xlu0 %389
      %393 = vset.pattern.permute.xlu0 0
      %394 = vperm.xlu0 %393, %v376
      %v395 = vpop.permute.xlu0 %394
      %398 = vset.pattern.permute.xlu0 0
      %399 = vperm.xlu0 %398, %v377
      %v400 = vpop.permute.xlu0 %399
      %403 = vset.pattern.permute.xlu0 0
      %404 = vperm.xlu0 %403, %v378
      %v405 = vpop.permute.xlu0 %404
      %408 = vset.pattern.permute.xlu0 0
      %409 = vperm.xlu0 %408, %v379
      %v410 = vpop.permute.xlu0 %409
      %413 = vset.pattern.permute.xlu0 0
      %414 = vperm.xlu0 %413, %v380
      %v415 = vpop.permute.xlu0 %414
      %418 = vset.pattern.permute.xlu0 0
      %419 = vperm.xlu0 %418, %v381
      %v420 = vpop.permute.xlu0 %419
      %v422 = vadd.f32 %v358, %v385
      %v423 = vadd.f32 %v359, %v385
      %v424 = vadd.f32 %v360, %v390
      %v425 = vadd.f32 %v361, %v390
      %v426 = vadd.f32 %v362, %v395
      %v427 = vadd.f32 %v363, %v395
      %v428 = vadd.f32 %v364, %v400
      %v429 = vadd.f32 %v365, %v400
      %v430 = vadd.f32 %v366, %v405
      %v431 = vadd.f32 %v367, %v405
      %v432 = vadd.f32 %v368, %v410
      %v433 = vadd.f32 %v369, %v410
      %v434 = vadd.f32 %v370, %v415
      %v435 = vadd.f32 %v371, %v415
      %v436 = vadd.f32 %v372, %v420
      %v437 = vadd.f32 %v373, %v420
      %v438 = vld [vmem:[%s271] sm:$0xff]
      %v439 = vld [vmem:[%s271 + $0x8] sm:$0xff]
      %v440 = vld [vmem:[%s271 + $0x10] sm:$0xff]
      %v441 = vld [vmem:[%s271 + $0x18] sm:$0xff]
      %v442 = vld [vmem:[%s271 + $0x20] sm:$0xff]
      %v443 = vld [vmem:[%s271 + $0x28] sm:$0xff]
      %v444 = vld [vmem:[%s271 + $0x30] sm:$0xff]
      %v445 = vld [vmem:[%s271 + $0x38] sm:$0xff]
      %v446 = vld [vmem:[%s271 + $0x40] sm:$0xff]
      %v447 = vld [vmem:[%s271 + $0x48] sm:$0xff]
      %v448 = vld [vmem:[%s271 + $0x50] sm:$0xff]
      %v449 = vld [vmem:[%s271 + $0x58] sm:$0xff]
      %v450 = vld [vmem:[%s271 + $0x60] sm:$0xff]
      %v451 = vld [vmem:[%s271 + $0x68] sm:$0xff]
      %v452 = vld [vmem:[%s271 + $0x70] sm:$0xff]
      %v453 = vld [vmem:[%s271 + $0x78] sm:$0xff]
      %v454 = vadd.f32 %v422, %v438
      %v455 = vadd.f32 %v423, %v439
      %v456 = vadd.f32 %v424, %v440
      %v457 = vadd.f32 %v425, %v441
      %v458 = vadd.f32 %v426, %v442
      %v459 = vadd.f32 %v427, %v443
      %v460 = vadd.f32 %v428, %v444
      %v461 = vadd.f32 %v429, %v445
      %v462 = vadd.f32 %v430, %v446
      %v463 = vadd.f32 %v431, %v447
      %v464 = vadd.f32 %v432, %v448
      %v465 = vadd.f32 %v433, %v449
      %v466 = vadd.f32 %v434, %v450
      %v467 = vadd.f32 %v435, %v451
      %v468 = vadd.f32 %v436, %v452
      %v469 = vadd.f32 %v437, %v453
      %v470 = vmax.f32 %v454, 0.0
      %v471 = vmax.f32 %v455, 0.0
      %v472 = vmax.f32 %v456, 0.0
      %v473 = vmax.f32 %v457, 0.0
      %v474 = vmax.f32 %v458, 0.0
      %v475 = vmax.f32 %v459, 0.0
      %v476 = vmax.f32 %v460, 0.0
      %v477 = vmax.f32 %v461, 0.0
      %v478 = vmax.f32 %v462, 0.0
      %v479 = vmax.f32 %v463, 0.0
      %v480 = vmax.f32 %v464, 0.0
      %v481 = vmax.f32 %v465, 0.0
      %v482 = vmax.f32 %v466, 0.0
      %v483 = vmax.f32 %v467, 0.0
      %v484 = vmax.f32 %v468, 0.0
      %v485 = vmax.f32 %v469, 0.0
      %486 = vst [vmem:[%s283] sm:$0xff] %v470
      %487 = vst [vmem:[%s283 + $0x8] sm:$0xff] %v471
      %488 = vst [vmem:[%s283 + $0x10] sm:$0xff] %v472
      %489 = vst [vmem:[%s283 + $0x18] sm:$0xff] %v473
      %490 = vst [vmem:[%s283 + $0x20] sm:$0xff] %v474
      %491 = vst [vmem:[%s283 + $0x28] sm:$0xff] %v475
      %492 = vst [vmem:[%s283 + $0x30] sm:$0xff] %v476
      %493 = vst [vmem:[%s283 + $0x38] sm:$0xff] %v477
      %494 = vst [vmem:[%s283 + $0x40] sm:$0xff] %v478
      %495 = vst [vmem:[%s283 + $0x48] sm:$0xff] %v479
      %496 = vst [vmem:[%s283 + $0x50] sm:$0xff] %v480
      %497 = vst [vmem:[%s283 + $0x58] sm:$0xff] %v481
      %498 = vst [vmem:[%s283 + $0x60] sm:$0xff] %v482
      %499 = vst [vmem:[%s283 + $0x68] sm:$0xff] %v483
      %500 = vst [vmem:[%s283 + $0x70] sm:$0xff] %v484
      %501 = vst [vmem:[%s283 + $0x78] sm:$0xff] %v485
      %s502 = smul.u32 8, %s19
      %s503 = smul.u32 2, %s20
      %p504 = scmp.lt.s32.totalorder %s502, 15
      %s505 = scalar_select %p504, %s502, 15
      %p506 = scmp.lt.s32.totalorder %s503, 1
      %s507 = scalar_select %p506, %s503, 1
      %s508 = smul.addr %s505, 2
      %s509 = sadd.s32 %s507, %s508
      %s510 = smul.addr %s509, 8
      %s511 = scalar_lea.vmem %s4, %s510
      // Predicated region
      $region37: #{bottleneck_forward.7} parent=35 // pred_check
        %p512 = pneg %p145
      $region38: #{bottleneck_forward.7} parent=35 // pred_check_branch
        %514 = sbr.rel (%p512) target = $region40
      $region39: #{bottleneck_forward.7} parent=35 // pred_region
        %s515 = smul.u32 8, %s19
        %s516 = smul.u32 2, %s20
      $region40: #{bottleneck_forward.7} parent=35 // pred_fallthru
        _
    $region36: #{bottleneck_forward.7} parent=5 // pred_fallthru
      _
    %p517 = scmp.le.s32.totalorder 2, %s10
    // Predicated region
    $region41: #{bottleneck_forward.7} parent=5 // pred_check
      %p518 = pneg %p517
    $region42: #{bottleneck_forward.7} parent=5 // pred_check_branch
      %520 = sbr.rel (%p518) target = $region44
    $region43: #{bottleneck_forward.7} parent=5 // pred_region
      %s521 = ssub.s32 %s10, 2
      // Predicated region
      $region45: #{bottleneck_forward.7} parent=43 // pred_check
        %p522 = pneg %p151
      $region46: #{bottleneck_forward.7} parent=43 // pred_check_branch
        %524 = sbr.rel (%p522) target = $region48
      $region47: #{bottleneck_forward.7} parent=43 // pred_region
        %s525 = smul.u32 8, %s21
        %s526 = smul.u32 2, %s22
        %p527 = scmp.lt.s32.totalorder %s525, 15
        %s528 = scalar_select %p527, %s525, 15
        %p529 = scmp.lt.s32.totalorder %s526, 1
        %s530 = scalar_select %p529, %s526, 1
        %s531 = smul.addr %s528, 2
        %s532 = sadd.s32 %s530, %s531
        %s533 = smul.addr %s532, 8
        %s534 = scalar_lea.vmem %s4, %s533
      $region48: #{bottleneck_forward.7} parent=43 // pred_fallthru
        _
    $region44: #{bottleneck_forward.7} parent=5 // pred_fallthru
      _
  $region6: #{bottleneck_forward.7} parent=0 // loop_footer
    %s14 = sadd.s32 1, %s10
  $region7: #{bottleneck_forward.7} parent=0 // loop_footer_branch
    %9 = sbr.rel target = $region3
  $region8: #{bottleneck_forward.7} parent=0 // loop_exit
    _

// kernel: bottleneck_forward.5
$region0: #{bottleneck_forward.5}
  #allocation0 [shape = 'u32[]', space=smem, size = 0x4, offset = 0x4, fixed_abs, tag = 'smem constant byte address 0x4 - core index']
  #allocation1 [shape = 'u32[144,128]{1,0:T(1,128)}', space=vmem, size = 0x12000, scoped, tag = 'internal scratch']
  %s0 = inlined_call_operand.vmem [shape: bf16[32,256], index: 0, kind: input, shape index: {}]
  %s1 = inlined_call_operand.vmem [shape: f32[16,1], index: 1, kind: input, shape index: {}]
  %s2 = inlined_call_operand.vmem [shape: f32[16,1], index: 2, kind: input, shape index: {}]
  %s3 = inlined_call_operand.vmem [shape: bf16[9,16,16], index: 3, kind: input, shape index: {}]
  %s4 = inlined_call_operand.vmem [shape: bf16[32,256], index: 4, kind: output, shape index: {0}]
  %s5 = inlined_call_operand.vmem [shape: f32[32,2], index: 5, kind: output, shape index: {1}]
  %6 = xla_tuple %s4, %s5
  %s7 = sld [smem:[#allocation0]]
  $region57: #{bottleneck_forward.5} parent=0
    _
  %s9 = ssub.s32 1, %s7
  %s10 = scalar_select 0, %s9, %s7
  loop: start=0, step=1, limit=4
  $region2: #{bottleneck_forward.5} parent=0 // loop_pre_header
    _
  $region3: #{bottleneck_forward.5} parent=0 // loop_header
    %s12 = sphi 0, %s16
    %p13 = scmp.ge.s32.totalorder %s12, 4
    %s22 = sphi 0, %s24
    %s25 = sphi 0, %s22
    %s26 = sphi 0, %s25
    %s42 = sphi 0, %s26
    %s46 = sphi 0, %s46
    %s48 = sphi 0, %s46
    %s49 = sphi 0, %s48
    %s63 = sphi 0, %s49
    %s67 = sphi 0, %s67
    %s69 = sphi 0, %s67
    %s70 = sphi 0, %s69
    %s84 = sphi 0, %s70
    %s88 = sphi 0, %s88
    %s90 = sphi 0, %s88
    %s91 = sphi 0, %s90
    %s105 = sphi 0, %s91
    %s111 = sphi 0, %s113
    %s114 = sphi 0, %s111
    %s115 = sphi 0, %s114
    %s131 = sphi 0, %s115
    %s137 = sphi 0, %s139
    %s140 = sphi 0, %s137
    %s141 = sphi 0, %s140
    %s157 = sphi 0, %s141
  $region4: #{bottleneck_forward.5} parent=0 // loop_header_branch
    %15 = sbr.rel (%p13) target = $region8
  $region5: #{bottleneck_forward.5} parent=0 // loop_body
    %s17 = ssub.s32 %s12, 1
    %s18 = ssub.s32 %s12, 2
    %s19 = sadd.s32 %s12, 1
    %s20 = ssub.s32 %s12, %s19
    %p21 = scmp.eq.s32.totalorder %s20, 0
    %s23 = sadd.s32 %s22, 1
    %s24 = scalar_select %p21, %s22, %s23
    %p27 = pneg %p21
    %p28 = scmp.eq.s32.totalorder %s12, 1
    %p29 = por %p27, %p28
    %p30 = scmp.ne.s32.totalorder %s22, %s25
    %p31 = scmp.eq.s32.totalorder %s12, 0
    %p32 = por %p30, %p31
    %p33 = scmp.ne.s32.totalorder %s22, %s25
    %p34 = scmp.eq.s32.totalorder %s17, 1
    %p35 = por %p33, %p34
    %p36 = scmp.ne.s32.totalorder %s25, %s26
    %p37 = scmp.eq.s32.totalorder %s17, 0
    %p38 = por %p36, %p37
    %p39 = scmp.ne.s32.totalorder %s25, %s26
    %p40 = scmp.eq.s32.totalorder %s18, 1
    %p41 = por %p39, %p40
    %p43 = scmp.ne.s32.totalorder %s26, %s42
    %p44 = scmp.eq.s32.totalorder %s18, 0
    %p45 = por %p43, %p44
    %s47 = sadd.s32 %s46, 1
    %p50 = scmp.eq.s32.totalorder %s12, 1
    %p51 = scmp.ne.s32.totalorder %s46, %s48
    %p52 = scmp.eq.s32.totalorder %s12, 0
    %p53 = por %p51, %p52
    %p54 = scmp.ne.s32.totalorder %s46, %s48
    %p55 = scmp.eq.s32.totalorder %s17, 1
    %p56 = por %p54, %p55
    %p57 = scmp.ne.s32.totalorder %s48, %s49
    %p58 = scmp.eq.s32.totalorder %s17, 0
    %p59 = por %p57, %p58
    %p60 = scmp.ne.s32.totalorder %s48, %s49
    %p61 = scmp.eq.s32.totalorder %s18, 1
    %p62 = por %p60, %p61
    %p64 = scmp.ne.s32.totalorder %s49, %s63
    %p65 = scmp.eq.s32.totalorder %s18, 0
    %p66 = por %p64, %p65
    %s68 = sadd.s32 %s67, 1
    %p71 = scmp.eq.s32.totalorder %s12, 1
    %p72 = scmp.ne.s32.totalorder %s67, %s69
    %p73 = scmp.eq.s32.totalorder %s12, 0
    %p74 = por %p72, %p73
    %p75 = scmp.ne.s32.totalorder %s67, %s69
    %p76 = scmp.eq.s32.totalorder %s17, 1
    %p77 = por %p75, %p76
    %p78 = scmp.ne.s32.totalorder %s69, %s70
    %p79 = scmp.eq.s32.totalorder %s17, 0
    %p80 = por %p78, %p79
    %p81 = scmp.ne.s32.totalorder %s69, %s70
    %p82 = scmp.eq.s32.totalorder %s18, 1
    %p83 = por %p81, %p82
    %p85 = scmp.ne.s32.totalorder %s70, %s84
    %p86 = scmp.eq.s32.totalorder %s18, 0
    %p87 = por %p85, %p86
    %s89 = sadd.s32 %s88, 1
    %p92 = scmp.eq.s32.totalorder %s12, 1
    %p93 = scmp.ne.s32.totalorder %s88, %s90
    %p94 = scmp.eq.s32.totalorder %s12, 0
    %p95 = por %p93, %p94
    %p96 = scmp.ne.s32.totalorder %s88, %s90
    %p97 = scmp.eq.s32.totalorder %s17, 1
    %p98 = por %p96, %p97
    %p99 = scmp.ne.s32.totalorder %s90, %s91
    %p100 = scmp.eq.s32.totalorder %s17, 0
    %p101 = por %p99, %p100
    %p102 = scmp.ne.s32.totalorder %s90, %s91
    %p103 = scmp.eq.s32.totalorder %s18, 1
    %p104 = por %p102, %p103
    %p106 = scmp.ne.s32.totalorder %s91, %s105
    %p107 = scmp.eq.s32.totalorder %s18, 0
    %p108 = por %p106, %p107
    %s109 = ssub.s32 %s12, %s19
    %p110 = scmp.eq.s32.totalorder %s109, 0
    %s112 = sadd.s32 %s111, 1
    %s113 = scalar_select %p110, %s111, %s112
    %p116 = pneg %p110
    %p117 = scmp.eq.s32.totalorder %s12, 1
    %p118 = por %p116, %p117
    %p119 = scmp.ne.s32.totalorder %s111, %s114
    %p120 = scmp.eq.s32.totalorder %s12, 0
    %p121 = por %p119, %p120
    %p122 = scmp.ne.s32.totalorder %s111, %s114
    %p123 = scmp.eq.s32.totalorder %s17, 1
    %p124 = por %p122, %p123
    %p125 = scmp.ne.s32.totalorder %s114, %s115
    %p126 = scmp.eq.s32.totalorder %s17, 0
    %p127 = por %p125, %p126
    %p128 = scmp.ne.s32.totalorder %s114, %s115
    %p129 = scmp.eq.s32.totalorder %s18, 1
    %p130 = por %p128, %p129
    %p132 = scmp.ne.s32.totalorder %s115, %s131
    %p133 = scmp.eq.s32.totalorder %s18, 0
    %p134 = por %p132, %p133
    %s135 = ssub.s32 %s12, %s19
    %p136 = scmp.eq.s32.totalorder %s135, 0
    %s138 = sadd.s32 %s137, 1
    %s139 = scalar_select %p136, %s137, %s138
    %p142 = pneg %p136
    %p143 = scmp.eq.s32.totalorder %s12, 1
    %p144 = por %p142, %p143
    %p145 = scmp.ne.s32.totalorder %s137, %s140
    %p146 = scmp.eq.s32.totalorder %s12, 0
    %p147 = por %p145, %p146
    %p148 = scmp.ne.s32.totalorder %s137, %s140
    %p149 = scmp.eq.s32.totalorder %s17, 1
    %p150 = por %p148, %p149
    %p151 = scmp.ne.s32.totalorder %s140, %s141
    %p152 = scmp.eq.s32.totalorder %s17, 0
    %p153 = por %p151, %p152
    %p154 = scmp.ne.s32.totalorder %s140, %s141
    %p155 = scmp.eq.s32.totalorder %s18, 1
    %p156 = por %p154, %p155
    %p158 = scmp.ne.s32.totalorder %s141, %s157
    %p159 = scmp.eq.s32.totalorder %s18, 0
    %p160 = por %p158, %p159
    %p161 = scmp.le.s32.totalorder 1, %s12
    %p162 = scmp.lt.s32.totalorder %s12, 3
    %p163 = pnand %p161, %p162
    %p164 = pneg %p163
    // Predicated region
    $region9: #{bottleneck_forward.5} parent=5 // pred_check
      _
    $region10: #{bottleneck_forward.5} parent=5 // pred_check_branch
      %166 = sbr.rel (%p163) target = $region12
    $region11: #{bottleneck_forward.5} parent=5 // pred_region
      %s167 = ssub.s32 %s12, 1
      // Predicated region
      $region13: #{bottleneck_forward.5} parent=11 // pred_check
        %p168 = pneg %p59
      $region14: #{bottleneck_forward.5} parent=11 // pred_check_branch
        %170 = sbr.rel (%p168) target = $region16
      $region15: #{bottleneck_forward.5} parent=11 // pred_region
        _
      $region16: #{bottleneck_forward.5} parent=11 // pred_fallthru
        _
      // Predicated region
      $region17: #{bottleneck_forward.5} parent=11 // pred_check
        %p171 = pneg %p80
      $region18: #{bottleneck_forward.5} parent=11 // pred_check_branch
        %173 = sbr.rel (%p171) target = $region20
      $region19: #{bottleneck_forward.5} parent=11 // pred_region
        _
      $region20: #{bottleneck_forward.5} parent=11 // pred_fallthru
        _
      // Predicated region
      $region21: #{bottleneck_forward.5} parent=11 // pred_check
        %p174 = pneg %p101
      $region22: #{bottleneck_forward.5} parent=11 // pred_check_branch
        %176 = sbr.rel (%p174) target = $region24
      $region23: #{bottleneck_forward.5} parent=11 // pred_region
        _
      $region24: #{bottleneck_forward.5} parent=11 // pred_fallthru
        _
    $region12: #{bottleneck_forward.5} parent=5 // pred_fallthru
      _
    %p177 = scmp.lt.s32.totalorder %s12, 2
    // Predicated region
    $region25: #{bottleneck_forward.5} parent=5 // pred_check
      %p178 = pneg %p177
    $region26: #{bottleneck_forward.5} parent=5 // pred_check_branch
      %180 = sbr.rel (%p178) target = $region28
    $region27: #{bottleneck_forward.5} parent=5 // pred_region
      // Predicated region
      $region29: #{bottleneck_forward.5} parent=27 // pred_check
        %p181 = pneg %p32
      $region30: #{bottleneck_forward.5} parent=27 // pred_check_branch
        %183 = sbr.rel (%p181) target = $region32
      $region31: #{bottleneck_forward.5} parent=27 // pred_region
        %s184 = smul.u32 2, %s12
        %p185 = scmp.lt.s32.totalorder %s184, 3
        %s186 = scalar_select %p185, %s184, 3
        %s187 = smul.addr %s186, 2
        %s188 = smul.addr %s187, 4
        %s189 = scalar_lea.vmem %s0, %s188
        %s190 = smul.u32 2, %s12
      $region32: #{bottleneck_forward.5} parent=27 // pred_fallthru
        _
    $region28: #{bottleneck_forward.5} parent=5 // pred_fallthru
      _
    %p191 = scmp.le.s32.totalorder 1, %s12
    %p192 = scmp.lt.s32.totalorder %s12, 3
    %p193 = pnand %p191, %p192
    %p194 = pneg %p193
    // Predicated region
    $region33: #{bottleneck_forward.5} parent=5 // pred_check
      _
    $region34: #{bottleneck_forward.5} parent=5 // pred_check_branch
      %196 = sbr.rel (%p193) target = $region36
    $region35: #{bottleneck_forward.5} parent=5 // pred_region
      %s197 = ssub.s32 %s12, 1
      %s198 = smul.u32 2, %s17
      %p199 = scmp.lt.s32.totalorder %s198, 3
      %s200 = scalar_select %p199, %s198, 3
      %s201 = smul.addr %s200, 2
      %s202 = smul.addr %s201, 4
      %s203 = scalar_lea.vmem %s0, %s202
      %p204 = pneg %p38
      %p205 = pneg %p35
      %p206 = pneg %p59
      %p207 = pneg %p56
      %p208 = pneg %p80
      %p209 = pneg %p77
      %p210 = pneg %p101
      %p211 = pneg %p98
      %p212 = pneg %p127
      %p213 = pneg %p124
      %s214 = smul.u32 2, %s17
      %p215 = scmp.lt.s32.totalorder %s214, 3
      %s216 = scalar_select %p215, %s214, 3
      %s217 = smul.addr %s216, 2
      %s218 = smul.addr %s217, 4
      %s219 = scalar_lea.vmem %s4, %s218
      %p220 = pneg %p153
      %p221 = pneg %p150
      %s222 = smul.u32 2, %s17
      %p223 = scmp.lt.s32.totalorder %s222, 3
      %s224 = scalar_select %p223, %s222, 3
      %s225 = smul.addr %s224, 8
      %s226 = scalar_lea.vmem %s5, %s225
      %s227 = smul.u32 2, %s17
      %p228 = scmp.lt.s32.totalorder %s227, 3
      %s229 = scalar_select %p228, %s227, 3
      %s230 = smul.addr %s229, 2
      %s231 = smul.addr %s230, 4
      %s232 = scalar_lea.vmem %s0, %s231
      %s233 = smul.u32 2, %s17
      %s234 = smul.u32 2, %s17
      %p235 = scmp.lt.s32.totalorder %s234, 3
      %s236 = scalar_select %p235, %s234, 3
      %s237 = smul.addr %s236, 2
      %s238 = smul.addr %s237, 4
      %s239 = scalar_lea.vmem %s4, %s238
      %s240 = smul.u32 2, %s17
      %s241 = smul.u32 2, %s17
      %p242 = scmp.lt.s32.totalorder %s241, 3
      %s243 = scalar_select %p242, %s241, 3
      %s244 = smul.addr %s243, 8
      %s245 = scalar_lea.vmem %s5, %s244
      %s246 = smul.u32 2, %s17
      %v248 = vld [vmem:[%s232] sm:$0xff]
      %v249 = vld [vmem:[%s232 + $0x8] sm:$0xff]
      %v250 = vunpack.c.l.bf16 %v248
      %v251 = vunpack.c.h.bf16 %v248
      %v252 = vunpack.c.l.bf16 %v249
      %v253 = vunpack.c.h.bf16 %v249
      %v254 = vld [vmem:[%s1] sm:$0xff]
      %v255 = vld [vmem:[%s1 + $0x8] sm:$0xff]
      %257 = vset.pattern.permute.xlu0 0
      %258 = vperm.xlu0 %257, %v254
      %v259 = vpop.permute.xlu0 %258
      %262 = vset.pattern.permute.xlu0 0
      %263 = vperm.xlu0 %262, %v255
      %v264 = vpop.permute.xlu0 %263
      %v266 = vmul.f32 %v250, %v259
      %v267 = vmul.f32 %v251, %v259
      %v268 = vmul.f32 %v252, %v264
      %v269 = vmul.f32 %v253, %v264
      %v270 = vld [vmem:[%s2] sm:$0xff]
      %v271 = vld [vmem:[%s2 + $0x8] sm:$0xff]
      %273 = vset.pattern.permute.xlu0 0
      %274 = vperm.xlu0 %273, %v270
      %v275 = vpop.permute.xlu0 %274
      %278 = vset.pattern.permute.xlu0 0
      %279 = vperm.xlu0 %278, %v271
      %v280 = vpop.permute.xlu0 %279
      %v282 = vadd.f32 %v266, %v275
      %v283 = vadd.f32 %v267, %v275
      %v284 = vadd.f32 %v268, %v280
      %v285 = vadd.f32 %v269, %v280
      %v286 = vmax.f32 %v282, 0.0
      %v287 = vmax.f32 %v283, 0.0
      %v288 = vmax.f32 %v284, 0.0
      %v289 = vmax.f32 %v285, 0.0
      %v290 = vpack.c.bf16 %v288, %v286
      %v291 = vpack.c.bf16 %v289, %v287
      %293 = vrot.lane.b32.xlu0 %v290, 112
      %v294 = vpop.permute.xlu0 %293
      %296 = vrot.lane.b32.xlu0 %v290, 96
      %v297 = vpop.permute.xlu0 %296
      %299 = vrot.lane.b32.xlu0 %v290, 80
      %v300 = vpop.permute.xlu0 %299
      %302 = vrot.lane.b32.xlu0 %v290, 64
      %v303 = vpop.permute.xlu0 %302
      %305 = vrot.lane.b32.xlu0 %v290, 48
      %v306 = vpop.permute.xlu0 %305
      %308 = vrot.lane.b32.xlu0 %v290, 32
      %v309 = vpop.permute.xlu0 %308
      %311 = vrot.lane.b32.xlu0 %v290, 16
      %v312 = vpop.permute.xlu0 %311
      %315 = vrot.lane.b32.xlu0 %v291, 112
      %v316 = vpop.permute.xlu0 %315
      %318 = vrot.lane.b32.xlu0 %v291, 96
      %v319 = vpop.permute.xlu0 %318
      %321 = vrot.lane.b32.xlu0 %v291, 80
      %v322 = vpop.permute.xlu0 %321
      %324 = vrot.lane.b32.xlu0 %v291, 64
      %v325 = vpop.permute.xlu0 %324
      %327 = vrot.lane.b32.xlu0 %v291, 48
      %v328 = vpop.permute.xlu0 %327
      %330 = vrot.lane.b32.xlu0 %v291, 32
      %v331 = vpop.permute.xlu0 %330
      %333 = vrot.lane.b32.xlu0 %v291, 16
      %v334 = vpop.permute.xlu0 %333
      %v336 = vcombine.low %v290, %v303
      %v337 = vcombine.high %v290, %v303
      %v339 = vunpack.c.l.s4 1983009808
      %v340 = vunpack.c.0.s8 %v339
      %v341 = vlaneseq
      %v342 = vshrl.u32 %v341, 7
      %v343 = vsub.s32 %v340, %v342
      %v344 = vrot.slane %v336, %v343
      %v346 = vunpack.c.l.s4 1983009808
      %v347 = vunpack.c.0.s8 %v346
      %v348 = vlaneseq
      %v349 = vshrl.u32 %v348, 7
      %v350 = vsub.s32 %v347, %v349
      %v351 = vrot.slane %v337, %v350
      %v352 = vcombine.low %v297, %v309
      %v353 = vcombine.high %v297, %v309
      %v355 = vunpack.c.l.s4 1983009808
      %v356 = vunpack.c.0.s8 %v355
      %v357 = vlaneseq
      %v358 = vshrl.u32 %v357, 7
      %v359 = vsub.s32 %v356, %v358
      %v360 = vrot.slane %v352, %v359
      %v362 = vunpack.c.l.s4 1983009808
      %v363 = vunpack.c.0.s8 %v362
      %v364 = vlaneseq
      %v365 = vshrl.u32 %v364, 7
      %v366 = vsub.s32 %v363, %v365
      %v367 = vrot.slane %v353, %v366
      %v368 = vcombine.low %v291, %v325
      %v369 = vcombine.high %v291, %v325
      %v371 = vunpack.c.l.s4 1983009808
      %v372 = vunpack.c.0.s8 %v371
      %v373 = vlaneseq
      %v374 = vshrl.u32 %v373, 7
      %v375 = vsub.s32 %v372, %v374
      %v376 = vrot.slane %v368, %v375
      %v378 = vunpack.c.l.s4 1983009808
      %v379 = vunpack.c.0.s8 %v378
      %v380 = vlaneseq
      %v381 = vshrl.u32 %v380, 7
      %v382 = vsub.s32 %v379, %v381
      %v383 = vrot.slane %v369, %v382
      %v384 = vcombine.low %v319, %v331
      %v385 = vcombine.high %v319, %v331
      %v387 = vunpack.c.l.s4 1983009808
      %v388 = vunpack.c.0.s8 %v387
      %v389 = vlaneseq
      %v390 = vshrl.u32 %v389, 7
      %v391 = vsub.s32 %v388, %v390
      %v392 = vrot.slane %v384, %v391
      %v394 = vunpack.c.l.s4 1983009808
      %v395 = vunpack.c.0.s8 %v394
      %v396 = vlaneseq
      %v397 = vshrl.u32 %v396, 7
      %v398 = vsub.s32 %v395, %v397
      %v399 = vrot.slane %v385, %v398
      %v400 = vcombine.low %v344, %v360
      %v401 = vcombine.high %v344, %v360
      %v403 = vunpack.c.l.s4 1934713408
      %v404 = vunpack.c.0.s8 %v403
      %v405 = vlaneseq
      %v406 = vshrl.u32 %v405, 7
      %v407 = vsub.s32 %v404, %v406
      %v408 = vrot.slane %v400, %v407
      %v410 = vunpack.c.l.s4 1934713408
      %v411 = vunpack.c.0.s8 %v410
      %v412 = vlaneseq
      %v413 = vshrl.u32 %v412, 7
      %v414 = vsub.s32 %v411, %v413
      %v415 = vrot.slane %v401, %v414
      %v416 = vcombine.low %v351, %v367
      %v417 = vcombine.high %v351, %v367
      %v419 = vunpack.c.l.s4 1934713408
      %v420 = vunpack.c.0.s8 %v419
      %v421 = vlaneseq
      %v422 = vshrl.u32 %v421, 7
      %v423 = vsub.s32 %v420, %v422
      %v424 = vrot.slane %v416, %v423
      %v426 = vunpack.c.l.s4 1934713408
      %v427 = vunpack.c.0.s8 %v426
      %v428 = vlaneseq
      %v429 = vshrl.u32 %v428, 7
      %v430 = vsub.s32 %v427, %v429
      %v431 = vrot.slane %v417, %v430
      %v432 = vcombine.low %v376, %v392
      %v433 = vcombine.high %v376, %v392
      %v435 = vunpack.c.l.s4 1934713408
      %v436 = vunpack.c.0.s8 %v435
      %v437 = vlaneseq
      %v438 = vshrl.u32 %v437, 7
      %v439 = vsub.s32 %v436, %v438
      %v440 = vrot.slane %v432, %v439
      %v442 = vunpack.c.l.s4 1934713408
      %v443 = vunpack.c.0.s8 %v442
      %v444 = vlaneseq
      %v445 = vshrl.u32 %v444, 7
      %v446 = vsub.s32 %v443, %v445
      %v447 = vrot.slane %v433, %v446
      %v448 = vcombine.low %v383, %v399
      %v449 = vcombine.high %v383, %v399
      %v451 = vunpack.c.l.s4 1934713408
      %v452 = vunpack.c.0.s8 %v451
      %v453 = vlaneseq
      %v454 = vshrl.u32 %v453, 7
      %v455 = vsub.s32 %v452, %v454
      %v456 = vrot.slane %v448, %v455
      %v458 = vunpack.c.l.s4 1934713408
      %v459 = vunpack.c.0.s8 %v458
      %v460 = vlaneseq
      %v461 = vshrl.u32 %v460, 7
      %v462 = vsub.s32 %v459, %v461
      %v463 = vrot.slane %v449, %v462
      %v464 = vcombine.low %v408, %v440
      %v465 = vcombine.high %v408, %v440
      %v466 = vcombine.low %v415, %v447
      %v467 = vcombine.high %v415, %v447
      %v468 = vcombine.low %v424, %v456
      %v469 = vcombine.high %v424, %v456
      %v470 = vcombine.low %v431, %v463
      %v471 = vcombine.high %v431, %v463
      %v472 = vcombine.low %v294, %v306
      %v473 = vcombine.high %v294, %v306
      %v475 = vunpack.c.l.s4 1983009808
      %v476 = vunpack.c.0.s8 %v475
      %v477 = vlaneseq
      %v478 = vshrl.u32 %v477, 7
      %v479 = vsub.s32 %v476, %v478
      %v480 = vrot.slane %v472, %v479
      %v482 = vunpack.c.l.s4 1983009808
      %v483 = vunpack.c.0.s8 %v482
      %v484 = vlaneseq
      %v485 = vshrl.u32 %v484, 7
      %v486 = vsub.s32 %v483, %v485
      %v487 = vrot.slane %v473, %v486
      %v488 = vcombine.low %v300, %v312
      %v489 = vcombine.high %v300, %v312
      %v491 = vunpack.c.l.s4 1983009808
      %v492 = vunpack.c.0.s8 %v491
      %v493 = vlaneseq
      %v494 = vshrl.u32 %v493, 7
      %v495 = vsub.s32 %v492, %v494
      %v496 = vrot.slane %v488, %v495
      %v498 = vunpack.c.l.s4 1983009808
      %v499 = vunpack.c.0.s8 %v498
      %v500 = vlaneseq
      %v501 = vshrl.u32 %v500, 7
      %v502 = vsub.s32 %v499, %v501
      %v503 = vrot.slane %v489, %v502
      %v504 = vcombine.low %v316, %v328
      %v505 = vcombine.high %v316, %v328
      %v507 = vunpack.c.l.s4 1983009808
      %v508 = vunpack.c.0.s8 %v507
      %v509 = vlaneseq
      %v510 = vshrl.u32 %v509, 7
      %v511 = vsub.s32 %v508, %v510
      %v512 = vrot.slane %v504, %v511
      %v514 = vunpack.c.l.s4 1983009808
      %v515 = vunpack.c.0.s8 %v514
      %v516 = vlaneseq
      %v517 = vshrl.u32 %v516, 7
      %v518 = vsub.s32 %v515, %v517
      %v519 = vrot.slane %v505, %v518
      %v520 = vcombine.low %v322, %v334
      %v521 = vcombine.high %v322, %v334
      %v523 = vunpack.c.l.s4 1983009808
      %v524 = vunpack.c.0.s8 %v523
      %v525 = vlaneseq
      %v526 = vshrl.u32 %v525, 7
      %v527 = vsub.s32 %v524, %v526
      %v528 = vrot.slane %v520, %v527
      %v530 = vunpack.c.l.s4 1983009808
      %v531 = vunpack.c.0.s8 %v530
      %v532 = vlaneseq
      %v533 = vshrl.u32 %v532, 7
      %v534 = vsub.s32 %v531, %v533
      %v535 = vrot.slane %v521, %v534
      %v536 = vcombine.low %v480, %v496
      %v537 = vcombine.high %v480, %v496
      %v539 = vunpack.c.l.s4 1934713408
      %v540 = vunpack.c.0.s8 %v539
      %v541 = vlaneseq
      %v542 = vshrl.u32 %v541, 7
      %v543 = vsub.s32 %v540, %v542
      %v544 = vrot.slane %v536, %v543
      %v546 = vunpack.c.l.s4 1934713408
      %v547 = vunpack.c.0.s8 %v546
      %v548 = vlaneseq
      %v549 = vshrl.u32 %v548, 7
      %v550 = vsub.s32 %v547, %v549
      %v551 = vrot.slane %v537, %v550
      %v552 = vcombine.low %v487, %v503
      %v553 = vcombine.high %v487, %v503
      %v555 = vunpack.c.l.s4 1934713408
      %v556 = vunpack.c.0.s8 %v555
      %v557 = vlaneseq
      %v558 = vshrl.u32 %v557, 7
      %v559 = vsub.s32 %v556, %v558
      %v560 = vrot.slane %v552, %v559
      %v562 = vunpack.c.l.s4 1934713408
      %v563 = vunpack.c.0.s8 %v562
      %v564 = vlaneseq
      %v565 = vshrl.u32 %v564, 7
      %v566 = vsub.s32 %v563, %v565
      %v567 = vrot.slane %v553, %v566
      %v568 = vcombine.low %v512, %v528
      %v569 = vcombine.high %v512, %v528
      %v571 = vunpack.c.l.s4 1934713408
      %v572 = vunpack.c.0.s8 %v571
      %v573 = vlaneseq
      %v574 = vshrl.u32 %v573, 7
      %v575 = vsub.s32 %v572, %v574
      %v576 = vrot.slane %v568, %v575
      %v578 = vunpack.c.l.s4 1934713408
      %v579 = vunpack.c.0.s8 %v578
      %v580 = vlaneseq
      %v581 = vshrl.u32 %v580, 7
      %v582 = vsub.s32 %v579, %v581
      %v583 = vrot.slane %v569, %v582
      %v584 = vcombine.low %v519, %v535
      %v585 = vcombine.high %v519, %v535
      %v587 = vunpack.c.l.s4 1934713408
      %v588 = vunpack.c.0.s8 %v587
      %v589 = vlaneseq
      %v590 = vshrl.u32 %v589, 7
      %v591 = vsub.s32 %v588, %v590
      %v592 = vrot.slane %v584, %v591
      %v594 = vunpack.c.l.s4 1934713408
      %v595 = vunpack.c.0.s8 %v594
      %v596 = vlaneseq
      %v597 = vshrl.u32 %v596, 7
      %v598 = vsub.s32 %v595, %v597
      %v599 = vrot.slane %v585, %v598
      %v600 = vcombine.low %v544, %v576
      %v601 = vcombine.high %v544, %v576
      %v602 = vcombine.low %v551, %v583
      %v603 = vcombine.high %v551, %v583
      %v604 = vcombine.low %v560, %v592
      %v605 = vcombine.high %v560, %v592
      %v606 = vcombine.low %v567, %v599
      %v607 = vcombine.high %v567, %v599
      %v610 = vpack.i.b16 %v600, %v464
      %v611 = vshrl.u32 %v464, 16
      %v612 = vshrl.u32 %v600, 16
      %v613 = vpack.i.b16 %v612, %v611
      %v616 = vpack.i.b16 %v601, %v465
      %v617 = vshrl.u32 %v465, 16
      %v618 = vshrl.u32 %v601, 16
      %v619 = vpack.i.b16 %v618, %v617
      %v622 = vpack.i.b16 %v602, %v466
      %v623 = vshrl.u32 %v466, 16
      %v624 = vshrl.u32 %v602, 16
      %v625 = vpack.i.b16 %v624, %v623
      %v628 = vpack.i.b16 %v603, %v467
      %v629 = vshrl.u32 %v467, 16
      %v630 = vshrl.u32 %v603, 16
      %v631 = vpack.i.b16 %v630, %v629
      %v634 = vpack.i.b16 %v604, %v468
      %v635 = vshrl.u32 %v468, 16
      %v636 = vshrl.u32 %v604, 16
      %v637 = vpack.i.b16 %v636, %v635
      %v640 = vpack.i.b16 %v605, %v469
      %v641 = vshrl.u32 %v469, 16
      %v642 = vshrl.u32 %v605, 16
      %v643 = vpack.i.b16 %v642, %v641
      %v646 = vpack.i.b16 %v606, %v470
      %v647 = vshrl.u32 %v470, 16
      %v648 = vshrl.u32 %v606, 16
      %v649 = vpack.i.b16 %v648, %v647
      %v652 = vpack.i.b16 %v607, %v471
      %v653 = vshrl.u32 %v471, 16
      %v654 = vshrl.u32 %v607, 16
      %v655 = vpack.i.b16 %v654, %v653
      %v657 = vshrl.u32 %v610, 16
      %v659 = vrot.slane %v657, 7
      %v660 = vshll.u32 %v610, 16
      %v662 = vor.u32 %v659, %v660
      %v664 = vshrl.u32 %v613, 16
      %v666 = vrot.slane %v664, 7
      %v667 = vshll.u32 %v613, 16
      %v669 = vor.u32 %v666, %v667
      %v671 = vshrl.u32 %v616, 16
      %v673 = vrot.slane %v671, 7
      %v674 = vshll.u32 %v616, 16
      %v676 = vor.u32 %v673, %v674
      %v678 = vshrl.u32 %v619, 16
      %v680 = vrot.slane %v678, 7
      %v681 = vshll.u32 %v619, 16
      %v683 = vor.u32 %v680, %v681
      %v685 = vshrl.u32 %v622, 16
      %v687 = vrot.slane %v685, 7
      %v688 = vshll.u32 %v622, 16
      %v690 = vor.u32 %v687, %v688
      %v692 = vshrl.u32 %v625, 16
      %v694 = vrot.slane %v692, 7
      %v695 = vshll.u32 %v625, 16
      %v697 = vor.u32 %v694, %v695
      %v699 = vshrl.u32 %v628, 16
      %v701 = vrot.slane %v699, 7
      %v702 = vshll.u32 %v628, 16
      %v704 = vor.u32 %v701, %v702
      %v706 = vshrl.u32 %v631, 16
      %v708 = vrot.slane %v706, 7
      %v709 = vshll.u32 %v631, 16
      %v711 = vor.u32 %v708, %v709
      %v713 = vshrl.u32 %v634, 16
      %v715 = vrot.slane %v713, 7
      %v716 = vshll.u32 %v634, 16
      %v718 = vor.u32 %v715, %v716
      %v720 = vshrl.u32 %v637, 16
      %v722 = vrot.slane %v720, 7
      %v723 = vshll.u32 %v637, 16
      %v725 = vor.u32 %v722, %v723
      %v727 = vshrl.u32 %v640, 16
      %v729 = vrot.slane %v727, 7
      %v730 = vshll.u32 %v640, 16
      %v732 = vor.u32 %v729, %v730
      %v734 = vshrl.u32 %v643, 16
      %v736 = vrot.slane %v734, 7
      %v737 = vshll.u32 %v643, 16
      %v739 = vor.u32 %v736, %v737
      %v741 = vshrl.u32 %v646, 16
      %v743 = vrot.slane %v741, 7
      %v744 = vshll.u32 %v646, 16
      %v746 = vor.u32 %v743, %v744
      %v748 = vshrl.u32 %v649, 16
      %v750 = vrot.slane %v748, 7
      %v751 = vshll.u32 %v649, 16
      %v753 = vor.u32 %v750, %v751
      %v755 = vshrl.u32 %v652, 16
      %v757 = vrot.slane %v755, 7
      %v758 = vshll.u32 %v652, 16
      %v760 = vor.u32 %v757, %v758
      %v762 = vshrl.u32 %v655, 16
      %v764 = vrot.slane %v762, 7
      %v765 = vshll.u32 %v655, 16
      %v767 = vor.u32 %v764, %v765
      %vm800 = vcmask 1040384
      %vm801 = vsmask.f32 256
      %vm802 = vmand %vm800, %vm801
      %v803 = vsel %vm802, 0, %v662
      %v804 = vsel %vm802, 0, %v669
      %v805 = vsel %vm802, 0, %v676
      %v806 = vsel %vm802, 0, %v683
      %v807 = vsel %vm802, 0, %v690
      %v808 = vsel %vm802, 0, %v697
      %v809 = vsel %vm802, 0, %v704
      %v810 = vsel %vm802, 0, %v711
      %v811 = vsel %vm802, 0, %v718
      %v812 = vsel %vm802, 0, %v725
      %v813 = vsel %vm802, 0, %v732
      %v814 = vsel %vm802, 0, %v739
      %v815 = vsel %vm802, 0, %v746
      %v816 = vsel %vm802, 0, %v753
      %v817 = vsel %vm802, 0, %v760
      %v818 = vsel %vm802, 0, %v767
      %v819 = vsel %vm802, %v659, 0
      %v820 = vsel %vm802, %v666, 0
      %v821 = vsel %vm802, %v673, 0
      %v822 = vsel %vm802, %v680, 0
      %v823 = vsel %vm802, %v687, 0
      %v824 = vsel %vm802, %v694, 0
      %v825 = vsel %vm802, %v701, 0
      %v826 = vsel %vm802, %v708, 0
      %v827 = vsel %vm802, %v715, 0
      %v828 = vsel %vm802, %v722, 0
      %v829 = vsel %vm802, %v729, 0
      %v830 = vsel %vm802, %v736, 0
      %v831 = vsel %vm802, %v743, 0
      %v832 = vsel %vm802, %v750, 0
      %v833 = vsel %vm802, %v757, 0
      %v834 = vsel %vm802, %v764, 0
      %867 = vrot.lane.b32.xlu0 %v803, 1
      %v868 = vpop.permute.xlu0 %867
      %869 = vrot.lane.b32.xlu0 %v819, 1
      %v870 = vpop.permute.xlu0 %869
      %871 = vrot.lane.b32.xlu0 %v804, 1
      %v872 = vpop.permute.xlu0 %871
      %873 = vrot.lane.b32.xlu0 %v820, 1
      %v874 = vpop.permute.xlu0 %873
      %875 = vrot.lane.b32.xlu0 %v805, 1
      %v876 = vpop.permute.xlu0 %875
      %877 = vrot.lane.b32.xlu0 %v821, 1
      %v878 = vpop.permute.xlu0 %877
      %879 = vrot.lane.b32.xlu0 %v806, 1
      %v880 = vpop.permute.xlu0 %879
      %881 = vrot.lane.b32.xlu0 %v822, 1
      %v882 = vpop.permute.xlu0 %881
      %883 = vrot.lane.b32.xlu0 %v807, 1
      %v884 = vpop.permute.xlu0 %883
      %885 = vrot.lane.b32.xlu0 %v823, 1
      %v886 = vpop.permute.xlu0 %885
      %887 = vrot.lane.b32.xlu0 %v808, 1
      %v888 = vpop.permute.xlu0 %887
      %889 = vrot.lane.b32.xlu0 %v824, 1
      %v890 = vpop.permute.xlu0 %889
      %891 = vrot.lane.b32.xlu0 %v809, 1
      %v892 = vpop.permute.xlu0 %891
      %893 = vrot.lane.b32.xlu0 %v825, 1
      %v894 = vpop.permute.xlu0 %893
      %895 = vrot.lane.b32.xlu0 %v810, 1
      %v896 = vpop.permute.xlu0 %895
      %897 = vrot.lane.b32.xlu0 %v826, 1
      %v898 = vpop.permute.xlu0 %897
      %899 = vrot.lane.b32.xlu0 %v811, 1
      %v900 = vpop.permute.xlu0 %899
      %901 = vrot.lane.b32.xlu0 %v827, 1
      %v902 = vpop.permute.xlu0 %901
      %903 = vrot.lane.b32.xlu0 %v812, 1
      %v904 = vpop.permute.xlu0 %903
      %905 = vrot.lane.b32.xlu0 %v828, 1
      %v906 = vpop.permute.xlu0 %905
      %907 = vrot.lane.b32.xlu0 %v813, 1
      %v908 = vpop.permute.xlu0 %907
      %909 = vrot.lane.b32.xlu0 %v829, 1
      %v910 = vpop.permute.xlu0 %909
      %911 = vrot.lane.b32.xlu0 %v814, 1
      %v912 = vpop.permute.xlu0 %911
      %913 = vrot.lane.b32.xlu0 %v830, 1
      %v914 = vpop.permute.xlu0 %913
      %915 = vrot.lane.b32.xlu0 %v815, 1
      %v916 = vpop.permute.xlu0 %915
      %917 = vrot.lane.b32.xlu0 %v831, 1
      %v918 = vpop.permute.xlu0 %917
      %919 = vrot.lane.b32.xlu0 %v816, 1
      %v920 = vpop.permute.xlu0 %919
      %921 = vrot.lane.b32.xlu0 %v832, 1
      %v922 = vpop.permute.xlu0 %921
      %923 = vrot.lane.b32.xlu0 %v817, 1
      %v924 = vpop.permute.xlu0 %923
      %925 = vrot.lane.b32.xlu0 %v833, 1
      %v926 = vpop.permute.xlu0 %925
      %927 = vrot.lane.b32.xlu0 %v818, 1
      %v928 = vpop.permute.xlu0 %927
      %929 = vrot.lane.b32.xlu0 %v834, 1
      %v930 = vpop.permute.xlu0 %929
      %vm931 = vcmask 7168
      %v934 = vsel %vm931, 0, %v868
      %v936 = vsel %vm931, 0, %v870
      %v938 = vsel %vm931, 0, %v872
      %v940 = vsel %vm931, 0, %v874
      %v942 = vsel %vm931, 0, %v876
      %v944 = vsel %vm931, 0, %v878
      %v946 = vsel %vm931, 0, %v880
      %v948 = vsel %vm931, 0, %v882
      %v950 = vsel %vm931, 0, %v884
      %v952 = vsel %vm931, 0, %v886
      %v954 = vsel %vm931, 0, %v888
      %v956 = vsel %vm931, 0, %v890
      %v958 = vsel %vm931, 0, %v892
      %v960 = vsel %vm931, 0, %v894
      %v962 = vsel %vm931, 0, %v896
      %v964 = vsel %vm931, 0, %v898
      %v966 = vsel %vm931, 0, %v900
      %v968 = vsel %vm931, 0, %v902
      %v970 = vsel %vm931, 0, %v904
      %v972 = vsel %vm931, 0, %v906
      %v974 = vsel %vm931, 0, %v908
      %v976 = vsel %vm931, 0, %v910
      %v978 = vsel %vm931, 0, %v912
      %v980 = vsel %vm931, 0, %v914
      %v982 = vsel %vm931, 0, %v916
      %v984 = vsel %vm931, 0, %v918
      %v986 = vsel %vm931, 0, %v920
      %v988 = vsel %vm931, 0, %v922
      %v990 = vsel %vm931, 0, %v924
      %v992 = vsel %vm931, 0, %v926
      %v994 = vsel %vm931, 0, %v928
      %v996 = vsel %vm931, 0, %v930
      %vm997 = vcmask 138240
      %v998 = vsel %vm997, %v934, 0
      %v1000 = vsel %vm997, %v936, 0
      %v1001 = vsel %vm997, %v938, 0
      %v1003 = vsel %vm997, %v940, 0
      %v1004 = vsel %vm997, %v942, 0
      %v1006 = vsel %vm997, %v944, 0
      %v1007 = vsel %vm997, %v946, 0
      %v1009 = vsel %vm997, %v948, 0
      %v1010 = vsel %vm997, %v950, 0
      %v1012 = vsel %vm997, %v952, 0
      %v1013 = vsel %vm997, %v954, 0
      %v1015 = vsel %vm997, %v956, 0
      %v1016 = vsel %vm997, %v958, 0
      %v1018 = vsel %vm997, %v960, 0
      %v1019 = vsel %vm997, %v962, 0
      %v1021 = vsel %vm997, %v964, 0
      %v1022 = vsel %vm997, %v966, 0
      %v1024 = vsel %vm997, %v968, 0
      %v1025 = vsel %vm997, %v970, 0
      %v1027 = vsel %vm997, %v972, 0
      %v1028 = vsel %vm997, %v974, 0
      %v1030 = vsel %vm997, %v976, 0
      %v1031 = vsel %vm997, %v978, 0
      %v1033 = vsel %vm997, %v980, 0
      %v1034 = vsel %vm997, %v982, 0
      %v1036 = vsel %vm997, %v984, 0
      %v1037 = vsel %vm997, %v986, 0
      %v1039 = vsel %vm997, %v988, 0
      %v1040 = vsel %vm997, %v990, 0
      %v1042 = vsel %vm997, %v992, 0
      %v1043 = vsel %vm997, %v994, 0
      %v1045 = vsel %vm997, %v996, 0
      %v1046 = vcombine.low %v998, %v1010
      %v1047 = vcombine.high %v998, %v1010
      %v1049 = vunpack.c.l.s4 1983009808
      %v1050 = vunpack.c.0.s8 %v1049
      %v1051 = vlaneseq
      %v1052 = vshrl.u32 %v1051, 7
      %v1053 = vsub.s32 %v1050, %v1052
      %v1054 = vrot.slane %v1046, %v1053
      %v1056 = vunpack.c.l.s4 1983009808
      %v1057 = vunpack.c.0.s8 %v1056
      %v1058 = vlaneseq
      %v1059 = vshrl.u32 %v1058, 7
      %v1060 = vsub.s32 %v1057, %v1059
      %v1061 = vrot.slane %v1047, %v1060
      %v1062 = vcombine.low %v1004, %v1016
      %v1063 = vcombine.high %v1004, %v1016
      %v1065 = vunpack.c.l.s4 1983009808
      %v1066 = vunpack.c.0.s8 %v1065
      %v1067 = vlaneseq
      %v1068 = vshrl.u32 %v1067, 7
      %v1069 = vsub.s32 %v1066, %v1068
      %v1070 = vrot.slane %v1062, %v1069
      %v1072 = vunpack.c.l.s4 1983009808
      %v1073 = vunpack.c.0.s8 %v1072
      %v1074 = vlaneseq
      %v1075 = vshrl.u32 %v1074, 7
      %v1076 = vsub.s32 %v1073, %v1075
      %v1077 = vrot.slane %v1063, %v1076
      %v1078 = vcombine.low %v1022, %v1034
      %v1079 = vcombine.high %v1022, %v1034
      %v1081 = vunpack.c.l.s4 1983009808
      %v1082 = vunpack.c.0.s8 %v1081
      %v1083 = vlaneseq
      %v1084 = vshrl.u32 %v1083, 7
      %v1085 = vsub.s32 %v1082, %v1084
      %v1086 = vrot.slane %v1078, %v1085
      %v1088 = vunpack.c.l.s4 1983009808
      %v1089 = vunpack.c.0.s8 %v1088
      %v1090 = vlaneseq
      %v1091 = vshrl.u32 %v1090, 7
      %v1092 = vsub.s32 %v1089, %v1091
      %v1093 = vrot.slane %v1079, %v1092
      %v1094 = vcombine.low %v1028, %v1040
      %v1095 = vcombine.high %v1028, %v1040
      %v1097 = vunpack.c.l.s4 1983009808
      %v1098 = vunpack.c.0.s8 %v1097
      %v1099 = vlaneseq
      %v1100 = vshrl.u32 %v1099, 7
      %v1101 = vsub.s32 %v1098, %v1100
      %v1102 = vrot.slane %v1094, %v1101
      %v1104 = vunpack.c.l.s4 1983009808
      %v1105 = vunpack.c.0.s8 %v1104
      %v1106 = vlaneseq
      %v1107 = vshrl.u32 %v1106, 7
      %v1108 = vsub.s32 %v1105, %v1107
      %v1109 = vrot.slane %v1095, %v1108
      %v1110 = vcombine.low %v1054, %v1070
      %v1111 = vcombine.high %v1054, %v1070
      %v1113 = vunpack.c.l.s4 1934713408
      %v1114 = vunpack.c.0.s8 %v1113
      %v1115 = vlaneseq
      %v1116 = vshrl.u32 %v1115, 7
      %v1117 = vsub.s32 %v1114, %v1116
      %v1118 = vrot.slane %v1110, %v1117
      %v1120 = vunpack.c.l.s4 1934713408
      %v1121 = vunpack.c.0.s8 %v1120
      %v1122 = vlaneseq
      %v1123 = vshrl.u32 %v1122, 7
      %v1124 = vsub.s32 %v1121, %v1123
      %v1125 = vrot.slane %v1111, %v1124
      %v1126 = vcombine.low %v1061, %v1077
      %v1127 = vcombine.high %v1061, %v1077
      %v1129 = vunpack.c.l.s4 1934713408
      %v1130 = vunpack.c.0.s8 %v1129
      %v1131 = vlaneseq
      %v1132 = vshrl.u32 %v1131, 7
      %v1133 = vsub.s32 %v1130, %v1132
      %v1134 = vrot.slane %v1126, %v1133
      %v1136 = vunpack.c.l.s4 1934713408
      %v1137 = vunpack.c.0.s8 %v1136
      %v1138 = vlaneseq
      %v1139 = vshrl.u32 %v1138, 7
      %v1140 = vsub.s32 %v1137, %v1139
      %v1141 = vrot.slane %v1127, %v1140
      %v1142 = vcombine.low %v1086, %v1102
      %v1143 = vcombine.high %v1086, %v1102
      %v1145 = vunpack.c.l.s4 1934713408
      %v1146 = vunpack.c.0.s8 %v1145
      %v1147 = vlaneseq
      %v1148 = vshrl.u32 %v1147, 7
      %v1149 = vsub.s32 %v1146, %v1148
      %v1150 = vrot.slane %v1142, %v1149
      %v1152 = vunpack.c.l.s4 1934713408
      %v1153 = vunpack.c.0.s8 %v1152
      %v1154 = vlaneseq
      %v1155 = vshrl.u32 %v1154, 7
      %v1156 = vsub.s32 %v1153, %v1155
      %v1157 = vrot.slane %v1143, %v1156
      %v1158 = vcombine.low %v1093, %v1109
      %v1159 = vcombine.high %v1093, %v1109
      %v1161 = vunpack.c.l.s4 1934713408
      %v1162 = vunpack.c.0.s8 %v1161
      %v1163 = vlaneseq
      %v1164 = vshrl.u32 %v1163, 7
      %v1165 = vsub.s32 %v1162, %v1164
      %v1166 = vrot.slane %v1158, %v1165
      %v1168 = vunpack.c.l.s4 1934713408
      %v1169 = vunpack.c.0.s8 %v1168
      %v1170 = vlaneseq
      %v1171 = vshrl.u32 %v1170, 7
      %v1172 = vsub.s32 %v1169, %v1171
      %v1173 = vrot.slane %v1159, %v1172
      %v1174 = vcombine.low %v1118, %v1150
      %v1175 = vcombine.high %v1118, %v1150
      %v1176 = vcombine.low %v1125, %v1157
      %v1177 = vcombine.high %v1125, %v1157
      %v1178 = vcombine.low %v1134, %v1166
      %v1179 = vcombine.high %v1134, %v1166
      %v1180 = vcombine.low %v1141, %v1173
      %v1181 = vcombine.high %v1141, %v1173
      %v1182 = vcombine.low %v1001, %v1013
      %v1183 = vcombine.high %v1001, %v1013
      %v1185 = vunpack.c.l.s4 1983009808
      %v1186 = vunpack.c.0.s8 %v1185
      %v1187 = vlaneseq
      %v1188 = vshrl.u32 %v1187, 7
      %v1189 = vsub.s32 %v1186, %v1188
      %v1190 = vrot.slane %v1182, %v1189
      %v1192 = vunpack.c.l.s4 1983009808
      %v1193 = vunpack.c.0.s8 %v1192
      %v1194 = vlaneseq
      %v1195 = vshrl.u32 %v1194, 7
      %v1196 = vsub.s32 %v1193, %v1195
      %v1197 = vrot.slane %v1183, %v1196
      %v1198 = vcombine.low %v1007, %v1019
      %v1199 = vcombine.high %v1007, %v1019
      %v1201 = vunpack.c.l.s4 1983009808
      %v1202 = vunpack.c.0.s8 %v1201
      %v1203 = vlaneseq
      %v1204 = vshrl.u32 %v1203, 7
      %v1205 = vsub.s32 %v1202, %v1204
      %v1206 = vrot.slane %v1198, %v1205
      %v1208 = vunpack.c.l.s4 1983009808
      %v1209 = vunpack.c.0.s8 %v1208
      %v1210 = vlaneseq
      %v1211 = vshrl.u32 %v1210, 7
      %v1212 = vsub.s32 %v1209, %v1211
      %v1213 = vrot.slane %v1199, %v1212
      %v1214 = vcombine.low %v1025, %v1037
      %v1215 = vcombine.high %v1025, %v1037
      %v1217 = vunpack.c.l.s4 1983009808
      %v1218 = vunpack.c.0.s8 %v1217
      %v1219 = vlaneseq
      %v1220 = vshrl.u32 %v1219, 7
      %v1221 = vsub.s32 %v1218, %v1220
      %v1222 = vrot.slane %v1214, %v1221
      %v1224 = vunpack.c.l.s4 1983009808
      %v1225 = vunpack.c.0.s8 %v1224
      %v1226 = vlaneseq
      %v1227 = vshrl.u32 %v1226, 7
      %v1228 = vsub.s32 %v1225, %v1227
      %v1229 = vrot.slane %v1215, %v1228
      %v1230 = vcombine.low %v1031, %v1043
      %v1231 = vcombine.high %v1031, %v1043
      %v1233 = vunpack.c.l.s4 1983009808
      %v1234 = vunpack.c.0.s8 %v1233
      %v1235 = vlaneseq
      %v1236 = vshrl.u32 %v1235, 7
      %v1237 = vsub.s32 %v1234, %v1236
      %v1238 = vrot.slane %v1230, %v1237
      %v1240 = vunpack.c.l.s4 1983009808
      %v1241 = vunpack.c.0.s8 %v1240
      %v1242 = vlaneseq
      %v1243 = vshrl.u32 %v1242, 7
      %v1244 = vsub.s32 %v1241, %v1243
      %v1245 = vrot.slane %v1231, %v1244
      %v1246 = vcombine.low %v1190, %v1206
      %v1247 = vcombine.high %v1190, %v1206
      %v1249 = vunpack.c.l.s4 1934713408
      %v1250 = vunpack.c.0.s8 %v1249
      %v1251 = vlaneseq
      %v1252 = vshrl.u32 %v1251, 7
      %v1253 = vsub.s32 %v1250, %v1252
      %v1254 = vrot.slane %v1246, %v1253
      %v1256 = vunpack.c.l.s4 1934713408
      %v1257 = vunpack.c.0.s8 %v1256
      %v1258 = vlaneseq
      %v1259 = vshrl.u32 %v1258, 7
      %v1260 = vsub.s32 %v1257, %v1259
      %v1261 = vrot.slane %v1247, %v1260
      %v1262 = vcombine.low %v1197, %v1213
      %v1263 = vcombine.high %v1197, %v1213
      %v1265 = vunpack.c.l.s4 1934713408
      %v1266 = vunpack.c.0.s8 %v1265
      %v1267 = vlaneseq
      %v1268 = vshrl.u32 %v1267, 7
      %v1269 = vsub.s32 %v1266, %v1268
      %v1270 = vrot.slane %v1262, %v1269
      %v1272 = vunpack.c.l.s4 1934713408
      %v1273 = vunpack.c.0.s8 %v1272
      %v1274 = vlaneseq
      %v1275 = vshrl.u32 %v1274, 7
      %v1276 = vsub.s32 %v1273, %v1275
      %v1277 = vrot.slane %v1263, %v1276
      %v1278 = vcombine.low %v1222, %v1238
      %v1279 = vcombine.high %v1222, %v1238
      %v1281 = vunpack.c.l.s4 1934713408
      %v1282 = vunpack.c.0.s8 %v1281
      %v1283 = vlaneseq
      %v1284 = vshrl.u32 %v1283, 7
      %v1285 = vsub.s32 %v1282, %v1284
      %v1286 = vrot.slane %v1278, %v1285
      %v1288 = vunpack.c.l.s4 1934713408
      %v1289 = vunpack.c.0.s8 %v1288
      %v1290 = vlaneseq
      %v1291 = vshrl.u32 %v1290, 7
      %v1292 = vsub.s32 %v1289, %v1291
      %v1293 = vrot.slane %v1279, %v1292
      %v1294 = vcombine.low %v1229, %v1245
      %v1295 = vcombine.high %v1229, %v1245
      %v1297 = vunpack.c.l.s4 1934713408
      %v1298 = vunpack.c.0.s8 %v1297
      %v1299 = vlaneseq
      %v1300 = vshrl.u32 %v1299, 7
      %v1301 = vsub.s32 %v1298, %v1300
      %v1302 = vrot.slane %v1294, %v1301
      %v1304 = vunpack.c.l.s4 1934713408
      %v1305 = vunpack.c.0.s8 %v1304
      %v1306 = vlaneseq
      %v1307 = vshrl.u32 %v1306, 7
      %v1308 = vsub.s32 %v1305, %v1307
      %v1309 = vrot.slane %v1295, %v1308
      %v1310 = vcombine.low %v1254, %v1286
      %v1311 = vcombine.high %v1254, %v1286
      %v1312 = vcombine.low %v1261, %v1293
      %v1313 = vcombine.high %v1261, %v1293
      %v1314 = vcombine.low %v1270, %v1302
      %v1315 = vcombine.high %v1270, %v1302
      %v1316 = vcombine.low %v1277, %v1309
      %v1317 = vcombine.high %v1277, %v1309
      %v1320 = vpack.i.b16 %v1310, %v1174
      %v1321 = vshrl.u32 %v1174, 16
      %v1322 = vshrl.u32 %v1310, 16
      %v1323 = vpack.i.b16 %v1322, %v1321
      %v1326 = vpack.i.b16 %v1311, %v1175
      %v1327 = vshrl.u32 %v1175, 16
      %v1328 = vshrl.u32 %v1311, 16
      %v1329 = vpack.i.b16 %v1328, %v1327
      %v1332 = vpack.i.b16 %v1312, %v1176
      %v1333 = vshrl.u32 %v1176, 16
      %v1334 = vshrl.u32 %v1312, 16
      %v1335 = vpack.i.b16 %v1334, %v1333
      %v1338 = vpack.i.b16 %v1313, %v1177
      %v1339 = vshrl.u32 %v1177, 16
      %v1340 = vshrl.u32 %v1313, 16
      %v1341 = vpack.i.b16 %v1340, %v1339
      %v1344 = vpack.i.b16 %v1314, %v1178
      %v1345 = vshrl.u32 %v1178, 16
      %v1346 = vshrl.u32 %v1314, 16
      %v1347 = vpack.i.b16 %v1346, %v1345
      %v1350 = vpack.i.b16 %v1315, %v1179
      %v1351 = vshrl.u32 %v1179, 16
      %v1352 = vshrl.u32 %v1315, 16
      %v1353 = vpack.i.b16 %v1352, %v1351
      %v1356 = vpack.i.b16 %v1316, %v1180
      %v1357 = vshrl.u32 %v1180, 16
      %v1358 = vshrl.u32 %v1316, 16
      %v1359 = vpack.i.b16 %v1358, %v1357
      %v1362 = vpack.i.b16 %v1317, %v1181
      %v1363 = vshrl.u32 %v1181, 16
      %v1364 = vshrl.u32 %v1317, 16
      %v1365 = vpack.i.b16 %v1364, %v1363
      %1366 = vrot.lane.b32.xlu0 %v1323, 16
      %v1367 = vpop.permute.xlu0 %1366
      %1368 = vrot.lane.b32.xlu0 %v1326, 32
      %v1369 = vpop.permute.xlu0 %1368
      %1370 = vrot.lane.b32.xlu0 %v1329, 48
      %v1371 = vpop.permute.xlu0 %1370
      %1372 = vrot.lane.b32.xlu0 %v1332, 64
      %v1373 = vpop.permute.xlu0 %1372
      %1374 = vrot.lane.b32.xlu0 %v1335, 80
      %v1375 = vpop.permute.xlu0 %1374
      %1376 = vrot.lane.b32.xlu0 %v1338, 96
      %v1377 = vpop.permute.xlu0 %1376
      %1378 = vrot.lane.b32.xlu0 %v1341, 112
      %v1379 = vpop.permute.xlu0 %1378
      %1380 = vrot.lane.b32.xlu0 %v1347, 16
      %v1381 = vpop.permute.xlu0 %1380
      %1382 = vrot.lane.b32.xlu0 %v1350, 32
      %v1383 = vpop.permute.xlu0 %1382
      %1384 = vrot.lane.b32.xlu0 %v1353, 48
      %v1385 = vpop.permute.xlu0 %1384
      %1386 = vrot.lane.b32.xlu0 %v1356, 64
      %v1387 = vpop.permute.xlu0 %1386
      %1388 = vrot.lane.b32.xlu0 %v1359, 80
      %v1389 = vpop.permute.xlu0 %1388
      %1390 = vrot.lane.b32.xlu0 %v1362, 96
      %v1391 = vpop.permute.xlu0 %1390
      %1392 = vrot.lane.b32.xlu0 %v1365, 112
      %v1393 = vpop.permute.xlu0 %1392
      %vm1394 = vcmask 130048
      %v1397 = vsel %vm1394, %v1320, %v1367
      %vm1398 = vcmask 261120
      %v1400 = vsel %vm1398, %v1397, %v1369
      %vm1401 = vcmask 392192
      %v1403 = vsel %vm1401, %v1400, %v1371
      %vm1404 = vcmask 523264
      %v1406 = vsel %vm1404, %v1403, %v1373
      %vm1407 = vcmask 654336
      %v1409 = vsel %vm1407, %v1406, %v1375
      %vm1410 = vcmask 785408
      %v1412 = vsel %vm1410, %v1409, %v1377
      %vm1413 = vcmask 916480
      %v1415 = vsel %vm1413, %v1412, %v1379
      %v1419 = vsel %vm1394, %v1344, %v1381
      %v1421 = vsel %vm1398, %v1419, %v1383
      %v1423 = vsel %vm1401, %v1421, %v1385
      %v1425 = vsel %vm1404, %v1423, %v1387
      %v1427 = vsel %vm1407, %v1425, %v1389
      %v1429 = vsel %vm1410, %v1427, %v1391
      %v1431 = vsel %vm1413, %v1429, %v1393
      %v1433 = vld [vmem:[%s3] sm:$0xf]
      %v1434 = vld [vmem:[%s3 + $0x4] sm:$0xf]
      %1451 = vrot.lane.b32.xlu0 %v998, 127
      %v1452 = vpop.permute.xlu0 %1451
      %1453 = vrot.lane.b32.xlu0 %v1001, 127
      %v1454 = vpop.permute.xlu0 %1453
      %1455 = vrot.lane.b32.xlu0 %v1004, 127
      %v1456 = vpop.permute.xlu0 %1455
      %1457 = vrot.lane.b32.xlu0 %v1007, 127
      %v1458 = vpop.permute.xlu0 %1457
      %1459 = vrot.lane.b32.xlu0 %v1010, 127
      %v1460 = vpop.permute.xlu0 %1459
      %1461 = vrot.lane.b32.xlu0 %v1013, 127
      %v1462 = vpop.permute.xlu0 %1461
      %1463 = vrot.lane.b32.xlu0 %v1016, 127
      %v1464 = vpop.permute.xlu0 %1463
      %1465 = vrot.lane.b32.xlu0 %v1019, 127
      %v1466 = vpop.permute.xlu0 %1465
      %1467 = vrot.lane.b32.xlu0 %v1022, 127
      %v1468 = vpop.permute.xlu0 %1467
      %1469 = vrot.lane.b32.xlu0 %v1025, 127
      %v1470 = vpop.permute.xlu0 %1469
      %1471 = vrot.lane.b32.xlu0 %v1028, 127
      %v1472 = vpop.permute.xlu0 %1471
      %1473 = vrot.lane.b32.xlu0 %v1031, 127
      %v1474 = vpop.permute.xlu0 %1473
      %1475 = vrot.lane.b32.xlu0 %v1034, 127
      %v1476 = vpop.permute.xlu0 %1475
      %1477 = vrot.lane.b32.xlu0 %v1037, 127
      %v1478 = vpop.permute.xlu0 %1477
      %1479 = vrot.lane.b32.xlu0 %v1040, 127
      %v1480 = vpop.permute.xlu0 %1479
      %1481 = vrot.lane.b32.xlu0 %v1043, 127
      %v1482 = vpop.permute.xlu0 %1481
      %v1499 = vcombine.low %v1452, %v1460
      %v1500 = vcombine.high %v1452, %v1460
      %v1502 = vunpack.c.l.s4 1983009808
      %v1503 = vunpack.c.0.s8 %v1502
      %v1504 = vlaneseq
      %v1505 = vshrl.u32 %v1504, 7
      %v1506 = vsub.s32 %v1503, %v1505
      %v1507 = vrot.slane %v1499, %v1506
      %v1509 = vunpack.c.l.s4 1983009808
      %v1510 = vunpack.c.0.s8 %v1509
      %v1511 = vlaneseq
      %v1512 = vshrl.u32 %v1511, 7
      %v1513 = vsub.s32 %v1510, %v1512
      %v1514 = vrot.slane %v1500, %v1513
      %v1515 = vcombine.low %v1456, %v1464
      %v1516 = vcombine.high %v1456, %v1464
      %v1518 = vunpack.c.l.s4 1983009808
      %v1519 = vunpack.c.0.s8 %v1518
      %v1520 = vlaneseq
      %v1521 = vshrl.u32 %v1520, 7
      %v1522 = vsub.s32 %v1519, %v1521
      %v1523 = vrot.slane %v1515, %v1522
      %v1525 = vunpack.c.l.s4 1983009808
      %v1526 = vunpack.c.0.s8 %v1525
      %v1527 = vlaneseq
      %v1528 = vshrl.u32 %v1527, 7
      %v1529 = vsub.s32 %v1526, %v1528
      %v1530 = vrot.slane %v1516, %v1529
      %v1531 = vcombine.low %v1468, %v1476
      %v1532 = vcombine.high %v1468, %v1476
      %v1534 = vunpack.c.l.s4 1983009808
      %v1535 = vunpack.c.0.s8 %v1534
      %v1536 = vlaneseq
      %v1537 = vshrl.u32 %v1536, 7
      %v1538 = vsub.s32 %v1535, %v1537
      %v1539 = vrot.slane %v1531, %v1538
      %v1541 = vunpack.c.l.s4 1983009808
      %v1542 = vunpack.c.0.s8 %v1541
      %v1543 = vlaneseq
      %v1544 = vshrl.u32 %v1543, 7
      %v1545 = vsub.s32 %v1542, %v1544
      %v1546 = vrot.slane %v1532, %v1545
      %v1547 = vcombine.low %v1472, %v1480
      %v1548 = vcombine.high %v1472, %v1480
      %v1550 = vunpack.c.l.s4 1983009808
      %v1551 = vunpack.c.0.s8 %v1550
      %v1552 = vlaneseq
      %v1553 = vshrl.u32 %v1552, 7
      %v1554 = vsub.s32 %v1551, %v1553
      %v1555 = vrot.slane %v1547, %v1554
      %v1557 = vunpack.c.l.s4 1983009808
      %v1558 = vunpack.c.0.s8 %v1557
      %v1559 = vlaneseq
      %v1560 = vshrl.u32 %v1559, 7
      %v1561 = vsub.s32 %v1558, %v1560
      %v1562 = vrot.slane %v1548, %v1561
      %v1563 = vcombine.low %v1507, %v1523
      %v1564 = vcombine.high %v1507, %v1523
      %v1566 = vunpack.c.l.s4 1934713408
      %v1567 = vunpack.c.0.s8 %v1566
      %v1568 = vlaneseq
      %v1569 = vshrl.u32 %v1568, 7
      %v1570 = vsub.s32 %v1567, %v1569
      %v1571 = vrot.slane %v1563, %v1570
      %v1573 = vunpack.c.l.s4 1934713408
      %v1574 = vunpack.c.0.s8 %v1573
      %v1575 = vlaneseq
      %v1576 = vshrl.u32 %v1575, 7
      %v1577 = vsub.s32 %v1574, %v1576
      %v1578 = vrot.slane %v1564, %v1577
      %v1579 = vcombine.low %v1514, %v1530
      %v1580 = vcombine.high %v1514, %v1530
      %v1582 = vunpack.c.l.s4 1934713408
      %v1583 = vunpack.c.0.s8 %v1582
      %v1584 = vlaneseq
      %v1585 = vshrl.u32 %v1584, 7
      %v1586 = vsub.s32 %v1583, %v1585
      %v1587 = vrot.slane %v1579, %v1586
      %v1589 = vunpack.c.l.s4 1934713408
      %v1590 = vunpack.c.0.s8 %v1589
      %v1591 = vlaneseq
      %v1592 = vshrl.u32 %v1591, 7
      %v1593 = vsub.s32 %v1590, %v1592
      %v1594 = vrot.slane %v1580, %v1593
      %v1595 = vcombine.low %v1539, %v1555
      %v1596 = vcombine.high %v1539, %v1555
      %v1598 = vunpack.c.l.s4 1934713408
      %v1599 = vunpack.c.0.s8 %v1598
      %v1600 = vlaneseq
      %v1601 = vshrl.u32 %v1600, 7
      %v1602 = vsub.s32 %v1599, %v1601
      %v1603 = vrot.slane %v1595, %v1602
      %v1605 = vunpack.c.l.s4 1934713408
      %v1606 = vunpack.c.0.s8 %v1605
      %v1607 = vlaneseq
      %v1608 = vshrl.u32 %v1607, 7
      %v1609 = vsub.s32 %v1606, %v1608
      %v1610 = vrot.slane %v1596, %v1609
      %v1611 = vcombine.low %v1546, %v1562
      %v1612 = vcombine.high %v1546, %v1562
      %v1614 = vunpack.c.l.s4 1934713408
      %v1615 = vunpack.c.0.s8 %v1614
      %v1616 = vlaneseq
      %v1617 = vshrl.u32 %v1616, 7
      %v1618 = vsub.s32 %v1615, %v1617
      %v1619 = vrot.slane %v1611, %v1618
      %v1621 = vunpack.c.l.s4 1934713408
      %v1622 = vunpack.c.0.s8 %v1621
      %v1623 = vlaneseq
      %v1624 = vshrl.u32 %v1623, 7
      %v1625 = vsub.s32 %v1622, %v1624
      %v1626 = vrot.slane %v1612, %v1625
      %v1627 = vcombine.low %v1571, %v1603
      %v1628 = vcombine.high %v1571, %v1603
      %v1629 = vcombine.low %v1578, %v1610
      %v1630 = vcombine.high %v1578, %v1610
      %v1631 = vcombine.low %v1587, %v1619
      %v1632 = vcombine.high %v1587, %v1619
      %v1633 = vcombine.low %v1594, %v1626
      %v1634 = vcombine.high %v1594, %v1626
      %v1635 = vcombine.low %v1454, %v1462
      %v1636 = vcombine.high %v1454, %v1462
      %v1638 = vunpack.c.l.s4 1983009808
      %v1639 = vunpack.c.0.s8 %v1638
      %v1640 = vlaneseq
      %v1641 = vshrl.u32 %v1640, 7
      %v1642 = vsub.s32 %v1639, %v1641
      %v1643 = vrot.slane %v1635, %v1642
      %v1645 = vunpack.c.l.s4 1983009808
      %v1646 = vunpack.c.0.s8 %v1645
      %v1647 = vlaneseq
      %v1648 = vshrl.u32 %v1647, 7
      %v1649 = vsub.s32 %v1646, %v1648
      %v1650 = vrot.slane %v1636, %v1649
      %v1651 = vcombine.low %v1458, %v1466
      %v1652 = vcombine.high %v1458, %v1466
      %v1654 = vunpack.c.l.s4 1983009808
      %v1655 = vunpack.c.0.s8 %v1654
      %v1656 = vlaneseq
      %v1657 = vshrl.u32 %v1656, 7
      %v1658 = vsub.s32 %v1655, %v1657
      %v1659 = vrot.slane %v1651, %v1658
      %v1661 = vunpack.c.l.s4 1983009808
      %v1662 = vunpack.c.0.s8 %v1661
      %v1663 = vlaneseq
      %v1664 = vshrl.u32 %v1663, 7
      %v1665 = vsub.s32 %v1662, %v1664
      %v1666 = vrot.slane %v1652, %v1665
      %v1667 = vcombine.low %v1470, %v1478
      %v1668 = vcombine.high %v1470, %v1478
      %v1670 = vunpack.c.l.s4 1983009808
      %v1671 = vunpack.c.0.s8 %v1670
      %v1672 = vlaneseq
      %v1673 = vshrl.u32 %v1672, 7
      %v1674 = vsub.s32 %v1671, %v1673
      %v1675 = vrot.slane %v1667, %v1674
      %v1677 = vunpack.c.l.s4 1983009808
      %v1678 = vunpack.c.0.s8 %v1677
      %v1679 = vlaneseq
      %v1680 = vshrl.u32 %v1679, 7
      %v1681 = vsub.s32 %v1678, %v1680
      %v1682 = vrot.slane %v1668, %v1681
      %v1683 = vcombine.low %v1474, %v1482
      %v1684 = vcombine.high %v1474, %v1482
      %v1686 = vunpack.c.l.s4 1983009808
      %v1687 = vunpack.c.0.s8 %v1686
      %v1688 = vlaneseq
      %v1689 = vshrl.u32 %v1688, 7
      %v1690 = vsub.s32 %v1687, %v1689
      %v1691 = vrot.slane %v1683, %v1690
      %v1693 = vunpack.c.l.s4 1983009808
      %v1694 = vunpack.c.0.s8 %v1693
      %v1695 = vlaneseq
      %v1696 = vshrl.u32 %v1695, 7
      %v1697 = vsub.s32 %v1694, %v1696
      %v1698 = vrot.slane %v1684, %v1697
      %v1699 = vcombine.low %v1643, %v1659
      %v1700 = vcombine.high %v1643, %v1659
      %v1702 = vunpack.c.l.s4 1934713408
      %v1703 = vunpack.c.0.s8 %v1702
      %v1704 = vlaneseq
      %v1705 = vshrl.u32 %v1704, 7
      %v1706 = vsub.s32 %v1703, %v1705
      %v1707 = vrot.slane %v1699, %v1706
      %v1709 = vunpack.c.l.s4 1934713408
      %v1710 = vunpack.c.0.s8 %v1709
      %v1711 = vlaneseq
      %v1712 = vshrl.u32 %v1711, 7
      %v1713 = vsub.s32 %v1710, %v1712
      %v1714 = vrot.slane %v1700, %v1713
      %v1715 = vcombine.low %v1650, %v1666
      %v1716 = vcombine.high %v1650, %v1666
      %v1718 = vunpack.c.l.s4 1934713408
      %v1719 = vunpack.c.0.s8 %v1718
      %v1720 = vlaneseq
      %v1721 = vshrl.u32 %v1720, 7
      %v1722 = vsub.s32 %v1719, %v1721
      %v1723 = vrot.slane %v1715, %v1722
      %v1725 = vunpack.c.l.s4 1934713408
      %v1726 = vunpack.c.0.s8 %v1725
      %v1727 = vlaneseq
      %v1728 = vshrl.u32 %v1727, 7
      %v1729 = vsub.s32 %v1726, %v1728
      %v1730 = vrot.slane %v1716, %v1729
      %v1731 = vcombine.low %v1675, %v1691
      %v1732 = vcombine.high %v1675, %v1691
      %v1734 = vunpack.c.l.s4 1934713408
      %v1735 = vunpack.c.0.s8 %v1734
      %v1736 = vlaneseq
      %v1737 = vshrl.u32 %v1736, 7
      %v1738 = vsub.s32 %v1735, %v1737
      %v1739 = vrot.slane %v1731, %v1738
      %v1741 = vunpack.c.l.s4 1934713408
      %v1742 = vunpack.c.0.s8 %v1741
      %v1743 = vlaneseq
      %v1744 = vshrl.u32 %v1743, 7
      %v1745 = vsub.s32 %v1742, %v1744
      %v1746 = vrot.slane %v1732, %v1745
      %v1747 = vcombine.low %v1682, %v1698
      %v1748 = vcombine.high %v1682, %v1698
      %v1750 = vunpack.c.l.s4 1934713408
      %v1751 = vunpack.c.0.s8 %v1750
      %v1752 = vlaneseq
      %v1753 = vshrl.u32 %v1752, 7
      %v1754 = vsub.s32 %v1751, %v1753
      %v1755 = vrot.slane %v1747, %v1754
      %v1757 = vunpack.c.l.s4 1934713408
      %v1758 = vunpack.c.0.s8 %v1757
      %v1759 = vlaneseq
      %v1760 = vshrl.u32 %v1759, 7
      %v1761 = vsub.s32 %v1758, %v1760
      %v1762 = vrot.slane %v1748, %v1761
      %v1763 = vcombine.low %v1707, %v1739
      %v1764 = vcombine.high %v1707, %v1739
      %v1765 = vcombine.low %v1714, %v1746
      %v1766 = vcombine.high %v1714, %v1746
      %v1767 = vcombine.low %v1723, %v1755
      %v1768 = vcombine.high %v1723, %v1755
      %v1769 = vcombine.low %v1730, %v1762
      %v1770 = vcombine.high %v1730, %v1762
      %v1773 = vpack.i.b16 %v1763, %v1627
      %v1774 = vshrl.u32 %v1627, 16
      %v1775 = vshrl.u32 %v1763, 16
      %v1776 = vpack.i.b16 %v1775, %v1774
      %v1779 = vpack.i.b16 %v1764, %v1628
      %v1780 = vshrl.u32 %v1628, 16
      %v1781 = vshrl.u32 %v1764, 16
      %v1782 = vpack.i.b16 %v1781, %v1780
      %v1785 = vpack.i.b16 %v1765, %v1629
      %v1786 = vshrl.u32 %v1629, 16
      %v1787 = vshrl.u32 %v1765, 16
      %v1788 = vpack.i.b16 %v1787, %v1786
      %v1791 = vpack.i.b16 %v1766, %v1630
      %v1792 = vshrl.u32 %v1630, 16
      %v1793 = vshrl.u32 %v1766, 16
      %v1794 = vpack.i.b16 %v1793, %v1792
      %v1797 = vpack.i.b16 %v1767, %v1631
      %v1798 = vshrl.u32 %v1631, 16
      %v1799 = vshrl.u32 %v1767, 16
      %v1800 = vpack.i.b16 %v1799, %v1798
      %v1803 = vpack.i.b16 %v1768, %v1632
      %v1804 = vshrl.u32 %v1632, 16
      %v1805 = vshrl.u32 %v1768, 16
      %v1806 = vpack.i.b16 %v1805, %v1804
      %v1809 = vpack.i.b16 %v1769, %v1633
      %v1810 = vshrl.u32 %v1633, 16
      %v1811 = vshrl.u32 %v1769, 16
      %v1812 = vpack.i.b16 %v1811, %v1810
      %v1815 = vpack.i.b16 %v1770, %v1634
      %v1816 = vshrl.u32 %v1634, 16
      %v1817 = vshrl.u32 %v1770, 16
      %v1818 = vpack.i.b16 %v1817, %v1816
      %1819 = vrot.lane.b32.xlu0 %v1776, 16
      %v1820 = vpop.permute.xlu0 %1819
      %1821 = vrot.lane.b32.xlu0 %v1779, 32
      %v1822 = vpop.permute.xlu0 %1821
      %1823 = vrot.lane.b32.xlu0 %v1782, 48
      %v1824 = vpop.permute.xlu0 %1823
      %1825 = vrot.lane.b32.xlu0 %v1785, 64
      %v1826 = vpop.permute.xlu0 %1825
      %1827 = vrot.lane.b32.xlu0 %v1788, 80
      %v1828 = vpop.permute.xlu0 %1827
      %1829 = vrot.lane.b32.xlu0 %v1791, 96
      %v1830 = vpop.permute.xlu0 %1829
      %1831 = vrot.lane.b32.xlu0 %v1794, 112
      %v1832 = vpop.permute.xlu0 %1831
      %1833 = vrot.lane.b32.xlu0 %v1800, 16
      %v1834 = vpop.permute.xlu0 %1833
      %1835 = vrot.lane.b32.xlu0 %v1803, 32
      %v1836 = vpop.permute.xlu0 %1835
      %1837 = vrot.lane.b32.xlu0 %v1806, 48
      %v1838 = vpop.permute.xlu0 %1837
      %1839 = vrot.lane.b32.xlu0 %v1809, 64
      %v1840 = vpop.permute.xlu0 %1839
      %1841 = vrot.lane.b32.xlu0 %v1812, 80
      %v1842 = vpop.permute.xlu0 %1841
      %1843 = vrot.lane.b32.xlu0 %v1815, 96
      %v1844 = vpop.permute.xlu0 %1843
      %1845 = vrot.lane.b32.xlu0 %v1818, 112
      %v1846 = vpop.permute.xlu0 %1845
      %v1849 = vsel %vm1394, %v1773, %v1820
      %v1851 = vsel %vm1398, %v1849, %v1822
      %v1853 = vsel %vm1401, %v1851, %v1824
      %v1855 = vsel %vm1404, %v1853, %v1826
      %v1857 = vsel %vm1407, %v1855, %v1828
      %v1859 = vsel %vm1410, %v1857, %v1830
      %v1861 = vsel %vm1413, %v1859, %v1832
      %v1865 = vsel %vm1394, %v1797, %v1834
      %v1867 = vsel %vm1398, %v1865, %v1836
      %v1869 = vsel %vm1401, %v1867, %v1838
      %v1871 = vsel %vm1404, %v1869, %v1840
      %v1873 = vsel %vm1407, %v1871, %v1842
      %v1875 = vsel %vm1410, %v1873, %v1844
      %v1877 = vsel %vm1413, %v1875, %v1846
      %s1879 = scalar_lea.vmem %s3, 8
      %v1880 = vld [vmem:[%s1879] sm:$0xf]
      %v1881 = vld [vmem:[%s1879 + $0x4] sm:$0xf]
      %v1884 = vunpack.c.l.b16 %v1880
      %v1885 = vunpack.c.l.b16 %v1881
      %v1886 = vpack.c.b16 %v1885, %v1884
      %v1888 = vsel %vm1394, %v1886, 0
      %1890 = vmatprep.subr.bf16.mxu0 %v1877
      %1891 = vmatpush1.bf16.msra.mxu0 %v1861
      %1892 = vmatprep.subr.bf16.mxu0 0
      %1893 = vmatpush1.bf16.msra.mxu0 0
      %1894 = vmatprep.subr.bf16.mxu0 0
      %1895 = vmatpush1.bf16.msra.mxu0 0
      %1896 = vmatprep.subr.bf16.mxu0 0
      %1897 = vmatpush1.bf16.msra.mxu0 0
      %1898 = vmatprep.subr.bf16.mxu0 0
      %1899 = vmatpush1.bf16.msra.mxu0 0
      %1900 = vmatprep.subr.bf16.mxu0 0
      %1901 = vmatpush1.bf16.msra.mxu0 0
      %1902 = vmatprep.subr.bf16.mxu0 0
      %1903 = vmatpush1.bf16.msra.mxu0 0
      %1904 = vmatprep.subr.bf16.mxu0 0
      %1905 = vmatpush1.bf16.msra.mxu0 0
      %1906 = vmatprep.subr.bf16.mxu0 0
      %1907 = vmatpush1.bf16.msra.mxu0 0
      %1908 = vmatprep.subr.bf16.mxu0 0
      %1909 = vmatpush1.bf16.msra.mxu0 0
      %1910 = vmatprep.subr.bf16.mxu0 0
      %1911 = vmatpush1.bf16.msra.mxu0 0
      %1912 = vmatprep.subr.bf16.mxu0 0
      %1913 = vmatpush1.bf16.msra.mxu0 0
      %1914 = vmatprep.subr.bf16.mxu0 0
      %1915 = vmatpush1.bf16.msra.mxu0 0
      %1916 = vmatprep.subr.bf16.mxu0 0
      %1917 = vmatpush1.bf16.msra.mxu0 0
      %1918 = vmatprep.subr.bf16.mxu0 0
      %1919 = vmatpush1.bf16.msra.mxu0 0
      %1920 = vmatprep.subr.bf16.mxu0 0
      %1921 = vmatpush1.bf16.msra.mxu0 0
      %1922 = vmatprep.mubr.bf16.mxu0 0
      %1923 = vmatmul.mubr.bf16.gmra.mrb[0].mxu0 %v1888
      %v1924 = vpop.f32.mrb[0].mxu0
      %v1925 = vadd.f32 0.0, %v1924
      %v1926 = vpop.f32.mrb[0].mxu0
      %v1927 = vadd.f32 0.0, %v1926
      %v1928 = vpop.f32.mrb[0].mxu0
      %v1929 = vadd.f32 0.0, %v1928
      %v1930 = vpop.f32.mrb[0].mxu0
      %v1931 = vadd.f32 0.0, %v1930
      %1932 = vdwg.mxu0
      %v1935 = vunpack.c.l.b16 %v1433
      %v1936 = vunpack.c.l.b16 %v1434
      %v1937 = vpack.c.b16 %v1936, %v1935
      %v1939 = vsel %vm1394, %v1937, 0
      %1941 = vmatprep.subr.bf16.mxu0 %v1431
      %1942 = vmatpush1.bf16.msra.mxu0 %v1415
      %1943 = vmatprep.subr.bf16.mxu0 0
      %1944 = vmatpush1.bf16.msra.mxu0 0
      %1945 = vmatprep.subr.bf16.mxu0 0
      %1946 = vmatpush1.bf16.msra.mxu0 0
      %1947 = vmatprep.subr.bf16.mxu0 0
      %1948 = vmatpush1.bf16.msra.mxu0 0
      %1949 = vmatprep.subr.bf16.mxu0 0
      %1950 = vmatpush1.bf16.msra.mxu0 0
      %1951 = vmatprep.subr.bf16.mxu0 0
      %1952 = vmatpush1.bf16.msra.mxu0 0
      %1953 = vmatprep.subr.bf16.mxu0 0
      %1954 = vmatpush1.bf16.msra.mxu0 0
      %1955 = vmatprep.subr.bf16.mxu0 0
      %1956 = vmatpush1.bf16.msra.mxu0 0
      %1957 = vmatprep.subr.bf16.mxu0 0
      %1958 = vmatpush1.bf16.msra.mxu0 0
      %1959 = vmatprep.subr.bf16.mxu0 0
      %1960 = vmatpush1.bf16.msra.mxu0 0
      %1961 = vmatprep.subr.bf16.mxu0 0
      %1962 = vmatpush1.bf16.msra.mxu0 0
      %1963 = vmatprep.subr.bf16.mxu0 0
      %1964 = vmatpush1.bf16.msra.mxu0 0
      %1965 = vmatprep.subr.bf16.mxu0 0
      %1966 = vmatpush1.bf16.msra.mxu0 0
      %1967 = vmatprep.subr.bf16.mxu0 0
      %1968 = vmatpush1.bf16.msra.mxu0 0
      %1969 = vmatprep.subr.bf16.mxu0 0
      %1970 = vmatpush1.bf16.msra.mxu0 0
      %1971 = vmatprep.subr.bf16.mxu0 0
      %1972 = vmatpush1.bf16.msra.mxu0 0
      %1973 = vmatprep.mubr.bf16.mxu0 0
      %1974 = vmatmul.mubr.bf16.gmra.mrb[0].mxu0 %v1939
      %v1975 = vpop.f32.mrb[0].mxu0
      %v1976 = vadd.f32 %v1925, %v1975
      %v1977 = vpop.f32.mrb[0].mxu0
      %v1978 = vadd.f32 %v1927, %v1977
      %v1979 = vpop.f32.mrb[0].mxu0
      %v1980 = vadd.f32 %v1929, %v1979
      %v1981 = vpop.f32.mrb[0].mxu0
      %v1982 = vadd.f32 %v1931, %v1981
      %1983 = vdwg.mxu0
      %1984 = vrot.lane.b32.xlu0 %v998, 126
      %v1985 = vpop.permute.xlu0 %1984
      %1986 = vrot.lane.b32.xlu0 %v1001, 126
      %v1987 = vpop.permute.xlu0 %1986
      %1988 = vrot.lane.b32.xlu0 %v1004, 126
      %v1989 = vpop.permute.xlu0 %1988
      %1990 = vrot.lane.b32.xlu0 %v1007, 126
      %v1991 = vpop.permute.xlu0 %1990
      %1992 = vrot.lane.b32.xlu0 %v1010, 126
      %v1993 = vpop.permute.xlu0 %1992
      %1994 = vrot.lane.b32.xlu0 %v1013, 126
      %v1995 = vpop.permute.xlu0 %1994
      %1996 = vrot.lane.b32.xlu0 %v1016, 126
      %v1997 = vpop.permute.xlu0 %1996
      %1998 = vrot.lane.b32.xlu0 %v1019, 126
      %v1999 = vpop.permute.xlu0 %1998
      %2000 = vrot.lane.b32.xlu0 %v1022, 126
      %v2001 = vpop.permute.xlu0 %2000
      %2002 = vrot.lane.b32.xlu0 %v1025, 126
      %v2003 = vpop.permute.xlu0 %2002
      %2004 = vrot.lane.b32.xlu0 %v1028, 126
      %v2005 = vpop.permute.xlu0 %2004
      %2006 = vrot.lane.b32.xlu0 %v1031, 126
      %v2007 = vpop.permute.xlu0 %2006
      %2008 = vrot.lane.b32.xlu0 %v1034, 126
      %v2009 = vpop.permute.xlu0 %2008
      %2010 = vrot.lane.b32.xlu0 %v1037, 126
      %v2011 = vpop.permute.xlu0 %2010
      %2012 = vrot.lane.b32.xlu0 %v1040, 126
      %v2013 = vpop.permute.xlu0 %2012
      %2014 = vrot.lane.b32.xlu0 %v1043, 126
      %v2015 = vpop.permute.xlu0 %2014
      %v2032 = vcombine.low %v1985, %v1993
      %v2033 = vcombine.high %v1985, %v1993
      %v2035 = vunpack.c.l.s4 1983009808
      %v2036 = vunpack.c.0.s8 %v2035
      %v2037 = vlaneseq
      %v2038 = vshrl.u32 %v2037, 7
      %v2039 = vsub.s32 %v2036, %v2038
      %v2040 = vrot.slane %v2032, %v2039
      %v2042 = vunpack.c.l.s4 1983009808
      %v2043 = vunpack.c.0.s8 %v2042
      %v2044 = vlaneseq
      %v2045 = vshrl.u32 %v2044, 7
      %v2046 = vsub.s32 %v2043, %v2045
      %v2047 = vrot.slane %v2033, %v2046
      %v2048 = vcombine.low %v1989, %v1997
      %v2049 = vcombine.high %v1989, %v1997
      %v2051 = vunpack.c.l.s4 1983009808
      %v2052 = vunpack.c.0.s8 %v2051
      %v2053 = vlaneseq
      %v2054 = vshrl.u32 %v2053, 7
      %v2055 = vsub.s32 %v2052, %v2054
      %v2056 = vrot.slane %v2048, %v2055
      %v2058 = vunpack.c.l.s4 1983009808
      %v2059 = vunpack.c.0.s8 %v2058
      %v2060 = vlaneseq
      %v2061 = vshrl.u32 %v2060, 7
      %v2062 = vsub.s32 %v2059, %v2061
      %v2063 = vrot.slane %v2049, %v2062
      %v2064 = vcombine.low %v2001, %v2009
      %v2065 = vcombine.high %v2001, %v2009
      %v2067 = vunpack.c.l.s4 1983009808
      %v2068 = vunpack.c.0.s8 %v2067
      %v2069 = vlaneseq
      %v2070 = vshrl.u32 %v2069, 7
      %v2071 = vsub.s32 %v2068, %v2070
      %v2072 = vrot.slane %v2064, %v2071
      %v2074 = vunpack.c.l.s4 1983009808
      %v2075 = vunpack.c.0.s8 %v2074
      %v2076 = vlaneseq
      %v2077 = vshrl.u32 %v2076, 7
      %v2078 = vsub.s32 %v2075, %v2077
      %v2079 = vrot.slane %v2065, %v2078
      %v2080 = vcombine.low %v2005, %v2013
      %v2081 = vcombine.high %v2005, %v2013
      %v2083 = vunpack.c.l.s4 1983009808
      %v2084 = vunpack.c.0.s8 %v2083
      %v2085 = vlaneseq
      %v2086 = vshrl.u32 %v2085, 7
      %v2087 = vsub.s32 %v2084, %v2086
      %v2088 = vrot.slane %v2080, %v2087
      %v2090 = vunpack.c.l.s4 1983009808
      %v2091 = vunpack.c.0.s8 %v2090
      %v2092 = vlaneseq
      %v2093 = vshrl.u32 %v2092, 7
      %v2094 = vsub.s32 %v2091, %v2093
      %v2095 = vrot.slane %v2081, %v2094
      %v2096 = vcombine.low %v2040, %v2056
      %v2097 = vcombine.high %v2040, %v2056
      %v2099 = vunpack.c.l.s4 1934713408
      %v2100 = vunpack.c.0.s8 %v2099
      %v2101 = vlaneseq
      %v2102 = vshrl.u32 %v2101, 7
      %v2103 = vsub.s32 %v2100, %v2102
      %v2104 = vrot.slane %v2096, %v2103
      %v2106 = vunpack.c.l.s4 1934713408
      %v2107 = vunpack.c.0.s8 %v2106
      %v2108 = vlaneseq
      %v2109 = vshrl.u32 %v2108, 7
      %v2110 = vsub.s32 %v2107, %v2109
      %v2111 = vrot.slane %v2097, %v2110
      %v2112 = vcombine.low %v2047, %v2063
      %v2113 = vcombine.high %v2047, %v2063
      %v2115 = vunpack.c.l.s4 1934713408
      %v2116 = vunpack.c.0.s8 %v2115
      %v2117 = vlaneseq
      %v2118 = vshrl.u32 %v2117, 7
      %v2119 = vsub.s32 %v2116, %v2118
      %v2120 = vrot.slane %v2112, %v2119
      %v2122 = vunpack.c.l.s4 1934713408
      %v2123 = vunpack.c.0.s8 %v2122
      %v2124 = vlaneseq
      %v2125 = vshrl.u32 %v2124, 7
      %v2126 = vsub.s32 %v2123, %v2125
      %v2127 = vrot.slane %v2113, %v2126
      %v2128 = vcombine.low %v2072, %v2088
      %v2129 = vcombine.high %v2072, %v2088
      %v2131 = vunpack.c.l.s4 1934713408
      %v2132 = vunpack.c.0.s8 %v2131
      %v2133 = vlaneseq
      %v2134 = vshrl.u32 %v2133, 7
      %v2135 = vsub.s32 %v2132, %v2134
      %v2136 = vrot.slane %v2128, %v2135
      %v2138 = vunpack.c.l.s4 1934713408
      %v2139 = vunpack.c.0.s8 %v2138
      %v2140 = vlaneseq
      %v2141 = vshrl.u32 %v2140, 7
      %v2142 = vsub.s32 %v2139, %v2141
      %v2143 = vrot.slane %v2129, %v2142
      %v2144 = vcombine.low %v2079, %v2095
      %v2145 = vcombine.high %v2079, %v2095
      %v2147 = vunpack.c.l.s4 1934713408
      %v2148 = vunpack.c.0.s8 %v2147
      %v2149 = vlaneseq
      %v2150 = vshrl.u32 %v2149, 7
      %v2151 = vsub.s32 %v2148, %v2150
      %v2152 = vrot.slane %v2144, %v2151
      %v2154 = vunpack.c.l.s4 1934713408
      %v2155 = vunpack.c.0.s8 %v2154
      %v2156 = vlaneseq
      %v2157 = vshrl.u32 %v2156, 7
      %v2158 = vsub.s32 %v2155, %v2157
      %v2159 = vrot.slane %v2145, %v2158
      %v2160 = vcombine.low %v2104, %v2136
      %v2161 = vcombine.high %v2104, %v2136
      %v2162 = vcombine.low %v2111, %v2143
      %v2163 = vcombine.high %v2111, %v2143
      %v2164 = vcombine.low %v2120, %v2152
      %v2165 = vcombine.high %v2120, %v2152
      %v2166 = vcombine.low %v2127, %v2159
      %v2167 = vcombine.high %v2127, %v2159
      %v2168 = vcombine.low %v1987, %v1995
      %v2169 = vcombine.high %v1987, %v1995
      %v2171 = vunpack.c.l.s4 1983009808
      %v2172 = vunpack.c.0.s8 %v2171
      %v2173 = vlaneseq
      %v2174 = vshrl.u32 %v2173, 7
      %v2175 = vsub.s32 %v2172, %v2174
      %v2176 = vrot.slane %v2168, %v2175
      %v2178 = vunpack.c.l.s4 1983009808
      %v2179 = vunpack.c.0.s8 %v2178
      %v2180 = vlaneseq
      %v2181 = vshrl.u32 %v2180, 7
      %v2182 = vsub.s32 %v2179, %v2181
      %v2183 = vrot.slane %v2169, %v2182
      %v2184 = vcombine.low %v1991, %v1999
      %v2185 = vcombine.high %v1991, %v1999
      %v2187 = vunpack.c.l.s4 1983009808
      %v2188 = vunpack.c.0.s8 %v2187
      %v2189 = vlaneseq
      %v2190 = vshrl.u32 %v2189, 7
      %v2191 = vsub.s32 %v2188, %v2190
      %v2192 = vrot.slane %v2184, %v2191
      %v2194 = vunpack.c.l.s4 1983009808
      %v2195 = vunpack.c.0.s8 %v2194
      %v2196 = vlaneseq
      %v2197 = vshrl.u32 %v2196, 7
      %v2198 = vsub.s32 %v2195, %v2197
      %v2199 = vrot.slane %v2185, %v2198
      %v2200 = vcombine.low %v2003, %v2011
      %v2201 = vcombine.high %v2003, %v2011
      %v2203 = vunpack.c.l.s4 1983009808
      %v2204 = vunpack.c.0.s8 %v2203
      %v2205 = vlaneseq
      %v2206 = vshrl.u32 %v2205, 7
      %v2207 = vsub.s32 %v2204, %v2206
      %v2208 = vrot.slane %v2200, %v2207
      %v2210 = vunpack.c.l.s4 1983009808
      %v2211 = vunpack.c.0.s8 %v2210
      %v2212 = vlaneseq
      %v2213 = vshrl.u32 %v2212, 7
      %v2214 = vsub.s32 %v2211, %v2213
      %v2215 = vrot.slane %v2201, %v2214
      %v2216 = vcombine.low %v2007, %v2015
      %v2217 = vcombine.high %v2007, %v2015
      %v2219 = vunpack.c.l.s4 1983009808
      %v2220 = vunpack.c.0.s8 %v2219
      %v2221 = vlaneseq
      %v2222 = vshrl.u32 %v2221, 7
      %v2223 = vsub.s32 %v2220, %v2222
      %v2224 = vrot.slane %v2216, %v2223
      %v2226 = vunpack.c.l.s4 1983009808
      %v2227 = vunpack.c.0.s8 %v2226
      %v2228 = vlaneseq
      %v2229 = vshrl.u32 %v2228, 7
      %v2230 = vsub.s32 %v2227, %v2229
      %v2231 = vrot.slane %v2217, %v2230
      %v2232 = vcombine.low %v2176, %v2192
      %v2233 = vcombine.high %v2176, %v2192
      %v2235 = vunpack.c.l.s4 1934713408
      %v2236 = vunpack.c.0.s8 %v2235
      %v2237 = vlaneseq
      %v2238 = vshrl.u32 %v2237, 7
      %v2239 = vsub.s32 %v2236, %v2238
      %v2240 = vrot.slane %v2232, %v2239
      %v2242 = vunpack.c.l.s4 1934713408
      %v2243 = vunpack.c.0.s8 %v2242
      %v2244 = vlaneseq
      %v2245 = vshrl.u32 %v2244, 7
      %v2246 = vsub.s32 %v2243, %v2245
      %v2247 = vrot.slane %v2233, %v2246
      %v2248 = vcombine.low %v2183, %v2199
      %v2249 = vcombine.high %v2183, %v2199
      %v2251 = vunpack.c.l.s4 1934713408
      %v2252 = vunpack.c.0.s8 %v2251
      %v2253 = vlaneseq
      %v2254 = vshrl.u32 %v2253, 7
      %v2255 = vsub.s32 %v2252, %v2254
      %v2256 = vrot.slane %v2248, %v2255
      %v2258 = vunpack.c.l.s4 1934713408
      %v2259 = vunpack.c.0.s8 %v2258
      %v2260 = vlaneseq
      %v2261 = vshrl.u32 %v2260, 7
      %v2262 = vsub.s32 %v2259, %v2261
      %v2263 = vrot.slane %v2249, %v2262
      %v2264 = vcombine.low %v2208, %v2224
      %v2265 = vcombine.high %v2208, %v2224
      %v2267 = vunpack.c.l.s4 1934713408
      %v2268 = vunpack.c.0.s8 %v2267
      %v2269 = vlaneseq
      %v2270 = vshrl.u32 %v2269, 7
      %v2271 = vsub.s32 %v2268, %v2270
      %v2272 = vrot.slane %v2264, %v2271
      %v2274 = vunpack.c.l.s4 1934713408
      %v2275 = vunpack.c.0.s8 %v2274
      %v2276 = vlaneseq
      %v2277 = vshrl.u32 %v2276, 7
      %v2278 = vsub.s32 %v2275, %v2277
      %v2279 = vrot.slane %v2265, %v2278
      %v2280 = vcombine.low %v2215, %v2231
      %v2281 = vcombine.high %v2215, %v2231
      %v2283 = vunpack.c.l.s4 1934713408
      %v2284 = vunpack.c.0.s8 %v2283
      %v2285 = vlaneseq
      %v2286 = vshrl.u32 %v2285, 7
      %v2287 = vsub.s32 %v2284, %v2286
      %v2288 = vrot.slane %v2280, %v2287
      %v2290 = vunpack.c.l.s4 1934713408
      %v2291 = vunpack.c.0.s8 %v2290
      %v2292 = vlaneseq
      %v2293 = vshrl.u32 %v2292, 7
      %v2294 = vsub.s32 %v2291, %v2293
      %v2295 = vrot.slane %v2281, %v2294
      %v2296 = vcombine.low %v2240, %v2272
      %v2297 = vcombine.high %v2240, %v2272
      %v2298 = vcombine.low %v2247, %v2279
      %v2299 = vcombine.high %v2247, %v2279
      %v2300 = vcombine.low %v2256, %v2288
      %v2301 = vcombine.high %v2256, %v2288
      %v2302 = vcombine.low %v2263, %v2295
      %v2303 = vcombine.high %v2263, %v2295
      %v2306 = vpack.i.b16 %v2296, %v2160
      %v2307 = vshrl.u32 %v2160, 16
      %v2308 = vshrl.u32 %v2296, 16
      %v2309 = vpack.i.b16 %v2308, %v2307
      %v2312 = vpack.i.b16 %v2297, %v2161
      %v2313 = vshrl.u32 %v2161, 16
      %v2314 = vshrl.u32 %v2297, 16
      %v2315 = vpack.i.b16 %v2314, %v2313
      %v2318 = vpack.i.b16 %v2298, %v2162
      %v2319 = vshrl.u32 %v2162, 16
      %v2320 = vshrl.u32 %v2298, 16
      %v2321 = vpack.i.b16 %v2320, %v2319
      %v2324 = vpack.i.b16 %v2299, %v2163
      %v2325 = vshrl.u32 %v2163, 16
      %v2326 = vshrl.u32 %v2299, 16
      %v2327 = vpack.i.b16 %v2326, %v2325
      %v2330 = vpack.i.b16 %v2300, %v2164
      %v2331 = vshrl.u32 %v2164, 16
      %v2332 = vshrl.u32 %v2300, 16
      %v2333 = vpack.i.b16 %v2332, %v2331
      %v2336 = vpack.i.b16 %v2301, %v2165
      %v2337 = vshrl.u32 %v2165, 16
      %v2338 = vshrl.u32 %v2301, 16
      %v2339 = vpack.i.b16 %v2338, %v2337
      %v2342 = vpack.i.b16 %v2302, %v2166
      %v2343 = vshrl.u32 %v2166, 16
      %v2344 = vshrl.u32 %v2302, 16
      %v2345 = vpack.i.b16 %v2344, %v2343
      %v2348 = vpack.i.b16 %v2303, %v2167
      %v2349 = vshrl.u32 %v2167, 16
      %v2350 = vshrl.u32 %v2303, 16
      %v2351 = vpack.i.b16 %v2350, %v2349
      %2352 = vrot.lane.b32.xlu0 %v2309, 16
      %v2353 = vpop.permute.xlu0 %2352
      %2354 = vrot.lane.b32.xlu0 %v2312, 32
      %v2355 = vpop.permute.xlu0 %2354
      %2356 = vrot.lane.b32.xlu0 %v2315, 48
      %v2357 = vpop.permute.xlu0 %2356
      %2358 = vrot.lane.b32.xlu0 %v2318, 64
      %v2359 = vpop.permute.xlu0 %2358
      %2360 = vrot.lane.b32.xlu0 %v2321, 80
      %v2361 = vpop.permute.xlu0 %2360
      %2362 = vrot.lane.b32.xlu0 %v2324, 96
      %v2363 = vpop.permute.xlu0 %2362
      %2364 = vrot.lane.b32.xlu0 %v2327, 112
      %v2365 = vpop.permute.xlu0 %2364
      %2366 = vrot.lane.b32.xlu0 %v2333, 16
      %v2367 = vpop.permute.xlu0 %2366
      %2368 = vrot.lane.b32.xlu0 %v2336, 32
      %v2369 = vpop.permute.xlu0 %2368
      %2370 = vrot.lane.b32.xlu0 %v2339, 48
      %v2371 = vpop.permute.xlu0 %2370
      %2372 = vrot.lane.b32.xlu0 %v2342, 64
      %v2373 = vpop.permute.xlu0 %2372
      %2374 = vrot.lane.b32.xlu0 %v2345, 80
      %v2375 = vpop.permute.xlu0 %2374
      %2376 = vrot.lane.b32.xlu0 %v2348, 96
      %v2377 = vpop.permute.xlu0 %2376
      %2378 = vrot.lane.b32.xlu0 %v2351, 112
      %v2379 = vpop.permute.xlu0 %2378
      %v2382 = vsel %vm1394, %v2306, %v2353
      %v2384 = vsel %vm1398, %v2382, %v2355
      %v2386 = vsel %vm1401, %v2384, %v2357
      %v2388 = vsel %vm1404, %v2386, %v2359
      %v2390 = vsel %vm1407, %v2388, %v2361
      %v2392 = vsel %vm1410, %v2390, %v2363
      %v2394 = vsel %vm1413, %v2392, %v2365
      %v2398 = vsel %vm1394, %v2330, %v2367
      %v2400 = vsel %vm1398, %v2398, %v2369
      %v2402 = vsel %vm1401, %v2400, %v2371
      %v2404 = vsel %vm1404, %v2402, %v2373
      %v2406 = vsel %vm1407, %v2404, %v2375
      %v2408 = vsel %vm1410, %v2406, %v2377
      %v2410 = vsel %vm1413, %v2408, %v2379
      %s2412 = scalar_lea.vmem %s3, 16
      %v2413 = vld [vmem:[%s2412] sm:$0xf]
      %v2414 = vld [vmem:[%s2412 + $0x4] sm:$0xf]
      %v2417 = vunpack.c.l.b16 %v2413
      %v2418 = vunpack.c.l.b16 %v2414
      %v2419 = vpack.c.b16 %v2418, %v2417
      %v2421 = vsel %vm1394, %v2419, 0
      %2423 = vmatprep.subr.bf16.mxu0 %v2410
      %2424 = vmatpush1.bf16.msra.mxu0 %v2394
      %2425 = vmatprep.subr.bf16.mxu0 0
      %2426 = vmatpush1.bf16.msra.mxu0 0
      %2427 = vmatprep.subr.bf16.mxu0 0
      %2428 = vmatpush1.bf16.msra.mxu0 0
      %2429 = vmatprep.subr.bf16.mxu0 0
      %2430 = vmatpush1.bf16.msra.mxu0 0
      %2431 = vmatprep.subr.bf16.mxu0 0
      %2432 = vmatpush1.bf16.msra.mxu0 0
      %2433 = vmatprep.subr.bf16.mxu0 0
      %2434 = vmatpush1.bf16.msra.mxu0 0
      %2435 = vmatprep.subr.bf16.mxu0 0
      %2436 = vmatpush1.bf16.msra.mxu0 0
      %2437 = vmatprep.subr.bf16.mxu0 0
      %2438 = vmatpush1.bf16.msra.mxu0 0
      %2439 = vmatprep.subr.bf16.mxu0 0
      %2440 = vmatpush1.bf16.msra.mxu0 0
      %2441 = vmatprep.subr.bf16.mxu0 0
      %2442 = vmatpush1.bf16.msra.mxu0 0
      %2443 = vmatprep.subr.bf16.mxu0 0
      %2444 = vmatpush1.bf16.msra.mxu0 0
      %2445 = vmatprep.subr.bf16.mxu0 0
      %2446 = vmatpush1.bf16.msra.mxu0 0
      %2447 = vmatprep.subr.bf16.mxu0 0
      %2448 = vmatpush1.bf16.msra.mxu0 0
      %2449 = vmatprep.subr.bf16.mxu0 0
      %2450 = vmatpush1.bf16.msra.mxu0 0
      %2451 = vmatprep.subr.bf16.mxu0 0
      %2452 = vmatpush1.bf16.msra.mxu0 0
      %2453 = vmatprep.subr.bf16.mxu0 0
      %2454 = vmatpush1.bf16.msra.mxu0 0
      %2455 = vmatprep.mubr.bf16.mxu0 0
      %2456 = vmatmul.mubr.bf16.gmra.mrb[0].mxu0 %v2421
      %v2457 = vpop.f32.mrb[0].mxu0
      %v2458 = vadd.f32 0.0, %v2457
      %v2459 = vpop.f32.mrb[0].mxu0
      %v2460 = vadd.f32 0.0, %v2459
      %v2461 = vpop.f32.mrb[0].mxu0
      %v2462 = vadd.f32 0.0, %v2461
      %v2463 = vpop.f32.mrb[0].mxu0
      %v2464 = vadd.f32 0.0, %v2463
      %2465 = vdwg.mxu0
      %v2466 = vadd.f32 %v1976, %v2458
      %v2467 = vadd.f32 %v1978, %v2460
      %v2468 = vadd.f32 %v1980, %v2462
      %v2469 = vadd.f32 %v1982, %v2464
      %vm2470 = vsmask.f32 7424
      %v2471 = vshrl.u32 %v998, 16
      %v2473 = vshll.u32 %v998, 16
      %v2475 = vrot.slane %v2473, 1
      %v2476 = vor.u32 %v2471, %v2475
      %v2477 = vshll.u32 %v1000, 16
      %v2479 = vrot.slane %v2477, 1
      %v2480 = vsel %vm2470, %v2476, %v2479
      %v2481 = vshrl.u32 %v1001, 16
      %v2483 = vshll.u32 %v1001, 16
      %v2485 = vrot.slane %v2483, 1
      %v2486 = vor.u32 %v2481, %v2485
      %v2487 = vshll.u32 %v1003, 16
      %v2489 = vrot.slane %v2487, 1
      %v2490 = vsel %vm2470, %v2486, %v2489
      %v2491 = vshrl.u32 %v1004, 16
      %v2493 = vshll.u32 %v1004, 16
      %v2495 = vrot.slane %v2493, 1
      %v2496 = vor.u32 %v2491, %v2495
      %v2497 = vshll.u32 %v1006, 16
      %v2499 = vrot.slane %v2497, 1
      %v2500 = vsel %vm2470, %v2496, %v2499
      %v2501 = vshrl.u32 %v1007, 16
      %v2503 = vshll.u32 %v1007, 16
      %v2505 = vrot.slane %v2503, 1
      %v2506 = vor.u32 %v2501, %v2505
      %v2507 = vshll.u32 %v1009, 16
      %v2509 = vrot.slane %v2507, 1
      %v2510 = vsel %vm2470, %v2506, %v2509
      %v2511 = vshrl.u32 %v1010, 16
      %v2513 = vshll.u32 %v1010, 16
      %v2515 = vrot.slane %v2513, 1
      %v2516 = vor.u32 %v2511, %v2515
      %v2517 = vshll.u32 %v1012, 16
      %v2519 = vrot.slane %v2517, 1
      %v2520 = vsel %vm2470, %v2516, %v2519
      %v2521 = vshrl.u32 %v1013, 16
      %v2523 = vshll.u32 %v1013, 16
      %v2525 = vrot.slane %v2523, 1
      %v2526 = vor.u32 %v2521, %v2525
      %v2527 = vshll.u32 %v1015, 16
      %v2529 = vrot.slane %v2527, 1
      %v2530 = vsel %vm2470, %v2526, %v2529
      %v2531 = vshrl.u32 %v1016, 16
      %v2533 = vshll.u32 %v1016, 16
      %v2535 = vrot.slane %v2533, 1
      %v2536 = vor.u32 %v2531, %v2535
      %v2537 = vshll.u32 %v1018, 16
      %v2539 = vrot.slane %v2537, 1
      %v2540 = vsel %vm2470, %v2536, %v2539
      %v2541 = vshrl.u32 %v1019, 16
      %v2543 = vshll.u32 %v1019, 16
      %v2545 = vrot.slane %v2543, 1
      %v2546 = vor.u32 %v2541, %v2545
      %v2547 = vshll.u32 %v1021, 16
      %v2549 = vrot.slane %v2547, 1
      %v2550 = vsel %vm2470, %v2546, %v2549
      %v2551 = vshrl.u32 %v1022, 16
      %v2553 = vshll.u32 %v1022, 16
      %v2555 = vrot.slane %v2553, 1
      %v2556 = vor.u32 %v2551, %v2555
      %v2557 = vshll.u32 %v1024, 16
      %v2559 = vrot.slane %v2557, 1
      %v2560 = vsel %vm2470, %v2556, %v2559
      %v2561 = vshrl.u32 %v1025, 16
      %v2563 = vshll.u32 %v1025, 16
      %v2565 = vrot.slane %v2563, 1
      %v2566 = vor.u32 %v2561, %v2565
      %v2567 = vshll.u32 %v1027, 16
      %v2569 = vrot.slane %v2567, 1
      %v2570 = vsel %vm2470, %v2566, %v2569
      %v2571 = vshrl.u32 %v1028, 16
      %v2573 = vshll.u32 %v1028, 16
      %v2575 = vrot.slane %v2573, 1
      %v2576 = vor.u32 %v2571, %v2575
      %v2577 = vshll.u32 %v1030, 16
      %v2579 = vrot.slane %v2577, 1
      %v2580 = vsel %vm2470, %v2576, %v2579
      %v2581 = vshrl.u32 %v1031, 16
      %v2583 = vshll.u32 %v1031, 16
      %v2585 = vrot.slane %v2583, 1
      %v2586 = vor.u32 %v2581, %v2585
      %v2587 = vshll.u32 %v1033, 16
      %v2589 = vrot.slane %v2587, 1
      %v2590 = vsel %vm2470, %v2586, %v2589
      %v2591 = vshrl.u32 %v1034, 16
      %v2593 = vshll.u32 %v1034, 16
      %v2595 = vrot.slane %v2593, 1
      %v2596 = vor.u32 %v2591, %v2595
      %v2597 = vshll.u32 %v1036, 16
      %v2599 = vrot.slane %v2597, 1
      %v2600 = vsel %vm2470, %v2596, %v2599
      %v2601 = vshrl.u32 %v1037, 16
      %v2603 = vshll.u32 %v1037, 16
      %v2605 = vrot.slane %v2603, 1
      %v2606 = vor.u32 %v2601, %v2605
      %v2607 = vshll.u32 %v1039, 16
      %v2609 = vrot.slane %v2607, 1
      %v2610 = vsel %vm2470, %v2606, %v2609
      %v2611 = vshrl.u32 %v1040, 16
      %v2613 = vshll.u32 %v1040, 16
      %v2615 = vrot.slane %v2613, 1
      %v2616 = vor.u32 %v2611, %v2615
      %v2617 = vshll.u32 %v1042, 16
      %v2619 = vrot.slane %v2617, 1
      %v2620 = vsel %vm2470, %v2616, %v2619
      %v2621 = vshrl.u32 %v1043, 16
      %v2623 = vshll.u32 %v1043, 16
      %v2625 = vrot.slane %v2623, 1
      %v2626 = vor.u32 %v2621, %v2625
      %v2627 = vshll.u32 %v1045, 16
      %v2629 = vrot.slane %v2627, 1
      %v2630 = vsel %vm2470, %v2626, %v2629
      %v2647 = vcombine.low %v2480, %v2520
      %v2648 = vcombine.high %v2480, %v2520
      %v2650 = vunpack.c.l.s4 1983009808
      %v2651 = vunpack.c.0.s8 %v2650
      %v2652 = vlaneseq
      %v2653 = vshrl.u32 %v2652, 7
      %v2654 = vsub.s32 %v2651, %v2653
      %v2655 = vrot.slane %v2647, %v2654
      %v2657 = vunpack.c.l.s4 1983009808
      %v2658 = vunpack.c.0.s8 %v2657
      %v2659 = vlaneseq
      %v2660 = vshrl.u32 %v2659, 7
      %v2661 = vsub.s32 %v2658, %v2660
      %v2662 = vrot.slane %v2648, %v2661
      %v2663 = vcombine.low %v2500, %v2540
      %v2664 = vcombine.high %v2500, %v2540
      %v2666 = vunpack.c.l.s4 1983009808
      %v2667 = vunpack.c.0.s8 %v2666
      %v2668 = vlaneseq
      %v2669 = vshrl.u32 %v2668, 7
      %v2670 = vsub.s32 %v2667, %v2669
      %v2671 = vrot.slane %v2663, %v2670
      %v2673 = vunpack.c.l.s4 1983009808
      %v2674 = vunpack.c.0.s8 %v2673
      %v2675 = vlaneseq
      %v2676 = vshrl.u32 %v2675, 7
      %v2677 = vsub.s32 %v2674, %v2676
      %v2678 = vrot.slane %v2664, %v2677
      %v2679 = vcombine.low %v2560, %v2600
      %v2680 = vcombine.high %v2560, %v2600
      %v2682 = vunpack.c.l.s4 1983009808
      %v2683 = vunpack.c.0.s8 %v2682
      %v2684 = vlaneseq
      %v2685 = vshrl.u32 %v2684, 7
      %v2686 = vsub.s32 %v2683, %v2685
      %v2687 = vrot.slane %v2679, %v2686
      %v2689 = vunpack.c.l.s4 1983009808
      %v2690 = vunpack.c.0.s8 %v2689
      %v2691 = vlaneseq
      %v2692 = vshrl.u32 %v2691, 7
      %v2693 = vsub.s32 %v2690, %v2692
      %v2694 = vrot.slane %v2680, %v2693
      %v2695 = vcombine.low %v2580, %v2620
      %v2696 = vcombine.high %v2580, %v2620
      %v2698 = vunpack.c.l.s4 1983009808
      %v2699 = vunpack.c.0.s8 %v2698
      %v2700 = vlaneseq
      %v2701 = vshrl.u32 %v2700, 7
      %v2702 = vsub.s32 %v2699, %v2701
      %v2703 = vrot.slane %v2695, %v2702
      %v2705 = vunpack.c.l.s4 1983009808
      %v2706 = vunpack.c.0.s8 %v2705
      %v2707 = vlaneseq
      %v2708 = vshrl.u32 %v2707, 7
      %v2709 = vsub.s32 %v2706, %v2708
      %v2710 = vrot.slane %v2696, %v2709
      %v2711 = vcombine.low %v2655, %v2671
      %v2712 = vcombine.high %v2655, %v2671
      %v2714 = vunpack.c.l.s4 1934713408
      %v2715 = vunpack.c.0.s8 %v2714
      %v2716 = vlaneseq
      %v2717 = vshrl.u32 %v2716, 7
      %v2718 = vsub.s32 %v2715, %v2717
      %v2719 = vrot.slane %v2711, %v2718
      %v2721 = vunpack.c.l.s4 1934713408
      %v2722 = vunpack.c.0.s8 %v2721
      %v2723 = vlaneseq
      %v2724 = vshrl.u32 %v2723, 7
      %v2725 = vsub.s32 %v2722, %v2724
      %v2726 = vrot.slane %v2712, %v2725
      %v2727 = vcombine.low %v2662, %v2678
      %v2728 = vcombine.high %v2662, %v2678
      %v2730 = vunpack.c.l.s4 1934713408
      %v2731 = vunpack.c.0.s8 %v2730
      %v2732 = vlaneseq
      %v2733 = vshrl.u32 %v2732, 7
      %v2734 = vsub.s32 %v2731, %v2733
      %v2735 = vrot.slane %v2727, %v2734
      %v2737 = vunpack.c.l.s4 1934713408
      %v2738 = vunpack.c.0.s8 %v2737
      %v2739 = vlaneseq
      %v2740 = vshrl.u32 %v2739, 7
      %v2741 = vsub.s32 %v2738, %v2740
      %v2742 = vrot.slane %v2728, %v2741
      %v2743 = vcombine.low %v2687, %v2703
      %v2744 = vcombine.high %v2687, %v2703
      %v2746 = vunpack.c.l.s4 1934713408
      %v2747 = vunpack.c.0.s8 %v2746
      %v2748 = vlaneseq
      %v2749 = vshrl.u32 %v2748, 7
      %v2750 = vsub.s32 %v2747, %v2749
      %v2751 = vrot.slane %v2743, %v2750
      %v2753 = vunpack.c.l.s4 1934713408
      %v2754 = vunpack.c.0.s8 %v2753
      %v2755 = vlaneseq
      %v2756 = vshrl.u32 %v2755, 7
      %v2757 = vsub.s32 %v2754, %v2756
      %v2758 = vrot.slane %v2744, %v2757
      %v2759 = vcombine.low %v2694, %v2710
      %v2760 = vcombine.high %v2694, %v2710
      %v2762 = vunpack.c.l.s4 1934713408
      %v2763 = vunpack.c.0.s8 %v2762
      %v2764 = vlaneseq
      %v2765 = vshrl.u32 %v2764, 7
      %v2766 = vsub.s32 %v2763, %v2765
      %v2767 = vrot.slane %v2759, %v2766
      %v2769 = vunpack.c.l.s4 1934713408
      %v2770 = vunpack.c.0.s8 %v2769
      %v2771 = vlaneseq
      %v2772 = vshrl.u32 %v2771, 7
      %v2773 = vsub.s32 %v2770, %v2772
      %v2774 = vrot.slane %v2760, %v2773
      %v2775 = vcombine.low %v2719, %v2751
      %v2776 = vcombine.high %v2719, %v2751
      %v2777 = vcombine.low %v2726, %v2758
      %v2778 = vcombine.high %v2726, %v2758
      %v2779 = vcombine.low %v2735, %v2767
      %v2780 = vcombine.high %v2735, %v2767
      %v2781 = vcombine.low %v2742, %v2774
      %v2782 = vcombine.high %v2742, %v2774
      %v2783 = vcombine.low %v2490, %v2530
      %v2784 = vcombine.high %v2490, %v2530
      %v2786 = vunpack.c.l.s4 1983009808
      %v2787 = vunpack.c.0.s8 %v2786
      %v2788 = vlaneseq
      %v2789 = vshrl.u32 %v2788, 7
      %v2790 = vsub.s32 %v2787, %v2789
      %v2791 = vrot.slane %v2783, %v2790
      %v2793 = vunpack.c.l.s4 1983009808
      %v2794 = vunpack.c.0.s8 %v2793
      %v2795 = vlaneseq
      %v2796 = vshrl.u32 %v2795, 7
      %v2797 = vsub.s32 %v2794, %v2796
      %v2798 = vrot.slane %v2784, %v2797
      %v2799 = vcombine.low %v2510, %v2550
      %v2800 = vcombine.high %v2510, %v2550
      %v2802 = vunpack.c.l.s4 1983009808
      %v2803 = vunpack.c.0.s8 %v2802
      %v2804 = vlaneseq
      %v2805 = vshrl.u32 %v2804, 7
      %v2806 = vsub.s32 %v2803, %v2805
      %v2807 = vrot.slane %v2799, %v2806
      %v2809 = vunpack.c.l.s4 1983009808
      %v2810 = vunpack.c.0.s8 %v2809
      %v2811 = vlaneseq
      %v2812 = vshrl.u32 %v2811, 7
      %v2813 = vsub.s32 %v2810, %v2812
      %v2814 = vrot.slane %v2800, %v2813
      %v2815 = vcombine.low %v2570, %v2610
      %v2816 = vcombine.high %v2570, %v2610
      %v2818 = vunpack.c.l.s4 1983009808
      %v2819 = vunpack.c.0.s8 %v2818
      %v2820 = vlaneseq
      %v2821 = vshrl.u32 %v2820, 7
      %v2822 = vsub.s32 %v2819, %v2821
      %v2823 = vrot.slane %v2815, %v2822
      %v2825 = vunpack.c.l.s4 1983009808
      %v2826 = vunpack.c.0.s8 %v2825
      %v2827 = vlaneseq
      %v2828 = vshrl.u32 %v2827, 7
      %v2829 = vsub.s32 %v2826, %v2828
      %v2830 = vrot.slane %v2816, %v2829
      %v2831 = vcombine.low %v2590, %v2630
      %v2832 = vcombine.high %v2590, %v2630
      %v2834 = vunpack.c.l.s4 1983009808
      %v2835 = vunpack.c.0.s8 %v2834
      %v2836 = vlaneseq
      %v2837 = vshrl.u32 %v2836, 7
      %v2838 = vsub.s32 %v2835, %v2837
      %v2839 = vrot.slane %v2831, %v2838
      %v2841 = vunpack.c.l.s4 1983009808
      %v2842 = vunpack.c.0.s8 %v2841
      %v2843 = vlaneseq
      %v2844 = vshrl.u32 %v2843, 7
      %v2845 = vsub.s32 %v2842, %v2844
      %v2846 = vrot.slane %v2832, %v2845
      %v2847 = vcombine.low %v2791, %v2807
      %v2848 = vcombine.high %v2791, %v2807
      %v2850 = vunpack.c.l.s4 1934713408
      %v2851 = vunpack.c.0.s8 %v2850
      %v2852 = vlaneseq
      %v2853 = vshrl.u32 %v2852, 7
      %v2854 = vsub.s32 %v2851, %v2853
      %v2855 = vrot.slane %v2847, %v2854
      %v2857 = vunpack.c.l.s4 1934713408
      %v2858 = vunpack.c.0.s8 %v2857
      %v2859 = vlaneseq
      %v2860 = vshrl.u32 %v2859, 7
      %v2861 = vsub.s32 %v2858, %v2860
      %v2862 = vrot.slane %v2848, %v2861
      %v2863 = vcombine.low %v2798, %v2814
      %v2864 = vcombine.high %v2798, %v2814
      %v2866 = vunpack.c.l.s4 1934713408
      %v2867 = vunpack.c.0.s8 %v2866
      %v2868 = vlaneseq
      %v2869 = vshrl.u32 %v2868, 7
      %v2870 = vsub.s32 %v2867, %v2869
      %v2871 = vrot.slane %v2863, %v2870
      %v2873 = vunpack.c.l.s4 1934713408
      %v2874 = vunpack.c.0.s8 %v2873
      %v2875 = vlaneseq
      %v2876 = vshrl.u32 %v2875, 7
      %v2877 = vsub.s32 %v2874, %v2876
      %v2878 = vrot.slane %v2864, %v2877
      %v2879 = vcombine.low %v2823, %v2839
      %v2880 = vcombine.high %v2823, %v2839
      %v2882 = vunpack.c.l.s4 1934713408
      %v2883 = vunpack.c.0.s8 %v2882
      %v2884 = vlaneseq
      %v2885 = vshrl.u32 %v2884, 7
      %v2886 = vsub.s32 %v2883, %v2885
      %v2887 = vrot.slane %v2879, %v2886
      %v2889 = vunpack.c.l.s4 1934713408
      %v2890 = vunpack.c.0.s8 %v2889
      %v2891 = vlaneseq
      %v2892 = vshrl.u32 %v2891, 7
      %v2893 = vsub.s32 %v2890, %v2892
      %v2894 = vrot.slane %v2880, %v2893
      %v2895 = vcombine.low %v2830, %v2846
      %v2896 = vcombine.high %v2830, %v2846
      %v2898 = vunpack.c.l.s4 1934713408
      %v2899 = vunpack.c.0.s8 %v2898
      %v2900 = vlaneseq
      %v2901 = vshrl.u32 %v2900, 7
      %v2902 = vsub.s32 %v2899, %v2901
      %v2903 = vrot.slane %v2895, %v2902
      %v2905 = vunpack.c.l.s4 1934713408
      %v2906 = vunpack.c.0.s8 %v2905
      %v2907 = vlaneseq
      %v2908 = vshrl.u32 %v2907, 7
      %v2909 = vsub.s32 %v2906, %v2908
      %v2910 = vrot.slane %v2896, %v2909
      %v2911 = vcombine.low %v2855, %v2887
      %v2912 = vcombine.high %v2855, %v2887
      %v2913 = vcombine.low %v2862, %v2894
      %v2914 = vcombine.high %v2862, %v2894
      %v2915 = vcombine.low %v2871, %v2903
      %v2916 = vcombine.high %v2871, %v2903
      %v2917 = vcombine.low %v2878, %v2910
      %v2918 = vcombine.high %v2878, %v2910
      %v2921 = vpack.i.b16 %v2911, %v2775
      %v2922 = vshrl.u32 %v2775, 16
      %v2923 = vshrl.u32 %v2911, 16
      %v2924 = vpack.i.b16 %v2923, %v2922
      %v2927 = vpack.i.b16 %v2912, %v2776
      %v2928 = vshrl.u32 %v2776, 16
      %v2929 = vshrl.u32 %v2912, 16
      %v2930 = vpack.i.b16 %v2929, %v2928
      %v2933 = vpack.i.b16 %v2913, %v2777
      %v2934 = vshrl.u32 %v2777, 16
      %v2935 = vshrl.u32 %v2913, 16
      %v2936 = vpack.i.b16 %v2935, %v2934
      %v2939 = vpack.i.b16 %v2914, %v2778
      %v2940 = vshrl.u32 %v2778, 16
      %v2941 = vshrl.u32 %v2914, 16
      %v2942 = vpack.i.b16 %v2941, %v2940
      %v2945 = vpack.i.b16 %v2915, %v2779
      %v2946 = vshrl.u32 %v2779, 16
      %v2947 = vshrl.u32 %v2915, 16
      %v2948 = vpack.i.b16 %v2947, %v2946
      %v2951 = vpack.i.b16 %v2916, %v2780
      %v2952 = vshrl.u32 %v2780, 16
      %v2953 = vshrl.u32 %v2916, 16
      %v2954 = vpack.i.b16 %v2953, %v2952
      %v2957 = vpack.i.b16 %v2917, %v2781
      %v2958 = vshrl.u32 %v2781, 16
      %v2959 = vshrl.u32 %v2917, 16
      %v2960 = vpack.i.b16 %v2959, %v2958
      %v2963 = vpack.i.b16 %v2918, %v2782
      %v2964 = vshrl.u32 %v2782, 16
      %v2965 = vshrl.u32 %v2918, 16
      %v2966 = vpack.i.b16 %v2965, %v2964
      %2967 = vrot.lane.b32.xlu0 %v2924, 16
      %v2968 = vpop.permute.xlu0 %2967
      %2969 = vrot.lane.b32.xlu0 %v2927, 32
      %v2970 = vpop.permute.xlu0 %2969
      %2971 = vrot.lane.b32.xlu0 %v2930, 48
      %v2972 = vpop.permute.xlu0 %2971
      %2973 = vrot.lane.b32.xlu0 %v2933, 64
      %v2974 = vpop.permute.xlu0 %2973
      %2975 = vrot.lane.b32.xlu0 %v2936, 80
      %v2976 = vpop.permute.xlu0 %2975
      %2977 = vrot.lane.b32.xlu0 %v2939, 96
      %v2978 = vpop.permute.xlu0 %2977
      %2979 = vrot.lane.b32.xlu0 %v2942, 112
      %v2980 = vpop.permute.xlu0 %2979
      %2981 = vrot.lane.b32.xlu0 %v2948, 16
      %v2982 = vpop.permute.xlu0 %2981
      %2983 = vrot.lane.b32.xlu0 %v2951, 32
      %v2984 = vpop.permute.xlu0 %2983
      %2985 = vrot.lane.b32.xlu0 %v2954, 48
      %v2986 = vpop.permute.xlu0 %2985
      %2987 = vrot.lane.b32.xlu0 %v2957, 64
      %v2988 = vpop.permute.xlu0 %2987
      %2989 = vrot.lane.b32.xlu0 %v2960, 80
      %v2990 = vpop.permute.xlu0 %2989
      %2991 = vrot.lane.b32.xlu0 %v2963, 96
      %v2992 = vpop.permute.xlu0 %2991
      %2993 = vrot.lane.b32.xlu0 %v2966, 112
      %v2994 = vpop.permute.xlu0 %2993
      %v2997 = vsel %vm1394, %v2921, %v2968
      %v2999 = vsel %vm1398, %v2997, %v2970
      %v3001 = vsel %vm1401, %v2999, %v2972
      %v3003 = vsel %vm1404, %v3001, %v2974
      %v3005 = vsel %vm1407, %v3003, %v2976
      %v3007 = vsel %vm1410, %v3005, %v2978
      %v3009 = vsel %vm1413, %v3007, %v2980
      %v3013 = vsel %vm1394, %v2945, %v2982
      %v3015 = vsel %vm1398, %v3013, %v2984
      %v3017 = vsel %vm1401, %v3015, %v2986
      %v3019 = vsel %vm1404, %v3017, %v2988
      %v3021 = vsel %vm1407, %v3019, %v2990
      %v3023 = vsel %vm1410, %v3021, %v2992
      %v3025 = vsel %vm1413, %v3023, %v2994
      %s3027 = scalar_lea.vmem %s3, 24
      %v3028 = vld [vmem:[%s3027] sm:$0xf]
      %v3029 = vld [vmem:[%s3027 + $0x4] sm:$0xf]
      %v3032 = vunpack.c.l.b16 %v3028
      %v3033 = vunpack.c.l.b16 %v3029
      %v3034 = vpack.c.b16 %v3033, %v3032
      %v3036 = vsel %vm1394, %v3034, 0
      %3038 = vmatprep.subr.bf16.mxu0 %v3025
      %3039 = vmatpush1.bf16.msra.mxu0 %v3009
      %3040 = vmatprep.subr.bf16.mxu0 0
      %3041 = vmatpush1.bf16.msra.mxu0 0
      %3042 = vmatprep.subr.bf16.mxu0 0
      %3043 = vmatpush1.bf16.msra.mxu0 0
      %3044 = vmatprep.subr.bf16.mxu0 0
      %3045 = vmatpush1.bf16.msra.mxu0 0
      %3046 = vmatprep.subr.bf16.mxu0 0
      %3047 = vmatpush1.bf16.msra.mxu0 0
      %3048 = vmatprep.subr.bf16.mxu0 0
      %3049 = vmatpush1.bf16.msra.mxu0 0
      %3050 = vmatprep.subr.bf16.mxu0 0
      %3051 = vmatpush1.bf16.msra.mxu0 0
      %3052 = vmatprep.subr.bf16.mxu0 0
      %3053 = vmatpush1.bf16.msra.mxu0 0
      %3054 = vmatprep.subr.bf16.mxu0 0
      %3055 = vmatpush1.bf16.msra.mxu0 0
      %3056 = vmatprep.subr.bf16.mxu0 0
      %3057 = vmatpush1.bf16.msra.mxu0 0
      %3058 = vmatprep.subr.bf16.mxu0 0
      %3059 = vmatpush1.bf16.msra.mxu0 0
      %3060 = vmatprep.subr.bf16.mxu0 0
      %3061 = vmatpush1.bf16.msra.mxu0 0
      %3062 = vmatprep.subr.bf16.mxu0 0
      %3063 = vmatpush1.bf16.msra.mxu0 0
      %3064 = vmatprep.subr.bf16.mxu0 0
      %3065 = vmatpush1.bf16.msra.mxu0 0
      %3066 = vmatprep.subr.bf16.mxu0 0
      %3067 = vmatpush1.bf16.msra.mxu0 0
      %3068 = vmatprep.subr.bf16.mxu0 0
      %3069 = vmatpush1.bf16.msra.mxu0 0
      %3070 = vmatprep.mubr.bf16.mxu0 0
      %3071 = vmatmul.mubr.bf16.gmra.mrb[0].mxu0 %v3036
      %v3072 = vpop.f32.mrb[0].mxu0
      %v3073 = vadd.f32 0.0, %v3072
      %v3074 = vpop.f32.mrb[0].mxu0
      %v3075 = vadd.f32 0.0, %v3074
      %v3076 = vpop.f32.mrb[0].mxu0
      %v3077 = vadd.f32 0.0, %v3076
      %v3078 = vpop.f32.mrb[0].mxu0
      %v3079 = vadd.f32 0.0, %v3078
      %3080 = vdwg.mxu0
      %v3081 = vadd.f32 %v2466, %v3073
      %v3082 = vadd.f32 %v2467, %v3075
      %v3083 = vadd.f32 %v2468, %v3077
      %v3084 = vadd.f32 %v2469, %v3079
      %3085 = vrot.lane.b32.xlu0 %v2480, 127
      %v3086 = vpop.permute.xlu0 %3085
      %3087 = vrot.lane.b32.xlu0 %v2490, 127
      %v3088 = vpop.permute.xlu0 %3087
      %3089 = vrot.lane.b32.xlu0 %v2500, 127
      %v3090 = vpop.permute.xlu0 %3089
      %3091 = vrot.lane.b32.xlu0 %v2510, 127
      %v3092 = vpop.permute.xlu0 %3091
      %3093 = vrot.lane.b32.xlu0 %v2520, 127
      %v3094 = vpop.permute.xlu0 %3093
      %3095 = vrot.lane.b32.xlu0 %v2530, 127
      %v3096 = vpop.permute.xlu0 %3095
      %3097 = vrot.lane.b32.xlu0 %v2540, 127
      %v3098 = vpop.permute.xlu0 %3097
      %3099 = vrot.lane.b32.xlu0 %v2550, 127
      %v3100 = vpop.permute.xlu0 %3099
      %3101 = vrot.lane.b32.xlu0 %v2560, 127
      %v3102 = vpop.permute.xlu0 %3101
      %3103 = vrot.lane.b32.xlu0 %v2570, 127
      %v3104 = vpop.permute.xlu0 %3103
      %3105 = vrot.lane.b32.xlu0 %v2580, 127
      %v3106 = vpop.permute.xlu0 %3105
      %3107 = vrot.lane.b32.xlu0 %v2590, 127
      %v3108 = vpop.permute.xlu0 %3107
      %3109 = vrot.lane.b32.xlu0 %v2600, 127
      %v3110 = vpop.permute.xlu0 %3109
      %3111 = vrot.lane.b32.xlu0 %v2610, 127
      %v3112 = vpop.permute.xlu0 %3111
      %3113 = vrot.lane.b32.xlu0 %v2620, 127
      %v3114 = vpop.permute.xlu0 %3113
      %3115 = vrot.lane.b32.xlu0 %v2630, 127
      %v3116 = vpop.permute.xlu0 %3115
      %v3133 = vcombine.low %v3086, %v3094
      %v3134 = vcombine.high %v3086, %v3094
      %v3136 = vunpack.c.l.s4 1983009808
      %v3137 = vunpack.c.0.s8 %v3136
      %v3138 = vlaneseq
      %v3139 = vshrl.u32 %v3138, 7
      %v3140 = vsub.s32 %v3137, %v3139
      %v3141 = vrot.slane %v3133, %v3140
      %v3143 = vunpack.c.l.s4 1983009808
      %v3144 = vunpack.c.0.s8 %v3143
      %v3145 = vlaneseq
      %v3146 = vshrl.u32 %v3145, 7
      %v3147 = vsub.s32 %v3144, %v3146
      %v3148 = vrot.slane %v3134, %v3147
      %v3149 = vcombine.low %v3090, %v3098
      %v3150 = vcombine.high %v3090, %v3098
      %v3152 = vunpack.c.l.s4 1983009808
      %v3153 = vunpack.c.0.s8 %v3152
      %v3154 = vlaneseq
      %v3155 = vshrl.u32 %v3154, 7
      %v3156 = vsub.s32 %v3153, %v3155
      %v3157 = vrot.slane %v3149, %v3156
      %v3159 = vunpack.c.l.s4 1983009808
      %v3160 = vunpack.c.0.s8 %v3159
      %v3161 = vlaneseq
      %v3162 = vshrl.u32 %v3161, 7
      %v3163 = vsub.s32 %v3160, %v3162
      %v3164 = vrot.slane %v3150, %v3163
      %v3165 = vcombine.low %v3102, %v3110
      %v3166 = vcombine.high %v3102, %v3110
      %v3168 = vunpack.c.l.s4 1983009808
      %v3169 = vunpack.c.0.s8 %v3168
      %v3170 = vlaneseq
      %v3171 = vshrl.u32 %v3170, 7
      %v3172 = vsub.s32 %v3169, %v3171
      %v3173 = vrot.slane %v3165, %v3172
      %v3175 = vunpack.c.l.s4 1983009808
      %v3176 = vunpack.c.0.s8 %v3175
      %v3177 = vlaneseq
      %v3178 = vshrl.u32 %v3177, 7
      %v3179 = vsub.s32 %v3176, %v3178
      %v3180 = vrot.slane %v3166, %v3179
      %v3181 = vcombine.low %v3106, %v3114
      %v3182 = vcombine.high %v3106, %v3114
      %v3184 = vunpack.c.l.s4 1983009808
      %v3185 = vunpack.c.0.s8 %v3184
      %v3186 = vlaneseq
      %v3187 = vshrl.u32 %v3186, 7
      %v3188 = vsub.s32 %v3185, %v3187
      %v3189 = vrot.slane %v3181, %v3188
      %v3191 = vunpack.c.l.s4 1983009808
      %v3192 = vunpack.c.0.s8 %v3191
      %v3193 = vlaneseq
      %v3194 = vshrl.u32 %v3193, 7
      %v3195 = vsub.s32 %v3192, %v3194
      %v3196 = vrot.slane %v3182, %v3195
      %v3197 = vcombine.low %v3141, %v3157
      %v3198 = vcombine.high %v3141, %v3157
      %v3200 = vunpack.c.l.s4 1934713408
      %v3201 = vunpack.c.0.s8 %v3200
      %v3202 = vlaneseq
      %v3203 = vshrl.u32 %v3202, 7
      %v3204 = vsub.s32 %v3201, %v3203
      %v3205 = vrot.slane %v3197, %v3204
      %v3207 = vunpack.c.l.s4 1934713408
      %v3208 = vunpack.c.0.s8 %v3207
      %v3209 = vlaneseq
      %v3210 = vshrl.u32 %v3209, 7
      %v3211 = vsub.s32 %v3208, %v3210
      %v3212 = vrot.slane %v3198, %v3211
      %v3213 = vcombine.low %v3148, %v3164
      %v3214 = vcombine.high %v3148, %v3164
      %v3216 = vunpack.c.l.s4 1934713408
      %v3217 = vunpack.c.0.s8 %v3216
      %v3218 = vlaneseq
      %v3219 = vshrl.u32 %v3218, 7
      %v3220 = vsub.s32 %v3217, %v3219
      %v3221 = vrot.slane %v3213, %v3220
      %v3223 = vunpack.c.l.s4 1934713408
      %v3224 = vunpack.c.0.s8 %v3223
      %v3225 = vlaneseq
      %v3226 = vshrl.u32 %v3225, 7
      %v3227 = vsub.s32 %v3224, %v3226
      %v3228 = vrot.slane %v3214, %v3227
      %v3229 = vcombine.low %v3173, %v3189
      %v3230 = vcombine.high %v3173, %v3189
      %v3232 = vunpack.c.l.s4 1934713408
      %v3233 = vunpack.c.0.s8 %v3232
      %v3234 = vlaneseq
      %v3235 = vshrl.u32 %v3234, 7
      %v3236 = vsub.s32 %v3233, %v3235
      %v3237 = vrot.slane %v3229, %v3236
      %v3239 = vunpack.c.l.s4 1934713408
      %v3240 = vunpack.c.0.s8 %v3239
      %v3241 = vlaneseq
      %v3242 = vshrl.u32 %v3241, 7
      %v3243 = vsub.s32 %v3240, %v3242
      %v3244 = vrot.slane %v3230, %v3243
      %v3245 = vcombine.low %v3180, %v3196
      %v3246 = vcombine.high %v3180, %v3196
      %v3248 = vunpack.c.l.s4 1934713408
      %v3249 = vunpack.c.0.s8 %v3248
      %v3250 = vlaneseq
      %v3251 = vshrl.u32 %v3250, 7
      %v3252 = vsub.s32 %v3249, %v3251
      %v3253 = vrot.slane %v3245, %v3252
      %v3255 = vunpack.c.l.s4 1934713408
      %v3256 = vunpack.c.0.s8 %v3255
      %v3257 = vlaneseq
      %v3258 = vshrl.u32 %v3257, 7
      %v3259 = vsub.s32 %v3256, %v3258
      %v3260 = vrot.slane %v3246, %v3259
      %v3261 = vcombine.low %v3205, %v3237
      %v3262 = vcombine.high %v3205, %v3237
      %v3263 = vcombine.low %v3212, %v3244
      %v3264 = vcombine.high %v3212, %v3244
      %v3265 = vcombine.low %v3221, %v3253
      %v3266 = vcombine.high %v3221, %v3253
      %v3267 = vcombine.low %v3228, %v3260
      %v3268 = vcombine.high %v3228, %v3260
      %v3269 = vcombine.low %v3088, %v3096
      %v3270 = vcombine.high %v3088, %v3096
      %v3272 = vunpack.c.l.s4 1983009808
      %v3273 = vunpack.c.0.s8 %v3272
      %v3274 = vlaneseq
      %v3275 = vshrl.u32 %v3274, 7
      %v3276 = vsub.s32 %v3273, %v3275
      %v3277 = vrot.slane %v3269, %v3276
      %v3279 = vunpack.c.l.s4 1983009808
      %v3280 = vunpack.c.0.s8 %v3279
      %v3281 = vlaneseq
      %v3282 = vshrl.u32 %v3281, 7
      %v3283 = vsub.s32 %v3280, %v3282
      %v3284 = vrot.slane %v3270, %v3283
      %v3285 = vcombine.low %v3092, %v3100
      %v3286 = vcombine.high %v3092, %v3100
      %v3288 = vunpack.c.l.s4 1983009808
      %v3289 = vunpack.c.0.s8 %v3288
      %v3290 = vlaneseq
      %v3291 = vshrl.u32 %v3290, 7
      %v3292 = vsub.s32 %v3289, %v3291
      %v3293 = vrot.slane %v3285, %v3292
      %v3295 = vunpack.c.l.s4 1983009808
      %v3296 = vunpack.c.0.s8 %v3295
      %v3297 = vlaneseq
      %v3298 = vshrl.u32 %v3297, 7
      %v3299 = vsub.s32 %v3296, %v3298
      %v3300 = vrot.slane %v3286, %v3299
      %v3301 = vcombine.low %v3104, %v3112
      %v3302 = vcombine.high %v3104, %v3112
      %v3304 = vunpack.c.l.s4 1983009808
      %v3305 = vunpack.c.0.s8 %v3304
      %v3306 = vlaneseq
      %v3307 = vshrl.u32 %v3306, 7
      %v3308 = vsub.s32 %v3305, %v3307
      %v3309 = vrot.slane %v3301, %v3308
      %v3311 = vunpack.c.l.s4 1983009808
      %v3312 = vunpack.c.0.s8 %v3311
      %v3313 = vlaneseq
      %v3314 = vshrl.u32 %v3313, 7
      %v3315 = vsub.s32 %v3312, %v3314
      %v3316 = vrot.slane %v3302, %v3315
      %v3317 = vcombine.low %v3108, %v3116
      %v3318 = vcombine.high %v3108, %v3116
      %v3320 = vunpack.c.l.s4 1983009808
      %v3321 = vunpack.c.0.s8 %v3320
      %v3322 = vlaneseq
      %v3323 = vshrl.u32 %v3322, 7
      %v3324 = vsub.s32 %v3321, %v3323
      %v3325 = vrot.slane %v3317, %v3324
      %v3327 = vunpack.c.l.s4 1983009808
      %v3328 = vunpack.c.0.s8 %v3327
      %v3329 = vlaneseq
      %v3330 = vshrl.u32 %v3329, 7
      %v3331 = vsub.s32 %v3328, %v3330
      %v3332 = vrot.slane %v3318, %v3331
      %v3333 = vcombine.low %v3277, %v3293
      %v3334 = vcombine.high %v3277, %v3293
      %v3336 = vunpack.c.l.s4 1934713408
      %v3337 = vunpack.c.0.s8 %v3336
      %v3338 = vlaneseq
      %v3339 = vshrl.u32 %v3338, 7
      %v3340 = vsub.s32 %v3337, %v3339
      %v3341 = vrot.slane %v3333, %v3340
      %v3343 = vunpack.c.l.s4 1934713408
      %v3344 = vunpack.c.0.s8 %v3343
      %v3345 = vlaneseq
      %v3346 = vshrl.u32 %v3345, 7
      %v3347 = vsub.s32 %v3344, %v3346
      %v3348 = vrot.slane %v3334, %v3347
      %v3349 = vcombine.low %v3284, %v3300
      %v3350 = vcombine.high %v3284, %v3300
      %v3352 = vunpack.c.l.s4 1934713408
      %v3353 = vunpack.c.0.s8 %v3352
      %v3354 = vlaneseq
      %v3355 = vshrl.u32 %v3354, 7
      %v3356 = vsub.s32 %v3353, %v3355
      %v3357 = vrot.slane %v3349, %v3356
      %v3359 = vunpack.c.l.s4 1934713408
      %v3360 = vunpack.c.0.s8 %v3359
      %v3361 = vlaneseq
      %v3362 = vshrl.u32 %v3361, 7
      %v3363 = vsub.s32 %v3360, %v3362
      %v3364 = vrot.slane %v3350, %v3363
      %v3365 = vcombine.low %v3309, %v3325
      %v3366 = vcombine.high %v3309, %v3325
      %v3368 = vunpack.c.l.s4 1934713408
      %v3369 = vunpack.c.0.s8 %v3368
      %v3370 = vlaneseq
      %v3371 = vshrl.u32 %v3370, 7
      %v3372 = vsub.s32 %v3369, %v3371
      %v3373 = vrot.slane %v3365, %v3372
      %v3375 = vunpack.c.l.s4 1934713408
      %v3376 = vunpack.c.0.s8 %v3375
      %v3377 = vlaneseq
      %v3378 = vshrl.u32 %v3377, 7
      %v3379 = vsub.s32 %v3376, %v3378
      %v3380 = vrot.slane %v3366, %v3379
      %v3381 = vcombine.low %v3316, %v3332
      %v3382 = vcombine.high %v3316, %v3332
      %v3384 = vunpack.c.l.s4 1934713408
      %v3385 = vunpack.c.0.s8 %v3384
      %v3386 = vlaneseq
      %v3387 = vshrl.u32 %v3386, 7
      %v3388 = vsub.s32 %v3385, %v3387
      %v3389 = vrot.slane %v3381, %v3388
      %v3391 = vunpack.c.l.s4 1934713408
      %v3392 = vunpack.c.0.s8 %v3391
      %v3393 = vlaneseq
      %v3394 = vshrl.u32 %v3393, 7
      %v3395 = vsub.s32 %v3392, %v3394
      %v3396 = vrot.slane %v3382, %v3395
      %v3397 = vcombine.low %v3341, %v3373
      %v3398 = vcombine.high %v3341, %v3373
      %v3399 = vcombine.low %v3348, %v3380
      %v3400 = vcombine.high %v3348, %v3380
      %v3401 = vcombine.low %v3357, %v3389
      %v3402 = vcombine.high %v3357, %v3389
      %v3403 = vcombine.low %v3364, %v3396
      %v3404 = vcombine.high %v3364, %v3396
      %v3407 = vpack.i.b16 %v3397, %v3261
      %v3408 = vshrl.u32 %v3261, 16
      %v3409 = vshrl.u32 %v3397, 16
      %v3410 = vpack.i.b16 %v3409, %v3408
      %v3413 = vpack.i.b16 %v3398, %v3262
      %v3414 = vshrl.u32 %v3262, 16
      %v3415 = vshrl.u32 %v3398, 16
      %v3416 = vpack.i.b16 %v3415, %v3414
      %v3419 = vpack.i.b16 %v3399, %v3263
      %v3420 = vshrl.u32 %v3263, 16
      %v3421 = vshrl.u32 %v3399, 16
      %v3422 = vpack.i.b16 %v3421, %v3420
      %v3425 = vpack.i.b16 %v3400, %v3264
      %v3426 = vshrl.u32 %v3264, 16
      %v3427 = vshrl.u32 %v3400, 16
      %v3428 = vpack.i.b16 %v3427, %v3426
      %v3431 = vpack.i.b16 %v3401, %v3265
      %v3432 = vshrl.u32 %v3265, 16
      %v3433 = vshrl.u32 %v3401, 16
      %v3434 = vpack.i.b16 %v3433, %v3432
      %v3437 = vpack.i.b16 %v3402, %v3266
      %v3438 = vshrl.u32 %v3266, 16
      %v3439 = vshrl.u32 %v3402, 16
      %v3440 = vpack.i.b16 %v3439, %v3438
      %v3443 = vpack.i.b16 %v3403, %v3267
      %v3444 = vshrl.u32 %v3267, 16
      %v3445 = vshrl.u32 %v3403, 16
      %v3446 = vpack.i.b16 %v3445, %v3444
      %v3449 = vpack.i.b16 %v3404, %v3268
      %v3450 = vshrl.u32 %v3268, 16
      %v3451 = vshrl.u32 %v3404, 16
      %v3452 = vpack.i.b16 %v3451, %v3450
      %3453 = vrot.lane.b32.xlu0 %v3410, 16
      %v3454 = vpop.permute.xlu0 %3453
      %3455 = vrot.lane.b32.xlu0 %v3413, 32
      %v3456 = vpop.permute.xlu0 %3455
      %3457 = vrot.lane.b32.xlu0 %v3416, 48
      %v3458 = vpop.permute.xlu0 %3457
      %3459 = vrot.lane.b32.xlu0 %v3419, 64
      %v3460 = vpop.permute.xlu0 %3459
      %3461 = vrot.lane.b32.xlu0 %v3422, 80
      %v3462 = vpop.permute.xlu0 %3461
      %3463 = vrot.lane.b32.xlu0 %v3425, 96
      %v3464 = vpop.permute.xlu0 %3463
      %3465 = vrot.lane.b32.xlu0 %v3428, 112
      %v3466 = vpop.permute.xlu0 %3465
      %3467 = vrot.lane.b32.xlu0 %v3434, 16
      %v3468 = vpop.permute.xlu0 %3467
      %3469 = vrot.lane.b32.xlu0 %v3437, 32
      %v3470 = vpop.permute.xlu0 %3469
      %3471 = vrot.lane.b32.xlu0 %v3440, 48
      %v3472 = vpop.permute.xlu0 %3471
      %3473 = vrot.lane.b32.xlu0 %v3443, 64
      %v3474 = vpop.permute.xlu0 %3473
      %3475 = vrot.lane.b32.xlu0 %v3446, 80
      %v3476 = vpop.permute.xlu0 %3475
      %3477 = vrot.lane.b32.xlu0 %v3449, 96
      %v3478 = vpop.permute.xlu0 %3477
      %3479 = vrot.lane.b32.xlu0 %v3452, 112
      %v3480 = vpop.permute.xlu0 %3479
      %v3483 = vsel %vm1394, %v3407, %v3454
      %v3485 = vsel %vm1398, %v3483, %v3456
      %v3487 = vsel %vm1401, %v3485, %v3458
      %v3489 = vsel %vm1404, %v3487, %v3460
      %v3491 = vsel %vm1407, %v3489, %v3462
      %v3493 = vsel %vm1410, %v3491, %v3464
      %v3495 = vsel %vm1413, %v3493, %v3466
      %v3499 = vsel %vm1394, %v3431, %v3468
      %v3501 = vsel %vm1398, %v3499, %v3470
      %v3503 = vsel %vm1401, %v3501, %v3472
      %v3505 = vsel %vm1404, %v3503, %v3474
      %v3507 = vsel %vm1407, %v3505, %v3476
      %v3509 = vsel %vm1410, %v3507, %v3478
      %v3511 = vsel %vm1413, %v3509, %v3480
      %s3513 = scalar_lea.vmem %s3, 32
      %v3514 = vld [vmem:[%s3513] sm:$0xf]
      %v3515 = vld [vmem:[%s3513 + $0x4] sm:$0xf]
      %v3518 = vunpack.c.l.b16 %v3514
      %v3519 = vunpack.c.l.b16 %v3515
      %v3520 = vpack.c.b16 %v3519, %v3518
      %v3522 = vsel %vm1394, %v3520, 0
      %3524 = vmatprep.subr.bf16.mxu0 %v3511
      %3525 = vmatpush1.bf16.msra.mxu0 %v3495
      %3526 = vmatprep.subr.bf16.mxu0 0
      %3527 = vmatpush1.bf16.msra.mxu0 0
      %3528 = vmatprep.subr.bf16.mxu0 0
      %3529 = vmatpush1.bf16.msra.mxu0 0
      %3530 = vmatprep.subr.bf16.mxu0 0
      %3531 = vmatpush1.bf16.msra.mxu0 0
      %3532 = vmatprep.subr.bf16.mxu0 0
      %3533 = vmatpush1.bf16.msra.mxu0 0
      %3534 = vmatprep.subr.bf16.mxu0 0
      %3535 = vmatpush1.bf16.msra.mxu0 0
      %3536 = vmatprep.subr.bf16.mxu0 0
      %3537 = vmatpush1.bf16.msra.mxu0 0
      %3538 = vmatprep.subr.bf16.mxu0 0
      %3539 = vmatpush1.bf16.msra.mxu0 0
      %3540 = vmatprep.subr.bf16.mxu0 0
      %3541 = vmatpush1.bf16.msra.mxu0 0
      %3542 = vmatprep.subr.bf16.mxu0 0
      %3543 = vmatpush1.bf16.msra.mxu0 0
      %3544 = vmatprep.subr.bf16.mxu0 0
      %3545 = vmatpush1.bf16.msra.mxu0 0
      %3546 = vmatprep.subr.bf16.mxu0 0
      %3547 = vmatpush1.bf16.msra.mxu0 0
      %3548 = vmatprep.subr.bf16.mxu0 0
      %3549 = vmatpush1.bf16.msra.mxu0 0
      %3550 = vmatprep.subr.bf16.mxu0 0
      %3551 = vmatpush1.bf16.msra.mxu0 0
      %3552 = vmatprep.subr.bf16.mxu0 0
      %3553 = vmatpush1.bf16.msra.mxu0 0
      %3554 = vmatprep.subr.bf16.mxu0 0
      %3555 = vmatpush1.bf16.msra.mxu0 0
      %3556 = vmatprep.mubr.bf16.mxu0 0
      %3557 = vmatmul.mubr.bf16.gmra.mrb[0].mxu0 %v3522
      %v3558 = vpop.f32.mrb[0].mxu0
      %v3559 = vadd.f32 0.0, %v3558
      %v3560 = vpop.f32.mrb[0].mxu0
      %v3561 = vadd.f32 0.0, %v3560
      %v3562 = vpop.f32.mrb[0].mxu0
      %v3563 = vadd.f32 0.0, %v3562
      %v3564 = vpop.f32.mrb[0].mxu0
      %v3565 = vadd.f32 0.0, %v3564
      %3566 = vdwg.mxu0
      %v3567 = vadd.f32 %v3081, %v3559
      %v3568 = vadd.f32 %v3082, %v3561
      %v3569 = vadd.f32 %v3083, %v3563
      %v3570 = vadd.f32 %v3084, %v3565
      %3571 = vrot.lane.b32.xlu0 %v2480, 126
      %v3572 = vpop.permute.xlu0 %3571
      %3573 = vrot.lane.b32.xlu0 %v2490, 126
      %v3574 = vpop.permute.xlu0 %3573
      %3575 = vrot.lane.b32.xlu0 %v2500, 126
      %v3576 = vpop.permute.xlu0 %3575
      %3577 = vrot.lane.b32.xlu0 %v2510, 126
      %v3578 = vpop.permute.xlu0 %3577
      %3579 = vrot.lane.b32.xlu0 %v2520, 126
      %v3580 = vpop.permute.xlu0 %3579
      %3581 = vrot.lane.b32.xlu0 %v2530, 126
      %v3582 = vpop.permute.xlu0 %3581
      %3583 = vrot.lane.b32.xlu0 %v2540, 126
      %v3584 = vpop.permute.xlu0 %3583
      %3585 = vrot.lane.b32.xlu0 %v2550, 126
      %v3586 = vpop.permute.xlu0 %3585
      %3587 = vrot.lane.b32.xlu0 %v2560, 126
      %v3588 = vpop.permute.xlu0 %3587
      %3589 = vrot.lane.b32.xlu0 %v2570, 126
      %v3590 = vpop.permute.xlu0 %3589
      %3591 = vrot.lane.b32.xlu0 %v2580, 126
      %v3592 = vpop.permute.xlu0 %3591
      %3593 = vrot.lane.b32.xlu0 %v2590, 126
      %v3594 = vpop.permute.xlu0 %3593
      %3595 = vrot.lane.b32.xlu0 %v2600, 126
      %v3596 = vpop.permute.xlu0 %3595
      %3597 = vrot.lane.b32.xlu0 %v2610, 126
      %v3598 = vpop.permute.xlu0 %3597
      %3599 = vrot.lane.b32.xlu0 %v2620, 126
      %v3600 = vpop.permute.xlu0 %3599
      %3601 = vrot.lane.b32.xlu0 %v2630, 126
      %v3602 = vpop.permute.xlu0 %3601
      %v3619 = vcombine.low %v3572, %v3580
      %v3620 = vcombine.high %v3572, %v3580
      %v3622 = vunpack.c.l.s4 1983009808
      %v3623 = vunpack.c.0.s8 %v3622
      %v3624 = vlaneseq
      %v3625 = vshrl.u32 %v3624, 7
      %v3626 = vsub.s32 %v3623, %v3625
      %v3627 = vrot.slane %v3619, %v3626
      %v3629 = vunpack.c.l.s4 1983009808
      %v3630 = vunpack.c.0.s8 %v3629
      %v3631 = vlaneseq
      %v3632 = vshrl.u32 %v3631, 7
      %v3633 = vsub.s32 %v3630, %v3632
      %v3634 = vrot.slane %v3620, %v3633
      %v3635 = vcombine.low %v3576, %v3584
      %v3636 = vcombine.high %v3576, %v3584
      %v3638 = vunpack.c.l.s4 1983009808
      %v3639 = vunpack.c.0.s8 %v3638
      %v3640 = vlaneseq
      %v3641 = vshrl.u32 %v3640, 7
      %v3642 = vsub.s32 %v3639, %v3641
      %v3643 = vrot.slane %v3635, %v3642
      %v3645 = vunpack.c.l.s4 1983009808
      %v3646 = vunpack.c.0.s8 %v3645
      %v3647 = vlaneseq
      %v3648 = vshrl.u32 %v3647, 7
      %v3649 = vsub.s32 %v3646, %v3648
      %v3650 = vrot.slane %v3636, %v3649
      %v3651 = vcombine.low %v3588, %v3596
      %v3652 = vcombine.high %v3588, %v3596
      %v3654 = vunpack.c.l.s4 1983009808
      %v3655 = vunpack.c.0.s8 %v3654
      %v3656 = vlaneseq
      %v3657 = vshrl.u32 %v3656, 7
      %v3658 = vsub.s32 %v3655, %v3657
      %v3659 = vrot.slane %v3651, %v3658
      %v3661 = vunpack.c.l.s4 1983009808
      %v3662 = vunpack.c.0.s8 %v3661
      %v3663 = vlaneseq
      %v3664 = vshrl.u32 %v3663, 7
      %v3665 = vsub.s32 %v3662, %v3664
      %v3666 = vrot.slane %v3652, %v3665
      %v3667 = vcombine.low %v3592, %v3600
      %v3668 = vcombine.high %v3592, %v3600
      %v3670 = vunpack.c.l.s4 1983009808
      %v3671 = vunpack.c.0.s8 %v3670
      %v3672 = vlaneseq
      %v3673 = vshrl.u32 %v3672, 7
      %v3674 = vsub.s32 %v3671, %v3673
      %v3675 = vrot.slane %v3667, %v3674
      %v3677 = vunpack.c.l.s4 1983009808
      %v3678 = vunpack.c.0.s8 %v3677
      %v3679 = vlaneseq
      %v3680 = vshrl.u32 %v3679, 7
      %v3681 = vsub.s32 %v3678, %v3680
      %v3682 = vrot.slane %v3668, %v3681
      %v3683 = vcombine.low %v3627, %v3643
      %v3684 = vcombine.high %v3627, %v3643
      %v3686 = vunpack.c.l.s4 1934713408
      %v3687 = vunpack.c.0.s8 %v3686
      %v3688 = vlaneseq
      %v3689 = vshrl.u32 %v3688, 7
      %v3690 = vsub.s32 %v3687, %v3689
      %v3691 = vrot.slane %v3683, %v3690
      %v3693 = vunpack.c.l.s4 1934713408
      %v3694 = vunpack.c.0.s8 %v3693
      %v3695 = vlaneseq
      %v3696 = vshrl.u32 %v3695, 7
      %v3697 = vsub.s32 %v3694, %v3696
      %v3698 = vrot.slane %v3684, %v3697
      %v3699 = vcombine.low %v3634, %v3650
      %v3700 = vcombine.high %v3634, %v3650
      %v3702 = vunpack.c.l.s4 1934713408
      %v3703 = vunpack.c.0.s8 %v3702
      %v3704 = vlaneseq
      %v3705 = vshrl.u32 %v3704, 7
      %v3706 = vsub.s32 %v3703, %v3705
      %v3707 = vrot.slane %v3699, %v3706
      %v3709 = vunpack.c.l.s4 1934713408
      %v3710 = vunpack.c.0.s8 %v3709
      %v3711 = vlaneseq
      %v3712 = vshrl.u32 %v3711, 7
      %v3713 = vsub.s32 %v3710, %v3712
      %v3714 = vrot.slane %v3700, %v3713
      %v3715 = vcombine.low %v3659, %v3675
      %v3716 = vcombine.high %v3659, %v3675
      %v3718 = vunpack.c.l.s4 1934713408
      %v3719 = vunpack.c.0.s8 %v3718
      %v3720 = vlaneseq
      %v3721 = vshrl.u32 %v3720, 7
      %v3722 = vsub.s32 %v3719, %v3721
      %v3723 = vrot.slane %v3715, %v3722
      %v3725 = vunpack.c.l.s4 1934713408
      %v3726 = vunpack.c.0.s8 %v3725
      %v3727 = vlaneseq
      %v3728 = vshrl.u32 %v3727, 7
      %v3729 = vsub.s32 %v3726, %v3728
      %v3730 = vrot.slane %v3716, %v3729
      %v3731 = vcombine.low %v3666, %v3682
      %v3732 = vcombine.high %v3666, %v3682
      %v3734 = vunpack.c.l.s4 1934713408
      %v3735 = vunpack.c.0.s8 %v3734
      %v3736 = vlaneseq
      %v3737 = vshrl.u32 %v3736, 7
      %v3738 = vsub.s32 %v3735, %v3737
      %v3739 = vrot.slane %v3731, %v3738
      %v3741 = vunpack.c.l.s4 1934713408
      %v3742 = vunpack.c.0.s8 %v3741
      %v3743 = vlaneseq
      %v3744 = vshrl.u32 %v3743, 7
      %v3745 = vsub.s32 %v3742, %v3744
      %v3746 = vrot.slane %v3732, %v3745
      %v3747 = vcombine.low %v3691, %v3723
      %v3748 = vcombine.high %v3691, %v3723
      %v3749 = vcombine.low %v3698, %v3730
      %v3750 = vcombine.high %v3698, %v3730
      %v3751 = vcombine.low %v3707, %v3739
      %v3752 = vcombine.high %v3707, %v3739
      %v3753 = vcombine.low %v3714, %v3746
      %v3754 = vcombine.high %v3714, %v3746
      %v3755 = vcombine.low %v3574, %v3582
      %v3756 = vcombine.high %v3574, %v3582
      %v3758 = vunpack.c.l.s4 1983009808
      %v3759 = vunpack.c.0.s8 %v3758
      %v3760 = vlaneseq
      %v3761 = vshrl.u32 %v3760, 7
      %v3762 = vsub.s32 %v3759, %v3761
      %v3763 = vrot.slane %v3755, %v3762
      %v3765 = vunpack.c.l.s4 1983009808
      %v3766 = vunpack.c.0.s8 %v3765
      %v3767 = vlaneseq
      %v3768 = vshrl.u32 %v3767, 7
      %v3769 = vsub.s32 %v3766, %v3768
      %v3770 = vrot.slane %v3756, %v3769
      %v3771 = vcombine.low %v3578, %v3586
      %v3772 = vcombine.high %v3578, %v3586
      %v3774 = vunpack.c.l.s4 1983009808
      %v3775 = vunpack.c.0.s8 %v3774
      %v3776 = vlaneseq
      %v3777 = vshrl.u32 %v3776, 7
      %v3778 = vsub.s32 %v3775, %v3777
      %v3779 = vrot.slane %v3771, %v3778
      %v3781 = vunpack.c.l.s4 1983009808
      %v3782 = vunpack.c.0.s8 %v3781
      %v3783 = vlaneseq
      %v3784 = vshrl.u32 %v3783, 7
      %v3785 = vsub.s32 %v3782, %v3784
      %v3786 = vrot.slane %v3772, %v3785
      %v3787 = vcombine.low %v3590, %v3598
      %v3788 = vcombine.high %v3590, %v3598
      %v3790 = vunpack.c.l.s4 1983009808
      %v3791 = vunpack.c.0.s8 %v3790
      %v3792 = vlaneseq
      %v3793 = vshrl.u32 %v3792, 7
      %v3794 = vsub.s32 %v3791, %v3793
      %v3795 = vrot.slane %v3787, %v3794
      %v3797 = vunpack.c.l.s4 1983009808
      %v3798 = vunpack.c.0.s8 %v3797
      %v3799 = vlaneseq
      %v3800 = vshrl.u32 %v3799, 7
      %v3801 = vsub.s32 %v3798, %v3800
      %v3802 = vrot.slane %v3788, %v3801
      %v3803 = vcombine.low %v3594, %v3602
      %v3804 = vcombine.high %v3594, %v3602
      %v3806 = vunpack.c.l.s4 1983009808
      %v3807 = vunpack.c.0.s8 %v3806
      %v3808 = vlaneseq
      %v3809 = vshrl.u32 %v3808, 7
      %v3810 = vsub.s32 %v3807, %v3809
      %v3811 = vrot.slane %v3803, %v3810
      %v3813 = vunpack.c.l.s4 1983009808
      %v3814 = vunpack.c.0.s8 %v3813
      %v3815 = vlaneseq
      %v3816 = vshrl.u32 %v3815, 7
      %v3817 = vsub.s32 %v3814, %v3816
      %v3818 = vrot.slane %v3804, %v3817
      %v3819 = vcombine.low %v3763, %v3779
      %v3820 = vcombine.high %v3763, %v3779
      %v3822 = vunpack.c.l.s4 1934713408
      %v3823 = vunpack.c.0.s8 %v3822
      %v3824 = vlaneseq
      %v3825 = vshrl.u32 %v3824, 7
      %v3826 = vsub.s32 %v3823, %v3825
      %v3827 = vrot.slane %v3819, %v3826
      %v3829 = vunpack.c.l.s4 1934713408
      %v3830 = vunpack.c.0.s8 %v3829
      %v3831 = vlaneseq
      %v3832 = vshrl.u32 %v3831, 7
      %v3833 = vsub.s32 %v3830, %v3832
      %v3834 = vrot.slane %v3820, %v3833
      %v3835 = vcombine.low %v3770, %v3786
      %v3836 = vcombine.high %v3770, %v3786
      %v3838 = vunpack.c.l.s4 1934713408
      %v3839 = vunpack.c.0.s8 %v3838
      %v3840 = vlaneseq
      %v3841 = vshrl.u32 %v3840, 7
      %v3842 = vsub.s32 %v3839, %v3841
      %v3843 = vrot.slane %v3835, %v3842
      %v3845 = vunpack.c.l.s4 1934713408
      %v3846 = vunpack.c.0.s8 %v3845
      %v3847 = vlaneseq
      %v3848 = vshrl.u32 %v3847, 7
      %v3849 = vsub.s32 %v3846, %v3848
      %v3850 = vrot.slane %v3836, %v3849
      %v3851 = vcombine.low %v3795, %v3811
      %v3852 = vcombine.high %v3795, %v3811
      %v3854 = vunpack.c.l.s4 1934713408
      %v3855 = vunpack.c.0.s8 %v3854
      %v3856 = vlaneseq
      %v3857 = vshrl.u32 %v3856, 7
      %v3858 = vsub.s32 %v3855, %v3857
      %v3859 = vrot.slane %v3851, %v3858
      %v3861 = vunpack.c.l.s4 1934713408
      %v3862 = vunpack.c.0.s8 %v3861
      %v3863 = vlaneseq
      %v3864 = vshrl.u32 %v3863, 7
      %v3865 = vsub.s32 %v3862, %v3864
      %v3866 = vrot.slane %v3852, %v3865
      %v3867 = vcombine.low %v3802, %v3818
      %v3868 = vcombine.high %v3802, %v3818
      %v3870 = vunpack.c.l.s4 1934713408
      %v3871 = vunpack.c.0.s8 %v3870
      %v3872 = vlaneseq
      %v3873 = vshrl.u32 %v3872, 7
      %v3874 = vsub.s32 %v3871, %v3873
      %v3875 = vrot.slane %v3867, %v3874
      %v3877 = vunpack.c.l.s4 1934713408
      %v3878 = vunpack.c.0.s8 %v3877
      %v3879 = vlaneseq
      %v3880 = vshrl.u32 %v3879, 7
      %v3881 = vsub.s32 %v3878, %v3880
      %v3882 = vrot.slane %v3868, %v3881
      %v3883 = vcombine.low %v3827, %v3859
      %v3884 = vcombine.high %v3827, %v3859
      %v3885 = vcombine.low %v3834, %v3866
      %v3886 = vcombine.high %v3834, %v3866
      %v3887 = vcombine.low %v3843, %v3875
      %v3888 = vcombine.high %v3843, %v3875
      %v3889 = vcombine.low %v3850, %v3882
      %v3890 = vcombine.high %v3850, %v3882
      %v3893 = vpack.i.b16 %v3883, %v3747
      %v3894 = vshrl.u32 %v3747, 16
      %v3895 = vshrl.u32 %v3883, 16
      %v3896 = vpack.i.b16 %v3895, %v3894
      %v3899 = vpack.i.b16 %v3884, %v3748
      %v3900 = vshrl.u32 %v3748, 16
      %v3901 = vshrl.u32 %v3884, 16
      %v3902 = vpack.i.b16 %v3901, %v3900
      %v3905 = vpack.i.b16 %v3885, %v3749
      %v3906 = vshrl.u32 %v3749, 16
      %v3907 = vshrl.u32 %v3885, 16
      %v3908 = vpack.i.b16 %v3907, %v3906
      %v3911 = vpack.i.b16 %v3886, %v3750
      %v3912 = vshrl.u32 %v3750, 16
      %v3913 = vshrl.u32 %v3886, 16
      %v3914 = vpack.i.b16 %v3913, %v3912
      %v3917 = vpack.i.b16 %v3887, %v3751
      %v3918 = vshrl.u32 %v3751, 16
      %v3919 = vshrl.u32 %v3887, 16
      %v3920 = vpack.i.b16 %v3919, %v3918
      %v3923 = vpack.i.b16 %v3888, %v3752
      %v3924 = vshrl.u32 %v3752, 16
      %v3925 = vshrl.u32 %v3888, 16
      %v3926 = vpack.i.b16 %v3925, %v3924
      %v3929 = vpack.i.b16 %v3889, %v3753
      %v3930 = vshrl.u32 %v3753, 16
      %v3931 = vshrl.u32 %v3889, 16
      %v3932 = vpack.i.b16 %v3931, %v3930
      %v3935 = vpack.i.b16 %v3890, %v3754
      %v3936 = vshrl.u32 %v3754, 16
      %v3937 = vshrl.u32 %v3890, 16
      %v3938 = vpack.i.b16 %v3937, %v3936
      %3939 = vrot.lane.b32.xlu0 %v3896, 16
      %v3940 = vpop.permute.xlu0 %3939
      %3941 = vrot.lane.b32.xlu0 %v3899, 32
      %v3942 = vpop.permute.xlu0 %3941
      %3943 = vrot.lane.b32.xlu0 %v3902, 48
      %v3944 = vpop.permute.xlu0 %3943
      %3945 = vrot.lane.b32.xlu0 %v3905, 64
      %v3946 = vpop.permute.xlu0 %3945
      %3947 = vrot.lane.b32.xlu0 %v3908, 80
      %v3948 = vpop.permute.xlu0 %3947
      %3949 = vrot.lane.b32.xlu0 %v3911, 96
      %v3950 = vpop.permute.xlu0 %3949
      %3951 = vrot.lane.b32.xlu0 %v3914, 112
      %v3952 = vpop.permute.xlu0 %3951
      %3953 = vrot.lane.b32.xlu0 %v3920, 16
      %v3954 = vpop.permute.xlu0 %3953
      %3955 = vrot.lane.b32.xlu0 %v3923, 32
      %v3956 = vpop.permute.xlu0 %3955
      %3957 = vrot.lane.b32.xlu0 %v3926, 48
      %v3958 = vpop.permute.xlu0 %3957
      %3959 = vrot.lane.b32.xlu0 %v3929, 64
      %v3960 = vpop.permute.xlu0 %3959
      %3961 = vrot.lane.b32.xlu0 %v3932, 80
      %v3962 = vpop.permute.xlu0 %3961
      %3963 = vrot.lane.b32.xlu0 %v3935, 96
      %v3964 = vpop.permute.xlu0 %3963
      %3965 = vrot.lane.b32.xlu0 %v3938, 112
      %v3966 = vpop.permute.xlu0 %3965
      %v3969 = vsel %vm1394, %v3893, %v3940
      %v3971 = vsel %vm1398, %v3969, %v3942
      %v3973 = vsel %vm1401, %v3971, %v3944
      %v3975 = vsel %vm1404, %v3973, %v3946
      %v3977 = vsel %vm1407, %v3975, %v3948
      %v3979 = vsel %vm1410, %v3977, %v3950
      %v3981 = vsel %vm1413, %v3979, %v3952
      %v3985 = vsel %vm1394, %v3917, %v3954
      %v3987 = vsel %vm1398, %v3985, %v3956
      %v3989 = vsel %vm1401, %v3987, %v3958
      %v3991 = vsel %vm1404, %v3989, %v3960
      %v3993 = vsel %vm1407, %v3991, %v3962
      %v3995 = vsel %vm1410, %v3993, %v3964
      %v3997 = vsel %vm1413, %v3995, %v3966
      %s3999 = scalar_lea.vmem %s3, 40
      %v4000 = vld [vmem:[%s3999] sm:$0xf]
      %v4001 = vld [vmem:[%s3999 + $0x4] sm:$0xf]
      %v4004 = vunpack.c.l.b16 %v4000
      %v4005 = vunpack.c.l.b16 %v4001
      %v4006 = vpack.c.b16 %v4005, %v4004
      %v4008 = vsel %vm1394, %v4006, 0
      %4010 = vmatprep.subr.bf16.mxu0 %v3997
      %4011 = vmatpush1.bf16.msra.mxu0 %v3981
      %4012 = vmatprep.subr.bf16.mxu0 0
      %4013 = vmatpush1.bf16.msra.mxu0 0
      %4014 = vmatprep.subr.bf16.mxu0 0
      %4015 = vmatpush1.bf16.msra.mxu0 0
      %4016 = vmatprep.subr.bf16.mxu0 0
      %4017 = vmatpush1.bf16.msra.mxu0 0
      %4018 = vmatprep.subr.bf16.mxu0 0
      %4019 = vmatpush1.bf16.msra.mxu0 0
      %4020 = vmatprep.subr.bf16.mxu0 0
      %4021 = vmatpush1.bf16.msra.mxu0 0
      %4022 = vmatprep.subr.bf16.mxu0 0
      %4023 = vmatpush1.bf16.msra.mxu0 0
      %4024 = vmatprep.subr.bf16.mxu0 0
      %4025 = vmatpush1.bf16.msra.mxu0 0
      %4026 = vmatprep.subr.bf16.mxu0 0
      %4027 = vmatpush1.bf16.msra.mxu0 0
      %4028 = vmatprep.subr.bf16.mxu0 0
      %4029 = vmatpush1.bf16.msra.mxu0 0
      %4030 = vmatprep.subr.bf16.mxu0 0
      %4031 = vmatpush1.bf16.msra.mxu0 0
      %4032 = vmatprep.subr.bf16.mxu0 0
      %4033 = vmatpush1.bf16.msra.mxu0 0
      %4034 = vmatprep.subr.bf16.mxu0 0
      %4035 = vmatpush1.bf16.msra.mxu0 0
      %4036 = vmatprep.subr.bf16.mxu0 0
      %4037 = vmatpush1.bf16.msra.mxu0 0
      %4038 = vmatprep.subr.bf16.mxu0 0
      %4039 = vmatpush1.bf16.msra.mxu0 0
      %4040 = vmatprep.subr.bf16.mxu0 0
      %4041 = vmatpush1.bf16.msra.mxu0 0
      %4042 = vmatprep.mubr.bf16.mxu0 0
      %4043 = vmatmul.mubr.bf16.gmra.mrb[0].mxu0 %v4008
      %v4044 = vpop.f32.mrb[0].mxu0
      %v4045 = vadd.f32 0.0, %v4044
      %v4046 = vpop.f32.mrb[0].mxu0
      %v4047 = vadd.f32 0.0, %v4046
      %v4048 = vpop.f32.mrb[0].mxu0
      %v4049 = vadd.f32 0.0, %v4048
      %v4050 = vpop.f32.mrb[0].mxu0
      %v4051 = vadd.f32 0.0, %v4050
      %4052 = vdwg.mxu0
      %v4053 = vadd.f32 %v3567, %v4045
      %v4054 = vadd.f32 %v3568, %v4047
      %v4055 = vadd.f32 %v3569, %v4049
      %v4056 = vadd.f32 %v3570, %v4051
      %vm4073 = vcmask 1046528
      %v4074 = vrot.slane %v998, 1
      %v4075 = vrot.slane %v1000, 1
      %v4076 = vsel %vm4073, %v4074, %v4075
      %v4077 = vrot.slane %v1001, 1
      %v4078 = vrot.slane %v1003, 1
      %v4079 = vsel %vm4073, %v4077, %v4078
      %v4080 = vrot.slane %v1004, 1
      %v4081 = vrot.slane %v1006, 1
      %v4082 = vsel %vm4073, %v4080, %v4081
      %v4083 = vrot.slane %v1007, 1
      %v4084 = vrot.slane %v1009, 1
      %v4085 = vsel %vm4073, %v4083, %v4084
      %v4086 = vrot.slane %v1010, 1
      %v4087 = vrot.slane %v1012, 1
      %v4088 = vsel %vm4073, %v4086, %v4087
      %v4089 = vrot.slane %v1013, 1
      %v4090 = vrot.slane %v1015, 1
      %v4091 = vsel %vm4073, %v4089, %v4090
      %v4092 = vrot.slane %v1016, 1
      %v4093 = vrot.slane %v1018, 1
      %v4094 = vsel %vm4073, %v4092, %v4093
      %v4095 = vrot.slane %v1019, 1
      %v4096 = vrot.slane %v1021, 1
      %v4097 = vsel %vm4073, %v4095, %v4096
      %v4098 = vrot.slane %v1022, 1
      %v4099 = vrot.slane %v1024, 1
      %v4100 = vsel %vm4073, %v4098, %v4099
      %v4101 = vrot.slane %v1025, 1
      %v4102 = vrot.slane %v1027, 1
      %v4103 = vsel %vm4073, %v4101, %v4102
      %v4104 = vrot.slane %v1028, 1
      %v4105 = vrot.slane %v1030, 1
      %v4106 = vsel %vm4073, %v4104, %v4105
      %v4107 = vrot.slane %v1031, 1
      %v4108 = vrot.slane %v1033, 1
      %v4109 = vsel %vm4073, %v4107, %v4108
      %v4110 = vrot.slane %v1034, 1
      %v4111 = vrot.slane %v1036, 1
      %v4112 = vsel %vm4073, %v4110, %v4111
      %v4113 = vrot.slane %v1037, 1
      %v4114 = vrot.slane %v1039, 1
      %v4115 = vsel %vm4073, %v4113, %v4114
      %v4116 = vrot.slane %v1040, 1
      %v4117 = vrot.slane %v1042, 1
      %v4118 = vsel %vm4073, %v4116, %v4117
      %v4119 = vrot.slane %v1043, 1
      %v4120 = vrot.slane %v1045, 1
      %v4121 = vsel %vm4073, %v4119, %v4120
      %v4138 = vcombine.low %v4076, %v4088
      %v4139 = vcombine.high %v4076, %v4088
      %v4141 = vunpack.c.l.s4 1983009808
      %v4142 = vunpack.c.0.s8 %v4141
      %v4143 = vlaneseq
      %v4144 = vshrl.u32 %v4143, 7
      %v4145 = vsub.s32 %v4142, %v4144
      %v4146 = vrot.slane %v4138, %v4145
      %v4148 = vunpack.c.l.s4 1983009808
      %v4149 = vunpack.c.0.s8 %v4148
      %v4150 = vlaneseq
      %v4151 = vshrl.u32 %v4150, 7
      %v4152 = vsub.s32 %v4149, %v4151
      %v4153 = vrot.slane %v4139, %v4152
      %v4154 = vcombine.low %v4082, %v4094
      %v4155 = vcombine.high %v4082, %v4094
      %v4157 = vunpack.c.l.s4 1983009808
      %v4158 = vunpack.c.0.s8 %v4157
      %v4159 = vlaneseq
      %v4160 = vshrl.u32 %v4159, 7
      %v4161 = vsub.s32 %v4158, %v4160
      %v4162 = vrot.slane %v4154, %v4161
      %v4164 = vunpack.c.l.s4 1983009808
      %v4165 = vunpack.c.0.s8 %v4164
      %v4166 = vlaneseq
      %v4167 = vshrl.u32 %v4166, 7
      %v4168 = vsub.s32 %v4165, %v4167
      %v4169 = vrot.slane %v4155, %v4168
      %v4170 = vcombine.low %v4100, %v4112
      %v4171 = vcombine.high %v4100, %v4112
      %v4173 = vunpack.c.l.s4 1983009808
      %v4174 = vunpack.c.0.s8 %v4173
      %v4175 = vlaneseq
      %v4176 = vshrl.u32 %v4175, 7
      %v4177 = vsub.s32 %v4174, %v4176
      %v4178 = vrot.slane %v4170, %v4177
      %v4180 = vunpack.c.l.s4 1983009808
      %v4181 = vunpack.c.0.s8 %v4180
      %v4182 = vlaneseq
      %v4183 = vshrl.u32 %v4182, 7
      %v4184 = vsub.s32 %v4181, %v4183
      %v4185 = vrot.slane %v4171, %v4184
      %v4186 = vcombine.low %v4106, %v4118
      %v4187 = vcombine.high %v4106, %v4118
      %v4189 = vunpack.c.l.s4 1983009808
      %v4190 = vunpack.c.0.s8 %v4189
      %v4191 = vlaneseq
      %v4192 = vshrl.u32 %v4191, 7
      %v4193 = vsub.s32 %v4190, %v4192
      %v4194 = vrot.slane %v4186, %v4193
      %v4196 = vunpack.c.l.s4 1983009808
      %v4197 = vunpack.c.0.s8 %v4196
      %v4198 = vlaneseq
      %v4199 = vshrl.u32 %v4198, 7
      %v4200 = vsub.s32 %v4197, %v4199
      %v4201 = vrot.slane %v4187, %v4200
      %v4202 = vcombine.low %v4146, %v4162
      %v4203 = vcombine.high %v4146, %v4162
      %v4205 = vunpack.c.l.s4 1934713408
      %v4206 = vunpack.c.0.s8 %v4205
      %v4207 = vlaneseq
      %v4208 = vshrl.u32 %v4207, 7
      %v4209 = vsub.s32 %v4206, %v4208
      %v4210 = vrot.slane %v4202, %v4209
      %v4212 = vunpack.c.l.s4 1934713408
      %v4213 = vunpack.c.0.s8 %v4212
      %v4214 = vlaneseq
      %v4215 = vshrl.u32 %v4214, 7
      %v4216 = vsub.s32 %v4213, %v4215
      %v4217 = vrot.slane %v4203, %v4216
      %v4218 = vcombine.low %v4153, %v4169
      %v4219 = vcombine.high %v4153, %v4169
      %v4221 = vunpack.c.l.s4 1934713408
      %v4222 = vunpack.c.0.s8 %v4221
      %v4223 = vlaneseq
      %v4224 = vshrl.u32 %v4223, 7
      %v4225 = vsub.s32 %v4222, %v4224
      %v4226 = vrot.slane %v4218, %v4225
      %v4228 = vunpack.c.l.s4 1934713408
      %v4229 = vunpack.c.0.s8 %v4228
      %v4230 = vlaneseq
      %v4231 = vshrl.u32 %v4230, 7
      %v4232 = vsub.s32 %v4229, %v4231
      %v4233 = vrot.slane %v4219, %v4232
      %v4234 = vcombine.low %v4178, %v4194
      %v4235 = vcombine.high %v4178, %v4194
      %v4237 = vunpack.c.l.s4 1934713408
      %v4238 = vunpack.c.0.s8 %v4237
      %v4239 = vlaneseq
      %v4240 = vshrl.u32 %v4239, 7
      %v4241 = vsub.s32 %v4238, %v4240
      %v4242 = vrot.slane %v4234, %v4241
      %v4244 = vunpack.c.l.s4 1934713408
      %v4245 = vunpack.c.0.s8 %v4244
      %v4246 = vlaneseq
      %v4247 = vshrl.u32 %v4246, 7
      %v4248 = vsub.s32 %v4245, %v4247
      %v4249 = vrot.slane %v4235, %v4248
      %v4250 = vcombine.low %v4185, %v4201
      %v4251 = vcombine.high %v4185, %v4201
      %v4253 = vunpack.c.l.s4 1934713408
      %v4254 = vunpack.c.0.s8 %v4253
      %v4255 = vlaneseq
      %v4256 = vshrl.u32 %v4255, 7
      %v4257 = vsub.s32 %v4254, %v4256
      %v4258 = vrot.slane %v4250, %v4257
      %v4260 = vunpack.c.l.s4 1934713408
      %v4261 = vunpack.c.0.s8 %v4260
      %v4262 = vlaneseq
      %v4263 = vshrl.u32 %v4262, 7
      %v4264 = vsub.s32 %v4261, %v4263
      %v4265 = vrot.slane %v4251, %v4264
      %v4266 = vcombine.low %v4210, %v4242
      %v4267 = vcombine.high %v4210, %v4242
      %v4268 = vcombine.low %v4217, %v4249
      %v4269 = vcombine.high %v4217, %v4249
      %v4270 = vcombine.low %v4226, %v4258
      %v4271 = vcombine.high %v4226, %v4258
      %v4272 = vcombine.low %v4233, %v4265
      %v4273 = vcombine.high %v4233, %v4265
      %v4274 = vcombine.low %v4079, %v4091
      %v4275 = vcombine.high %v4079, %v4091
      %v4277 = vunpack.c.l.s4 1983009808
      %v4278 = vunpack.c.0.s8 %v4277
      %v4279 = vlaneseq
      %v4280 = vshrl.u32 %v4279, 7
      %v4281 = vsub.s32 %v4278, %v4280
      %v4282 = vrot.slane %v4274, %v4281
      %v4284 = vunpack.c.l.s4 1983009808
      %v4285 = vunpack.c.0.s8 %v4284
      %v4286 = vlaneseq
      %v4287 = vshrl.u32 %v4286, 7
      %v4288 = vsub.s32 %v4285, %v4287
      %v4289 = vrot.slane %v4275, %v4288
      %v4290 = vcombine.low %v4085, %v4097
      %v4291 = vcombine.high %v4085, %v4097
      %v4293 = vunpack.c.l.s4 1983009808
      %v4294 = vunpack.c.0.s8 %v4293
      %v4295 = vlaneseq
      %v4296 = vshrl.u32 %v4295, 7
      %v4297 = vsub.s32 %v4294, %v4296
      %v4298 = vrot.slane %v4290, %v4297
      %v4300 = vunpack.c.l.s4 1983009808
      %v4301 = vunpack.c.0.s8 %v4300
      %v4302 = vlaneseq
      %v4303 = vshrl.u32 %v4302, 7
      %v4304 = vsub.s32 %v4301, %v4303
      %v4305 = vrot.slane %v4291, %v4304
      %v4306 = vcombine.low %v4103, %v4115
      %v4307 = vcombine.high %v4103, %v4115
      %v4309 = vunpack.c.l.s4 1983009808
      %v4310 = vunpack.c.0.s8 %v4309
      %v4311 = vlaneseq
      %v4312 = vshrl.u32 %v4311, 7
      %v4313 = vsub.s32 %v4310, %v4312
      %v4314 = vrot.slane %v4306, %v4313
      %v4316 = vunpack.c.l.s4 1983009808
      %v4317 = vunpack.c.0.s8 %v4316
      %v4318 = vlaneseq
      %v4319 = vshrl.u32 %v4318, 7
      %v4320 = vsub.s32 %v4317, %v4319
      %v4321 = vrot.slane %v4307, %v4320
      %v4322 = vcombine.low %v4109, %v4121
      %v4323 = vcombine.high %v4109, %v4121
      %v4325 = vunpack.c.l.s4 1983009808
      %v4326 = vunpack.c.0.s8 %v4325
      %v4327 = vlaneseq
      %v4328 = vshrl.u32 %v4327, 7
      %v4329 = vsub.s32 %v4326, %v4328
      %v4330 = vrot.slane %v4322, %v4329
      %v4332 = vunpack.c.l.s4 1983009808
      %v4333 = vunpack.c.0.s8 %v4332
      %v4334 = vlaneseq
      %v4335 = vshrl.u32 %v4334, 7
      %v4336 = vsub.s32 %v4333, %v4335
      %v4337 = vrot.slane %v4323, %v4336
      %v4338 = vcombine.low %v4282, %v4298
      %v4339 = vcombine.high %v4282, %v4298
      %v4341 = vunpack.c.l.s4 1934713408
      %v4342 = vunpack.c.0.s8 %v4341
      %v4343 = vlaneseq
      %v4344 = vshrl.u32 %v4343, 7
      %v4345 = vsub.s32 %v4342, %v4344
      %v4346 = vrot.slane %v4338, %v4345
      %v4348 = vunpack.c.l.s4 1934713408
      %v4349 = vunpack.c.0.s8 %v4348
      %v4350 = vlaneseq
      %v4351 = vshrl.u32 %v4350, 7
      %v4352 = vsub.s32 %v4349, %v4351
      %v4353 = vrot.slane %v4339, %v4352
      %v4354 = vcombine.low %v4289, %v4305
      %v4355 = vcombine.high %v4289, %v4305
      %v4357 = vunpack.c.l.s4 1934713408
      %v4358 = vunpack.c.0.s8 %v4357
      %v4359 = vlaneseq
      %v4360 = vshrl.u32 %v4359, 7
      %v4361 = vsub.s32 %v4358, %v4360
      %v4362 = vrot.slane %v4354, %v4361
      %v4364 = vunpack.c.l.s4 1934713408
      %v4365 = vunpack.c.0.s8 %v4364
      %v4366 = vlaneseq
      %v4367 = vshrl.u32 %v4366, 7
      %v4368 = vsub.s32 %v4365, %v4367
      %v4369 = vrot.slane %v4355, %v4368
      %v4370 = vcombine.low %v4314, %v4330
      %v4371 = vcombine.high %v4314, %v4330
      %v4373 = vunpack.c.l.s4 1934713408
      %v4374 = vunpack.c.0.s8 %v4373
      %v4375 = vlaneseq
      %v4376 = vshrl.u32 %v4375, 7
      %v4377 = vsub.s32 %v4374, %v4376
      %v4378 = vrot.slane %v4370, %v4377
      %v4380 = vunpack.c.l.s4 1934713408
      %v4381 = vunpack.c.0.s8 %v4380
      %v4382 = vlaneseq
      %v4383 = vshrl.u32 %v4382, 7
      %v4384 = vsub.s32 %v4381, %v4383
      %v4385 = vrot.slane %v4371, %v4384
      %v4386 = vcombine.low %v4321, %v4337
      %v4387 = vcombine.high %v4321, %v4337
      %v4389 = vunpack.c.l.s4 1934713408
      %v4390 = vunpack.c.0.s8 %v4389
      %v4391 = vlaneseq
      %v4392 = vshrl.u32 %v4391, 7
      %v4393 = vsub.s32 %v4390, %v4392
      %v4394 = vrot.slane %v4386, %v4393
      %v4396 = vunpack.c.l.s4 1934713408
      %v4397 = vunpack.c.0.s8 %v4396
      %v4398 = vlaneseq
      %v4399 = vshrl.u32 %v4398, 7
      %v4400 = vsub.s32 %v4397, %v4399
      %v4401 = vrot.slane %v4387, %v4400
      %v4402 = vcombine.low %v4346, %v4378
      %v4403 = vcombine.high %v4346, %v4378
      %v4404 = vcombine.low %v4353, %v4385
      %v4405 = vcombine.high %v4353, %v4385
      %v4406 = vcombine.low %v4362, %v4394
      %v4407 = vcombine.high %v4362, %v4394
      %v4408 = vcombine.low %v4369, %v4401
      %v4409 = vcombine.high %v4369, %v4401
      %v4412 = vpack.i.b16 %v4402, %v4266
      %v4413 = vshrl.u32 %v4266, 16
      %v4414 = vshrl.u32 %v4402, 16
      %v4415 = vpack.i.b16 %v4414, %v4413
      %v4418 = vpack.i.b16 %v4403, %v4267
      %v4419 = vshrl.u32 %v4267, 16
      %v4420 = vshrl.u32 %v4403, 16
      %v4421 = vpack.i.b16 %v4420, %v4419
      %v4424 = vpack.i.b16 %v4404, %v4268
      %v4425 = vshrl.u32 %v4268, 16
      %v4426 = vshrl.u32 %v4404, 16
      %v4427 = vpack.i.b16 %v4426, %v4425
      %v4430 = vpack.i.b16 %v4405, %v4269
      %v4431 = vshrl.u32 %v4269, 16
      %v4432 = vshrl.u32 %v4405, 16
      %v4433 = vpack.i.b16 %v4432, %v4431
      %v4436 = vpack.i.b16 %v4406, %v4270
      %v4437 = vshrl.u32 %v4270, 16
      %v4438 = vshrl.u32 %v4406, 16
      %v4439 = vpack.i.b16 %v4438, %v4437
      %v4442 = vpack.i.b16 %v4407, %v4271
      %v4443 = vshrl.u32 %v4271, 16
      %v4444 = vshrl.u32 %v4407, 16
      %v4445 = vpack.i.b16 %v4444, %v4443
      %v4448 = vpack.i.b16 %v4408, %v4272
      %v4449 = vshrl.u32 %v4272, 16
      %v4450 = vshrl.u32 %v4408, 16
      %v4451 = vpack.i.b16 %v4450, %v4449
      %v4454 = vpack.i.b16 %v4409, %v4273
      %v4455 = vshrl.u32 %v4273, 16
      %v4456 = vshrl.u32 %v4409, 16
      %v4457 = vpack.i.b16 %v4456, %v4455
      %4458 = vrot.lane.b32.xlu0 %v4415, 16
      %v4459 = vpop.permute.xlu0 %4458
      %4460 = vrot.lane.b32.xlu0 %v4418, 32
      %v4461 = vpop.permute.xlu0 %4460
      %4462 = vrot.lane.b32.xlu0 %v4421, 48
      %v4463 = vpop.permute.xlu0 %4462
      %4464 = vrot.lane.b32.xlu0 %v4424, 64
      %v4465 = vpop.permute.xlu0 %4464
      %4466 = vrot.lane.b32.xlu0 %v4427, 80
      %v4467 = vpop.permute.xlu0 %4466
      %4468 = vrot.lane.b32.xlu0 %v4430, 96
      %v4469 = vpop.permute.xlu0 %4468
      %4470 = vrot.lane.b32.xlu0 %v4433, 112
      %v4471 = vpop.permute.xlu0 %4470
      %4472 = vrot.lane.b32.xlu0 %v4439, 16
      %v4473 = vpop.permute.xlu0 %4472
      %4474 = vrot.lane.b32.xlu0 %v4442, 32
      %v4475 = vpop.permute.xlu0 %4474
      %4476 = vrot.lane.b32.xlu0 %v4445, 48
      %v4477 = vpop.permute.xlu0 %4476
      %4478 = vrot.lane.b32.xlu0 %v4448, 64
      %v4479 = vpop.permute.xlu0 %4478
      %4480 = vrot.lane.b32.xlu0 %v4451, 80
      %v4481 = vpop.permute.xlu0 %4480
      %4482 = vrot.lane.b32.xlu0 %v4454, 96
      %v4483 = vpop.permute.xlu0 %4482
      %4484 = vrot.lane.b32.xlu0 %v4457, 112
      %v4485 = vpop.permute.xlu0 %4484
      %v4488 = vsel %vm1394, %v4412, %v4459
      %v4490 = vsel %vm1398, %v4488, %v4461
      %v4492 = vsel %vm1401, %v4490, %v4463
      %v4494 = vsel %vm1404, %v4492, %v4465
      %v4496 = vsel %vm1407, %v4494, %v4467
      %v4498 = vsel %vm1410, %v4496, %v4469
      %v4500 = vsel %vm1413, %v4498, %v4471
      %v4504 = vsel %vm1394, %v4436, %v4473
      %v4506 = vsel %vm1398, %v4504, %v4475
      %v4508 = vsel %vm1401, %v4506, %v4477
      %v4510 = vsel %vm1404, %v4508, %v4479
      %v4512 = vsel %vm1407, %v4510, %v4481
      %v4514 = vsel %vm1410, %v4512, %v4483
      %v4516 = vsel %vm1413, %v4514, %v4485
      %s4518 = scalar_lea.vmem %s3, 48
      %v4519 = vld [vmem:[%s4518] sm:$0xf]
      %v4520 = vld [vmem:[%s4518 + $0x4] sm:$0xf]
      %v4523 = vunpack.c.l.b16 %v4519
      %v4524 = vunpack.c.l.b16 %v4520
      %v4525 = vpack.c.b16 %v4524, %v4523
      %v4527 = vsel %vm1394, %v4525, 0
      %4529 = vmatprep.subr.bf16.mxu0 %v4516
      %4530 = vmatpush1.bf16.msra.mxu0 %v4500
      %4531 = vmatprep.subr.bf16.mxu0 0
      %4532 = vmatpush1.bf16.msra.mxu0 0
      %4533 = vmatprep.subr.bf16.mxu0 0
      %4534 = vmatpush1.bf16.msra.mxu0 0
      %4535 = vmatprep.subr.bf16.mxu0 0
      %4536 = vmatpush1.bf16.msra.mxu0 0
      %4537 = vmatprep.subr.bf16.mxu0 0
      %4538 = vmatpush1.bf16.msra.mxu0 0
      %4539 = vmatprep.subr.bf16.mxu0 0
      %4540 = vmatpush1.bf16.msra.mxu0 0
      %4541 = vmatprep.subr.bf16.mxu0 0
      %4542 = vmatpush1.bf16.msra.mxu0 0
      %4543 = vmatprep.subr.bf16.mxu0 0
      %4544 = vmatpush1.bf16.msra.mxu0 0
      %4545 = vmatprep.subr.bf16.mxu0 0
      %4546 = vmatpush1.bf16.msra.mxu0 0
      %4547 = vmatprep.subr.bf16.mxu0 0
      %4548 = vmatpush1.bf16.msra.mxu0 0
      %4549 = vmatprep.subr.bf16.mxu0 0
      %4550 = vmatpush1.bf16.msra.mxu0 0
      %4551 = vmatprep.subr.bf16.mxu0 0
      %4552 = vmatpush1.bf16.msra.mxu0 0
      %4553 = vmatprep.subr.bf16.mxu0 0
      %4554 = vmatpush1.bf16.msra.mxu0 0
      %4555 = vmatprep.subr.bf16.mxu0 0
      %4556 = vmatpush1.bf16.msra.mxu0 0
      %4557 = vmatprep.subr.bf16.mxu0 0
      %4558 = vmatpush1.bf16.msra.mxu0 0
      %4559 = vmatprep.subr.bf16.mxu0 0
      %4560 = vmatpush1.bf16.msra.mxu0 0
      %4561 = vmatprep.mubr.bf16.mxu0 0
      %4562 = vmatmul.mubr.bf16.gmra.mrb[0].mxu0 %v4527
      %v4563 = vpop.f32.mrb[0].mxu0
      %v4564 = vadd.f32 0.0, %v4563
      %v4565 = vpop.f32.mrb[0].mxu0
      %v4566 = vadd.f32 0.0, %v4565
      %v4567 = vpop.f32.mrb[0].mxu0
      %v4568 = vadd.f32 0.0, %v4567
      %v4569 = vpop.f32.mrb[0].mxu0
      %v4570 = vadd.f32 0.0, %v4569
      %4571 = vdwg.mxu0
      %v4572 = vadd.f32 %v4053, %v4564
      %v4573 = vadd.f32 %v4054, %v4566
      %v4574 = vadd.f32 %v4055, %v4568
      %v4575 = vadd.f32 %v4056, %v4570
      %4576 = vrot.lane.b32.xlu0 %v4076, 127
      %v4577 = vpop.permute.xlu0 %4576
      %4578 = vrot.lane.b32.xlu0 %v4079, 127
      %v4579 = vpop.permute.xlu0 %4578
      %4580 = vrot.lane.b32.xlu0 %v4082, 127
      %v4581 = vpop.permute.xlu0 %4580
      %4582 = vrot.lane.b32.xlu0 %v4085, 127
      %v4583 = vpop.permute.xlu0 %4582
      %4584 = vrot.lane.b32.xlu0 %v4088, 127
      %v4585 = vpop.permute.xlu0 %4584
      %4586 = vrot.lane.b32.xlu0 %v4091, 127
      %v4587 = vpop.permute.xlu0 %4586
      %4588 = vrot.lane.b32.xlu0 %v4094, 127
      %v4589 = vpop.permute.xlu0 %4588
      %4590 = vrot.lane.b32.xlu0 %v4097, 127
      %v4591 = vpop.permute.xlu0 %4590
      %4592 = vrot.lane.b32.xlu0 %v4100, 127
      %v4593 = vpop.permute.xlu0 %4592
      %4594 = vrot.lane.b32.xlu0 %v4103, 127
      %v4595 = vpop.permute.xlu0 %4594
      %4596 = vrot.lane.b32.xlu0 %v4106, 127
      %v4597 = vpop.permute.xlu0 %4596
      %4598 = vrot.lane.b32.xlu0 %v4109, 127
      %v4599 = vpop.permute.xlu0 %4598
      %4600 = vrot.lane.b32.xlu0 %v4112, 127
      %v4601 = vpop.permute.xlu0 %4600
      %4602 = vrot.lane.b32.xlu0 %v4115, 127
      %v4603 = vpop.permute.xlu0 %4602
      %4604 = vrot.lane.b32.xlu0 %v4118, 127
      %v4605 = vpop.permute.xlu0 %4604
      %4606 = vrot.lane.b32.xlu0 %v4121, 127
      %v4607 = vpop.permute.xlu0 %4606
      %v4624 = vcombine.low %v4577, %v4585
      %v4625 = vcombine.high %v4577, %v4585
      %v4627 = vunpack.c.l.s4 1983009808
      %v4628 = vunpack.c.0.s8 %v4627
      %v4629 = vlaneseq
      %v4630 = vshrl.u32 %v4629, 7
      %v4631 = vsub.s32 %v4628, %v4630
      %v4632 = vrot.slane %v4624, %v4631
      %v4634 = vunpack.c.l.s4 1983009808
      %v4635 = vunpack.c.0.s8 %v4634
      %v4636 = vlaneseq
      %v4637 = vshrl.u32 %v4636, 7
      %v4638 = vsub.s32 %v4635, %v4637
      %v4639 = vrot.slane %v4625, %v4638
      %v4640 = vcombine.low %v4581, %v4589
      %v4641 = vcombine.high %v4581, %v4589
      %v4643 = vunpack.c.l.s4 1983009808
      %v4644 = vunpack.c.0.s8 %v4643
      %v4645 = vlaneseq
      %v4646 = vshrl.u32 %v4645, 7
      %v4647 = vsub.s32 %v4644, %v4646
      %v4648 = vrot.slane %v4640, %v4647
      %v4650 = vunpack.c.l.s4 1983009808
      %v4651 = vunpack.c.0.s8 %v4650
      %v4652 = vlaneseq
      %v4653 = vshrl.u32 %v4652, 7
      %v4654 = vsub.s32 %v4651, %v4653
      %v4655 = vrot.slane %v4641, %v4654
      %v4656 = vcombine.low %v4593, %v4601
      %v4657 = vcombine.high %v4593, %v4601
      %v4659 = vunpack.c.l.s4 1983009808
      %v4660 = vunpack.c.0.s8 %v4659
      %v4661 = vlaneseq
      %v4662 = vshrl.u32 %v4661, 7
      %v4663 = vsub.s32 %v4660, %v4662
      %v4664 = vrot.slane %v4656, %v4663
      %v4666 = vunpack.c.l.s4 1983009808
      %v4667 = vunpack.c.0.s8 %v4666
      %v4668 = vlaneseq
      %v4669 = vshrl.u32 %v4668, 7
      %v4670 = vsub.s32 %v4667, %v4669
      %v4671 = vrot.slane %v4657, %v4670
      %v4672 = vcombine.low %v4597, %v4605
      %v4673 = vcombine.high %v4597, %v4605
      %v4675 = vunpack.c.l.s4 1983009808
      %v4676 = vunpack.c.0.s8 %v4675
      %v4677 = vlaneseq
      %v4678 = vshrl.u32 %v4677, 7
      %v4679 = vsub.s32 %v4676, %v4678
      %v4680 = vrot.slane %v4672, %v4679
      %v4682 = vunpack.c.l.s4 1983009808
      %v4683 = vunpack.c.0.s8 %v4682
      %v4684 = vlaneseq
      %v4685 = vshrl.u32 %v4684, 7
      %v4686 = vsub.s32 %v4683, %v4685
      %v4687 = vrot.slane %v4673, %v4686
      %v4688 = vcombine.low %v4632, %v4648
      %v4689 = vcombine.high %v4632, %v4648
      %v4691 = vunpack.c.l.s4 1934713408
      %v4692 = vunpack.c.0.s8 %v4691
      %v4693 = vlaneseq
      %v4694 = vshrl.u32 %v4693, 7
      %v4695 = vsub.s32 %v4692, %v4694
      %v4696 = vrot.slane %v4688, %v4695
      %v4698 = vunpack.c.l.s4 1934713408
      %v4699 = vunpack.c.0.s8 %v4698
      %v4700 = vlaneseq
      %v4701 = vshrl.u32 %v4700, 7
      %v4702 = vsub.s32 %v4699, %v4701
      %v4703 = vrot.slane %v4689, %v4702
      %v4704 = vcombine.low %v4639, %v4655
      %v4705 = vcombine.high %v4639, %v4655
      %v4707 = vunpack.c.l.s4 1934713408
      %v4708 = vunpack.c.0.s8 %v4707
      %v4709 = vlaneseq
      %v4710 = vshrl.u32 %v4709, 7
      %v4711 = vsub.s32 %v4708, %v4710
      %v4712 = vrot.slane %v4704, %v4711
      %v4714 = vunpack.c.l.s4 1934713408
      %v4715 = vunpack.c.0.s8 %v4714
      %v4716 = vlaneseq
      %v4717 = vshrl.u32 %v4716, 7
      %v4718 = vsub.s32 %v4715, %v4717
      %v4719 = vrot.slane %v4705, %v4718
      %v4720 = vcombine.low %v4664, %v4680
      %v4721 = vcombine.high %v4664, %v4680
      %v4723 = vunpack.c.l.s4 1934713408
      %v4724 = vunpack.c.0.s8 %v4723
      %v4725 = vlaneseq
      %v4726 = vshrl.u32 %v4725, 7
      %v4727 = vsub.s32 %v4724, %v4726
      %v4728 = vrot.slane %v4720, %v4727
      %v4730 = vunpack.c.l.s4 1934713408
      %v4731 = vunpack.c.0.s8 %v4730
      %v4732 = vlaneseq
      %v4733 = vshrl.u32 %v4732, 7
      %v4734 = vsub.s32 %v4731, %v4733
      %v4735 = vrot.slane %v4721, %v4734
      %v4736 = vcombine.low %v4671, %v4687
      %v4737 = vcombine.high %v4671, %v4687
      %v4739 = vunpack.c.l.s4 1934713408
      %v4740 = vunpack.c.0.s8 %v4739
      %v4741 = vlaneseq
      %v4742 = vshrl.u32 %v4741, 7
      %v4743 = vsub.s32 %v4740, %v4742
      %v4744 = vrot.slane %v4736, %v4743
      %v4746 = vunpack.c.l.s4 1934713408
      %v4747 = vunpack.c.0.s8 %v4746
      %v4748 = vlaneseq
      %v4749 = vshrl.u32 %v4748, 7
      %v4750 = vsub.s32 %v4747, %v4749
      %v4751 = vrot.slane %v4737, %v4750
      %v4752 = vcombine.low %v4696, %v4728
      %v4753 = vcombine.high %v4696, %v4728
      %v4754 = vcombine.low %v4703, %v4735
      %v4755 = vcombine.high %v4703, %v4735
      %v4756 = vcombine.low %v4712, %v4744
      %v4757 = vcombine.high %v4712, %v4744
      %v4758 = vcombine.low %v4719, %v4751
      %v4759 = vcombine.high %v4719, %v4751
      %v4760 = vcombine.low %v4579, %v4587
      %v4761 = vcombine.high %v4579, %v4587
      %v4763 = vunpack.c.l.s4 1983009808
      %v4764 = vunpack.c.0.s8 %v4763
      %v4765 = vlaneseq
      %v4766 = vshrl.u32 %v4765, 7
      %v4767 = vsub.s32 %v4764, %v4766
      %v4768 = vrot.slane %v4760, %v4767
      %v4770 = vunpack.c.l.s4 1983009808
      %v4771 = vunpack.c.0.s8 %v4770
      %v4772 = vlaneseq
      %v4773 = vshrl.u32 %v4772, 7
      %v4774 = vsub.s32 %v4771, %v4773
      %v4775 = vrot.slane %v4761, %v4774
      %v4776 = vcombine.low %v4583, %v4591
      %v4777 = vcombine.high %v4583, %v4591
      %v4779 = vunpack.c.l.s4 1983009808
      %v4780 = vunpack.c.0.s8 %v4779
      %v4781 = vlaneseq
      %v4782 = vshrl.u32 %v4781, 7
      %v4783 = vsub.s32 %v4780, %v4782
      %v4784 = vrot.slane %v4776, %v4783
      %v4786 = vunpack.c.l.s4 1983009808
      %v4787 = vunpack.c.0.s8 %v4786
      %v4788 = vlaneseq
      %v4789 = vshrl.u32 %v4788, 7
      %v4790 = vsub.s32 %v4787, %v4789
      %v4791 = vrot.slane %v4777, %v4790
      %v4792 = vcombine.low %v4595, %v4603
      %v4793 = vcombine.high %v4595, %v4603
      %v4795 = vunpack.c.l.s4 1983009808
      %v4796 = vunpack.c.0.s8 %v4795
      %v4797 = vlaneseq
      %v4798 = vshrl.u32 %v4797, 7
      %v4799 = vsub.s32 %v4796, %v4798
      %v4800 = vrot.slane %v4792, %v4799
      %v4802 = vunpack.c.l.s4 1983009808
      %v4803 = vunpack.c.0.s8 %v4802
      %v4804 = vlaneseq
      %v4805 = vshrl.u32 %v4804, 7
      %v4806 = vsub.s32 %v4803, %v4805
      %v4807 = vrot.slane %v4793, %v4806
      %v4808 = vcombine.low %v4599, %v4607
      %v4809 = vcombine.high %v4599, %v4607
      %v4811 = vunpack.c.l.s4 1983009808
      %v4812 = vunpack.c.0.s8 %v4811
      %v4813 = vlaneseq
      %v4814 = vshrl.u32 %v4813, 7
      %v4815 = vsub.s32 %v4812, %v4814
      %v4816 = vrot.slane %v4808, %v4815
      %v4818 = vunpack.c.l.s4 1983009808
      %v4819 = vunpack.c.0.s8 %v4818
      %v4820 = vlaneseq
      %v4821 = vshrl.u32 %v4820, 7
      %v4822 = vsub.s32 %v4819, %v4821
      %v4823 = vrot.slane %v4809, %v4822
      %v4824 = vcombine.low %v4768, %v4784
      %v4825 = vcombine.high %v4768, %v4784
      %v4827 = vunpack.c.l.s4 1934713408
      %v4828 = vunpack.c.0.s8 %v4827
      %v4829 = vlaneseq
      %v4830 = vshrl.u32 %v4829, 7
      %v4831 = vsub.s32 %v4828, %v4830
      %v4832 = vrot.slane %v4824, %v4831
      %v4834 = vunpack.c.l.s4 1934713408
      %v4835 = vunpack.c.0.s8 %v4834
      %v4836 = vlaneseq
      %v4837 = vshrl.u32 %v4836, 7
      %v4838 = vsub.s32 %v4835, %v4837
      %v4839 = vrot.slane %v4825, %v4838
      %v4840 = vcombine.low %v4775, %v4791
      %v4841 = vcombine.high %v4775, %v4791
      %v4843 = vunpack.c.l.s4 1934713408
      %v4844 = vunpack.c.0.s8 %v4843
      %v4845 = vlaneseq
      %v4846 = vshrl.u32 %v4845, 7
      %v4847 = vsub.s32 %v4844, %v4846
      %v4848 = vrot.slane %v4840, %v4847
      %v4850 = vunpack.c.l.s4 1934713408
      %v4851 = vunpack.c.0.s8 %v4850
      %v4852 = vlaneseq
      %v4853 = vshrl.u32 %v4852, 7
      %v4854 = vsub.s32 %v4851, %v4853
      %v4855 = vrot.slane %v4841, %v4854
      %v4856 = vcombine.low %v4800, %v4816
      %v4857 = vcombine.high %v4800, %v4816
      %v4859 = vunpack.c.l.s4 1934713408
      %v4860 = vunpack.c.0.s8 %v4859
      %v4861 = vlaneseq
      %v4862 = vshrl.u32 %v4861, 7
      %v4863 = vsub.s32 %v4860, %v4862
      %v4864 = vrot.slane %v4856, %v4863
      %v4866 = vunpack.c.l.s4 1934713408
      %v4867 = vunpack.c.0.s8 %v4866
      %v4868 = vlaneseq
      %v4869 = vshrl.u32 %v4868, 7
      %v4870 = vsub.s32 %v4867, %v4869
      %v4871 = vrot.slane %v4857, %v4870
      %v4872 = vcombine.low %v4807, %v4823
      %v4873 = vcombine.high %v4807, %v4823
      %v4875 = vunpack.c.l.s4 1934713408
      %v4876 = vunpack.c.0.s8 %v4875
      %v4877 = vlaneseq
      %v4878 = vshrl.u32 %v4877, 7
      %v4879 = vsub.s32 %v4876, %v4878
      %v4880 = vrot.slane %v4872, %v4879
      %v4882 = vunpack.c.l.s4 1934713408
      %v4883 = vunpack.c.0.s8 %v4882
      %v4884 = vlaneseq
      %v4885 = vshrl.u32 %v4884, 7
      %v4886 = vsub.s32 %v4883, %v4885
      %v4887 = vrot.slane %v4873, %v4886
      %v4888 = vcombine.low %v4832, %v4864
      %v4889 = vcombine.high %v4832, %v4864
      %v4890 = vcombine.low %v4839, %v4871
      %v4891 = vcombine.high %v4839, %v4871
      %v4892 = vcombine.low %v4848, %v4880
      %v4893 = vcombine.high %v4848, %v4880
      %v4894 = vcombine.low %v4855, %v4887
      %v4895 = vcombine.high %v4855, %v4887
      %v4898 = vpack.i.b16 %v4888, %v4752
      %v4899 = vshrl.u32 %v4752, 16
      %v4900 = vshrl.u32 %v4888, 16
      %v4901 = vpack.i.b16 %v4900, %v4899
      %v4904 = vpack.i.b16 %v4889, %v4753
      %v4905 = vshrl.u32 %v4753, 16
      %v4906 = vshrl.u32 %v4889, 16
      %v4907 = vpack.i.b16 %v4906, %v4905
      %v4910 = vpack.i.b16 %v4890, %v4754
      %v4911 = vshrl.u32 %v4754, 16
      %v4912 = vshrl.u32 %v4890, 16
      %v4913 = vpack.i.b16 %v4912, %v4911
      %v4916 = vpack.i.b16 %v4891, %v4755
      %v4917 = vshrl.u32 %v4755, 16
      %v4918 = vshrl.u32 %v4891, 16
      %v4919 = vpack.i.b16 %v4918, %v4917
      %v4922 = vpack.i.b16 %v4892, %v4756
      %v4923 = vshrl.u32 %v4756, 16
      %v4924 = vshrl.u32 %v4892, 16
      %v4925 = vpack.i.b16 %v4924, %v4923
      %v4928 = vpack.i.b16 %v4893, %v4757
      %v4929 = vshrl.u32 %v4757, 16
      %v4930 = vshrl.u32 %v4893, 16
      %v4931 = vpack.i.b16 %v4930, %v4929
      %v4934 = vpack.i.b16 %v4894, %v4758
      %v4935 = vshrl.u32 %v4758, 16
      %v4936 = vshrl.u32 %v4894, 16
      %v4937 = vpack.i.b16 %v4936, %v4935
      %v4940 = vpack.i.b16 %v4895, %v4759
      %v4941 = vshrl.u32 %v4759, 16
      %v4942 = vshrl.u32 %v4895, 16
      %v4943 = vpack.i.b16 %v4942, %v4941
      %4944 = vrot.lane.b32.xlu0 %v4901, 16
      %v4945 = vpop.permute.xlu0 %4944
      %4946 = vrot.lane.b32.xlu0 %v4904, 32
      %v4947 = vpop.permute.xlu0 %4946
      %4948 = vrot.lane.b32.xlu0 %v4907, 48
      %v4949 = vpop.permute.xlu0 %4948
      %4950 = vrot.lane.b32.xlu0 %v4910, 64
      %v4951 = vpop.permute.xlu0 %4950
      %4952 = vrot.lane.b32.xlu0 %v4913, 80
      %v4953 = vpop.permute.xlu0 %4952
      %4954 = vrot.lane.b32.xlu0 %v4916, 96
      %v4955 = vpop.permute.xlu0 %4954
      %4956 = vrot.lane.b32.xlu0 %v4919, 112
      %v4957 = vpop.permute.xlu0 %4956
      %4958 = vrot.lane.b32.xlu0 %v4925, 16
      %v4959 = vpop.permute.xlu0 %4958
      %4960 = vrot.lane.b32.xlu0 %v4928, 32
      %v4961 = vpop.permute.xlu0 %4960
      %4962 = vrot.lane.b32.xlu0 %v4931, 48
      %v4963 = vpop.permute.xlu0 %4962
      %4964 = vrot.lane.b32.xlu0 %v4934, 64
      %v4965 = vpop.permute.xlu0 %4964
      %4966 = vrot.lane.b32.xlu0 %v4937, 80
      %v4967 = vpop.permute.xlu0 %4966
      %4968 = vrot.lane.b32.xlu0 %v4940, 96
      %v4969 = vpop.permute.xlu0 %4968
      %4970 = vrot.lane.b32.xlu0 %v4943, 112
      %v4971 = vpop.permute.xlu0 %4970
      %v4974 = vsel %vm1394, %v4898, %v4945
      %v4976 = vsel %vm1398, %v4974, %v4947
      %v4978 = vsel %vm1401, %v4976, %v4949
      %v4980 = vsel %vm1404, %v4978, %v4951
      %v4982 = vsel %vm1407, %v4980, %v4953
      %v4984 = vsel %vm1410, %v4982, %v4955
      %v4986 = vsel %vm1413, %v4984, %v4957
      %v4990 = vsel %vm1394, %v4922, %v4959
      %v4992 = vsel %vm1398, %v4990, %v4961
      %v4994 = vsel %vm1401, %v4992, %v4963
      %v4996 = vsel %vm1404, %v4994, %v4965
      %v4998 = vsel %vm1407, %v4996, %v4967
      %v5000 = vsel %vm1410, %v4998, %v4969
      %v5002 = vsel %vm1413, %v5000, %v4971
      %s5004 = scalar_lea.vmem %s3, 56
      %v5005 = vld [vmem:[%s5004] sm:$0xf]
      %v5006 = vld [vmem:[%s5004 + $0x4] sm:$0xf]
      %v5009 = vunpack.c.l.b16 %v5005
      %v5010 = vunpack.c.l.b16 %v5006
      %v5011 = vpack.c.b16 %v5010, %v5009
      %v5013 = vsel %vm1394, %v5011, 0
      %5015 = vmatprep.subr.bf16.mxu0 %v5002
      %5016 = vmatpush1.bf16.msra.mxu0 %v4986
      %5017 = vmatprep.subr.bf16.mxu0 0
      %5018 = vmatpush1.bf16.msra.mxu0 0
      %5019 = vmatprep.subr.bf16.mxu0 0
      %5020 = vmatpush1.bf16.msra.mxu0 0
      %5021 = vmatprep.subr.bf16.mxu0 0
      %5022 = vmatpush1.bf16.msra.mxu0 0
      %5023 = vmatprep.subr.bf16.mxu0 0
      %5024 = vmatpush1.bf16.msra.mxu0 0
      %5025 = vmatprep.subr.bf16.mxu0 0
      %5026 = vmatpush1.bf16.msra.mxu0 0
      %5027 = vmatprep.subr.bf16.mxu0 0
      %5028 = vmatpush1.bf16.msra.mxu0 0
      %5029 = vmatprep.subr.bf16.mxu0 0
      %5030 = vmatpush1.bf16.msra.mxu0 0
      %5031 = vmatprep.subr.bf16.mxu0 0
      %5032 = vmatpush1.bf16.msra.mxu0 0
      %5033 = vmatprep.subr.bf16.mxu0 0
      %5034 = vmatpush1.bf16.msra.mxu0 0
      %5035 = vmatprep.subr.bf16.mxu0 0
      %5036 = vmatpush1.bf16.msra.mxu0 0
      %5037 = vmatprep.subr.bf16.mxu0 0
      %5038 = vmatpush1.bf16.msra.mxu0 0
      %5039 = vmatprep.subr.bf16.mxu0 0
      %5040 = vmatpush1.bf16.msra.mxu0 0
      %5041 = vmatprep.subr.bf16.mxu0 0
      %5042 = vmatpush1.bf16.msra.mxu0 0
      %5043 = vmatprep.subr.bf16.mxu0 0
      %5044 = vmatpush1.bf16.msra.mxu0 0
      %5045 = vmatprep.subr.bf16.mxu0 0
      %5046 = vmatpush1.bf16.msra.mxu0 0
      %5047 = vmatprep.mubr.bf16.mxu0 0
      %5048 = vmatmul.mubr.bf16.gmra.mrb[0].mxu0 %v5013
      %v5049 = vpop.f32.mrb[0].mxu0
      %v5050 = vadd.f32 0.0, %v5049
      %v5051 = vpop.f32.mrb[0].mxu0
      %v5052 = vadd.f32 0.0, %v5051
      %v5053 = vpop.f32.mrb[0].mxu0
      %v5054 = vadd.f32 0.0, %v5053
      %v5055 = vpop.f32.mrb[0].mxu0
      %v5056 = vadd.f32 0.0, %v5055
      %5057 = vdwg.mxu0
      %v5058 = vadd.f32 %v4572, %v5050
      %v5059 = vadd.f32 %v4573, %v5052
      %v5060 = vadd.f32 %v4574, %v5054
      %v5061 = vadd.f32 %v4575, %v5056
      %5062 = vrot.lane.b32.xlu0 %v4076, 126
      %v5063 = vpop.permute.xlu0 %5062
      %5064 = vrot.lane.b32.xlu0 %v4079, 126
      %v5065 = vpop.permute.xlu0 %5064
      %5066 = vrot.lane.b32.xlu0 %v4082, 126
      %v5067 = vpop.permute.xlu0 %5066
      %5068 = vrot.lane.b32.xlu0 %v4085, 126
      %v5069 = vpop.permute.xlu0 %5068
      %5070 = vrot.lane.b32.xlu0 %v4088, 126
      %v5071 = vpop.permute.xlu0 %5070
      %5072 = vrot.lane.b32.xlu0 %v4091, 126
      %v5073 = vpop.permute.xlu0 %5072
      %5074 = vrot.lane.b32.xlu0 %v4094, 126
      %v5075 = vpop.permute.xlu0 %5074
      %5076 = vrot.lane.b32.xlu0 %v4097, 126
      %v5077 = vpop.permute.xlu0 %5076
      %5078 = vrot.lane.b32.xlu0 %v4100, 126
      %v5079 = vpop.permute.xlu0 %5078
      %5080 = vrot.lane.b32.xlu0 %v4103, 126
      %v5081 = vpop.permute.xlu0 %5080
      %5082 = vrot.lane.b32.xlu0 %v4106, 126
      %v5083 = vpop.permute.xlu0 %5082
      %5084 = vrot.lane.b32.xlu0 %v4109, 126
      %v5085 = vpop.permute.xlu0 %5084
      %5086 = vrot.lane.b32.xlu0 %v4112, 126
      %v5087 = vpop.permute.xlu0 %5086
      %5088 = vrot.lane.b32.xlu0 %v4115, 126
      %v5089 = vpop.permute.xlu0 %5088
      %5090 = vrot.lane.b32.xlu0 %v4118, 126
      %v5091 = vpop.permute.xlu0 %5090
      %5092 = vrot.lane.b32.xlu0 %v4121, 126
      %v5093 = vpop.permute.xlu0 %5092
      %v5110 = vcombine.low %v5063, %v5071
      %v5111 = vcombine.high %v5063, %v5071
      %v5113 = vunpack.c.l.s4 1983009808
      %v5114 = vunpack.c.0.s8 %v5113
      %v5115 = vlaneseq
      %v5116 = vshrl.u32 %v5115, 7
      %v5117 = vsub.s32 %v5114, %v5116
      %v5118 = vrot.slane %v5110, %v5117
      %v5120 = vunpack.c.l.s4 1983009808
      %v5121 = vunpack.c.0.s8 %v5120
      %v5122 = vlaneseq
      %v5123 = vshrl.u32 %v5122, 7
      %v5124 = vsub.s32 %v5121, %v5123
      %v5125 = vrot.slane %v5111, %v5124
      %v5126 = vcombine.low %v5067, %v5075
      %v5127 = vcombine.high %v5067, %v5075
      %v5129 = vunpack.c.l.s4 1983009808
      %v5130 = vunpack.c.0.s8 %v5129
      %v5131 = vlaneseq
      %v5132 = vshrl.u32 %v5131, 7
      %v5133 = vsub.s32 %v5130, %v5132
      %v5134 = vrot.slane %v5126, %v5133
      %v5136 = vunpack.c.l.s4 1983009808
      %v5137 = vunpack.c.0.s8 %v5136
      %v5138 = vlaneseq
      %v5139 = vshrl.u32 %v5138, 7
      %v5140 = vsub.s32 %v5137, %v5139
      %v5141 = vrot.slane %v5127, %v5140
      %v5142 = vcombine.low %v5079, %v5087
      %v5143 = vcombine.high %v5079, %v5087
      %v5145 = vunpack.c.l.s4 1983009808
      %v5146 = vunpack.c.0.s8 %v5145
      %v5147 = vlaneseq
      %v5148 = vshrl.u32 %v5147, 7
      %v5149 = vsub.s32 %v5146, %v5148
      %v5150 = vrot.slane %v5142, %v5149
      %v5152 = vunpack.c.l.s4 1983009808
      %v5153 = vunpack.c.0.s8 %v5152
      %v5154 = vlaneseq
      %v5155 = vshrl.u32 %v5154, 7
      %v5156 = vsub.s32 %v5153, %v5155
      %v5157 = vrot.slane %v5143, %v5156
      %v5158 = vcombine.low %v5083, %v5091
      %v5159 = vcombine.high %v5083, %v5091
      %v5161 = vunpack.c.l.s4 1983009808
      %v5162 = vunpack.c.0.s8 %v5161
      %v5163 = vlaneseq
      %v5164 = vshrl.u32 %v5163, 7
      %v5165 = vsub.s32 %v5162, %v5164
      %v5166 = vrot.slane %v5158, %v5165
      %v5168 = vunpack.c.l.s4 1983009808
      %v5169 = vunpack.c.0.s8 %v5168
      %v5170 = vlaneseq
      %v5171 = vshrl.u32 %v5170, 7
      %v5172 = vsub.s32 %v5169, %v5171
      %v5173 = vrot.slane %v5159, %v5172
      %v5174 = vcombine.low %v5118, %v5134
      %v5175 = vcombine.high %v5118, %v5134
      %v5177 = vunpack.c.l.s4 1934713408
      %v5178 = vunpack.c.0.s8 %v5177
      %v5179 = vlaneseq
      %v5180 = vshrl.u32 %v5179, 7
      %v5181 = vsub.s32 %v5178, %v5180
      %v5182 = vrot.slane %v5174, %v5181
      %v5184 = vunpack.c.l.s4 1934713408
      %v5185 = vunpack.c.0.s8 %v5184
      %v5186 = vlaneseq
      %v5187 = vshrl.u32 %v5186, 7
      %v5188 = vsub.s32 %v5185, %v5187
      %v5189 = vrot.slane %v5175, %v5188
      %v5190 = vcombine.low %v5125, %v5141
      %v5191 = vcombine.high %v5125, %v5141
      %v5193 = vunpack.c.l.s4 1934713408
      %v5194 = vunpack.c.0.s8 %v5193
      %v5195 = vlaneseq
      %v5196 = vshrl.u32 %v5195, 7
      %v5197 = vsub.s32 %v5194, %v5196
      %v5198 = vrot.slane %v5190, %v5197
      %v5200 = vunpack.c.l.s4 1934713408
      %v5201 = vunpack.c.0.s8 %v5200
      %v5202 = vlaneseq
      %v5203 = vshrl.u32 %v5202, 7
      %v5204 = vsub.s32 %v5201, %v5203
      %v5205 = vrot.slane %v5191, %v5204
      %v5206 = vcombine.low %v5150, %v5166
      %v5207 = vcombine.high %v5150, %v5166
      %v5209 = vunpack.c.l.s4 1934713408
      %v5210 = vunpack.c.0.s8 %v5209
      %v5211 = vlaneseq
      %v5212 = vshrl.u32 %v5211, 7
      %v5213 = vsub.s32 %v5210, %v5212
      %v5214 = vrot.slane %v5206, %v5213
      %v5216 = vunpack.c.l.s4 1934713408
      %v5217 = vunpack.c.0.s8 %v5216
      %v5218 = vlaneseq
      %v5219 = vshrl.u32 %v5218, 7
      %v5220 = vsub.s32 %v5217, %v5219
      %v5221 = vrot.slane %v5207, %v5220
      %v5222 = vcombine.low %v5157, %v5173
      %v5223 = vcombine.high %v5157, %v5173
      %v5225 = vunpack.c.l.s4 1934713408
      %v5226 = vunpack.c.0.s8 %v5225
      %v5227 = vlaneseq
      %v5228 = vshrl.u32 %v5227, 7
      %v5229 = vsub.s32 %v5226, %v5228
      %v5230 = vrot.slane %v5222, %v5229
      %v5232 = vunpack.c.l.s4 1934713408
      %v5233 = vunpack.c.0.s8 %v5232
      %v5234 = vlaneseq
      %v5235 = vshrl.u32 %v5234, 7
      %v5236 = vsub.s32 %v5233, %v5235
      %v5237 = vrot.slane %v5223, %v5236
      %v5238 = vcombine.low %v5182, %v5214
      %v5239 = vcombine.high %v5182, %v5214
      %v5240 = vcombine.low %v5189, %v5221
      %v5241 = vcombine.high %v5189, %v5221
      %v5242 = vcombine.low %v5198, %v5230
      %v5243 = vcombine.high %v5198, %v5230
      %v5244 = vcombine.low %v5205, %v5237
      %v5245 = vcombine.high %v5205, %v5237
      %v5246 = vcombine.low %v5065, %v5073
      %v5247 = vcombine.high %v5065, %v5073
      %v5249 = vunpack.c.l.s4 1983009808
      %v5250 = vunpack.c.0.s8 %v5249
      %v5251 = vlaneseq
      %v5252 = vshrl.u32 %v5251, 7
      %v5253 = vsub.s32 %v5250, %v5252
      %v5254 = vrot.slane %v5246, %v5253
      %v5256 = vunpack.c.l.s4 1983009808
      %v5257 = vunpack.c.0.s8 %v5256
      %v5258 = vlaneseq
      %v5259 = vshrl.u32 %v5258, 7
      %v5260 = vsub.s32 %v5257, %v5259
      %v5261 = vrot.slane %v5247, %v5260
      %v5262 = vcombine.low %v5069, %v5077
      %v5263 = vcombine.high %v5069, %v5077
      %v5265 = vunpack.c.l.s4 1983009808
      %v5266 = vunpack.c.0.s8 %v5265
      %v5267 = vlaneseq
      %v5268 = vshrl.u32 %v5267, 7
      %v5269 = vsub.s32 %v5266, %v5268
      %v5270 = vrot.slane %v5262, %v5269
      %v5272 = vunpack.c.l.s4 1983009808
      %v5273 = vunpack.c.0.s8 %v5272
      %v5274 = vlaneseq
      %v5275 = vshrl.u32 %v5274, 7
      %v5276 = vsub.s32 %v5273, %v5275
      %v5277 = vrot.slane %v5263, %v5276
      %v5278 = vcombine.low %v5081, %v5089
      %v5279 = vcombine.high %v5081, %v5089
      %v5281 = vunpack.c.l.s4 1983009808
      %v5282 = vunpack.c.0.s8 %v5281
      %v5283 = vlaneseq
      %v5284 = vshrl.u32 %v5283, 7
      %v5285 = vsub.s32 %v5282, %v5284
      %v5286 = vrot.slane %v5278, %v5285
      %v5288 = vunpack.c.l.s4 1983009808
      %v5289 = vunpack.c.0.s8 %v5288
      %v5290 = vlaneseq
      %v5291 = vshrl.u32 %v5290, 7
      %v5292 = vsub.s32 %v5289, %v5291
      %v5293 = vrot.slane %v5279, %v5292
      %v5294 = vcombine.low %v5085, %v5093
      %v5295 = vcombine.high %v5085, %v5093
      %v5297 = vunpack.c.l.s4 1983009808
      %v5298 = vunpack.c.0.s8 %v5297
      %v5299 = vlaneseq
      %v5300 = vshrl.u32 %v5299, 7
      %v5301 = vsub.s32 %v5298, %v5300
      %v5302 = vrot.slane %v5294, %v5301
      %v5304 = vunpack.c.l.s4 1983009808
      %v5305 = vunpack.c.0.s8 %v5304
      %v5306 = vlaneseq
      %v5307 = vshrl.u32 %v5306, 7
      %v5308 = vsub.s32 %v5305, %v5307
      %v5309 = vrot.slane %v5295, %v5308
      %v5310 = vcombine.low %v5254, %v5270
      %v5311 = vcombine.high %v5254, %v5270
      %v5313 = vunpack.c.l.s4 1934713408
      %v5314 = vunpack.c.0.s8 %v5313
      %v5315 = vlaneseq
      %v5316 = vshrl.u32 %v5315, 7
      %v5317 = vsub.s32 %v5314, %v5316
      %v5318 = vrot.slane %v5310, %v5317
      %v5320 = vunpack.c.l.s4 1934713408
      %v5321 = vunpack.c.0.s8 %v5320
      %v5322 = vlaneseq
      %v5323 = vshrl.u32 %v5322, 7
      %v5324 = vsub.s32 %v5321, %v5323
      %v5325 = vrot.slane %v5311, %v5324
      %v5326 = vcombine.low %v5261, %v5277
      %v5327 = vcombine.high %v5261, %v5277
      %v5329 = vunpack.c.l.s4 1934713408
      %v5330 = vunpack.c.0.s8 %v5329
      %v5331 = vlaneseq
      %v5332 = vshrl.u32 %v5331, 7
      %v5333 = vsub.s32 %v5330, %v5332
      %v5334 = vrot.slane %v5326, %v5333
      %v5336 = vunpack.c.l.s4 1934713408
      %v5337 = vunpack.c.0.s8 %v5336
      %v5338 = vlaneseq
      %v5339 = vshrl.u32 %v5338, 7
      %v5340 = vsub.s32 %v5337, %v5339
      %v5341 = vrot.slane %v5327, %v5340
      %v5342 = vcombine.low %v5286, %v5302
      %v5343 = vcombine.high %v5286, %v5302
      %v5345 = vunpack.c.l.s4 1934713408
      %v5346 = vunpack.c.0.s8 %v5345
      %v5347 = vlaneseq
      %v5348 = vshrl.u32 %v5347, 7
      %v5349 = vsub.s32 %v5346, %v5348
      %v5350 = vrot.slane %v5342, %v5349
      %v5352 = vunpack.c.l.s4 1934713408
      %v5353 = vunpack.c.0.s8 %v5352
      %v5354 = vlaneseq
      %v5355 = vshrl.u32 %v5354, 7
      %v5356 = vsub.s32 %v5353, %v5355
      %v5357 = vrot.slane %v5343, %v5356
      %v5358 = vcombine.low %v5293, %v5309
      %v5359 = vcombine.high %v5293, %v5309
      %v5361 = vunpack.c.l.s4 1934713408
      %v5362 = vunpack.c.0.s8 %v5361
      %v5363 = vlaneseq
      %v5364 = vshrl.u32 %v5363, 7
      %v5365 = vsub.s32 %v5362, %v5364
      %v5366 = vrot.slane %v5358, %v5365
      %v5368 = vunpack.c.l.s4 1934713408
      %v5369 = vunpack.c.0.s8 %v5368
      %v5370 = vlaneseq
      %v5371 = vshrl.u32 %v5370, 7
      %v5372 = vsub.s32 %v5369, %v5371
      %v5373 = vrot.slane %v5359, %v5372
      %v5374 = vcombine.low %v5318, %v5350
      %v5375 = vcombine.high %v5318, %v5350
      %v5376 = vcombine.low %v5325, %v5357
      %v5377 = vcombine.high %v5325, %v5357
      %v5378 = vcombine.low %v5334, %v5366
      %v5379 = vcombine.high %v5334, %v5366
      %v5380 = vcombine.low %v5341, %v5373
      %v5381 = vcombine.high %v5341, %v5373
      %v5384 = vpack.i.b16 %v5374, %v5238
      %v5385 = vshrl.u32 %v5238, 16
      %v5386 = vshrl.u32 %v5374, 16
      %v5387 = vpack.i.b16 %v5386, %v5385
      %v5390 = vpack.i.b16 %v5375, %v5239
      %v5391 = vshrl.u32 %v5239, 16
      %v5392 = vshrl.u32 %v5375, 16
      %v5393 = vpack.i.b16 %v5392, %v5391
      %v5396 = vpack.i.b16 %v5376, %v5240
      %v5397 = vshrl.u32 %v5240, 16
      %v5398 = vshrl.u32 %v5376, 16
      %v5399 = vpack.i.b16 %v5398, %v5397
      %v5402 = vpack.i.b16 %v5377, %v5241
      %v5403 = vshrl.u32 %v5241, 16
      %v5404 = vshrl.u32 %v5377, 16
      %v5405 = vpack.i.b16 %v5404, %v5403
      %v5408 = vpack.i.b16 %v5378, %v5242
      %v5409 = vshrl.u32 %v5242, 16
      %v5410 = vshrl.u32 %v5378, 16
      %v5411 = vpack.i.b16 %v5410, %v5409
      %v5414 = vpack.i.b16 %v5379, %v5243
      %v5415 = vshrl.u32 %v5243, 16
      %v5416 = vshrl.u32 %v5379, 16
      %v5417 = vpack.i.b16 %v5416, %v5415
      %v5420 = vpack.i.b16 %v5380, %v5244
      %v5421 = vshrl.u32 %v5244, 16
      %v5422 = vshrl.u32 %v5380, 16
      %v5423 = vpack.i.b16 %v5422, %v5421
      %v5426 = vpack.i.b16 %v5381, %v5245
      %v5427 = vshrl.u32 %v5245, 16
      %v5428 = vshrl.u32 %v5381, 16
      %v5429 = vpack.i.b16 %v5428, %v5427
      %5430 = vrot.lane.b32.xlu0 %v5387, 16
      %v5431 = vpop.permute.xlu0 %5430
      %5432 = vrot.lane.b32.xlu0 %v5390, 32
      %v5433 = vpop.permute.xlu0 %5432
      %5434 = vrot.lane.b32.xlu0 %v5393, 48
      %v5435 = vpop.permute.xlu0 %5434
      %5436 = vrot.lane.b32.xlu0 %v5396, 64
      %v5437 = vpop.permute.xlu0 %5436
      %5438 = vrot.lane.b32.xlu0 %v5399, 80
      %v5439 = vpop.permute.xlu0 %5438
      %5440 = vrot.lane.b32.xlu0 %v5402, 96
      %v5441 = vpop.permute.xlu0 %5440
      %5442 = vrot.lane.b32.xlu0 %v5405, 112
      %v5443 = vpop.permute.xlu0 %5442
      %5444 = vrot.lane.b32.xlu0 %v5411, 16
      %v5445 = vpop.permute.xlu0 %5444
      %5446 = vrot.lane.b32.xlu0 %v5414, 32
      %v5447 = vpop.permute.xlu0 %5446
      %5448 = vrot.lane.b32.xlu0 %v5417, 48
      %v5449 = vpop.permute.xlu0 %5448
      %5450 = vrot.lane.b32.xlu0 %v5420, 64
      %v5451 = vpop.permute.xlu0 %5450
      %5452 = vrot.lane.b32.xlu0 %v5423, 80
      %v5453 = vpop.permute.xlu0 %5452
      %5454 = vrot.lane.b32.xlu0 %v5426, 96
      %v5455 = vpop.permute.xlu0 %5454
      %5456 = vrot.lane.b32.xlu0 %v5429, 112
      %v5457 = vpop.permute.xlu0 %5456
      %v5460 = vsel %vm1394, %v5384, %v5431
      %v5462 = vsel %vm1398, %v5460, %v5433
      %v5464 = vsel %vm1401, %v5462, %v5435
      %v5466 = vsel %vm1404, %v5464, %v5437
      %v5468 = vsel %vm1407, %v5466, %v5439
      %v5470 = vsel %vm1410, %v5468, %v5441
      %v5472 = vsel %vm1413, %v5470, %v5443
      %v5476 = vsel %vm1394, %v5408, %v5445
      %v5478 = vsel %vm1398, %v5476, %v5447
      %v5480 = vsel %vm1401, %v5478, %v5449
      %v5482 = vsel %vm1404, %v5480, %v5451
      %v5484 = vsel %vm1407, %v5482, %v5453
      %v5486 = vsel %vm1410, %v5484, %v5455
      %v5488 = vsel %vm1413, %v5486, %v5457
      %s5490 = scalar_lea.vmem %s3, 64
      %v5491 = vld [vmem:[%s5490] sm:$0xf]
      %v5492 = vld [vmem:[%s5490 + $0x4] sm:$0xf]
      %v5495 = vunpack.c.l.b16 %v5491
      %v5496 = vunpack.c.l.b16 %v5492
      %v5497 = vpack.c.b16 %v5496, %v5495
      %v5499 = vsel %vm1394, %v5497, 0
      %5501 = vmatprep.subr.bf16.mxu0 %v5488
      %5502 = vmatpush1.bf16.msra.mxu0 %v5472
      %5503 = vmatprep.subr.bf16.mxu0 0
      %5504 = vmatpush1.bf16.msra.mxu0 0
      %5505 = vmatprep.subr.bf16.mxu0 0
      %5506 = vmatpush1.bf16.msra.mxu0 0
      %5507 = vmatprep.subr.bf16.mxu0 0
      %5508 = vmatpush1.bf16.msra.mxu0 0
      %5509 = vmatprep.subr.bf16.mxu0 0
      %5510 = vmatpush1.bf16.msra.mxu0 0
      %5511 = vmatprep.subr.bf16.mxu0 0
      %5512 = vmatpush1.bf16.msra.mxu0 0
      %5513 = vmatprep.subr.bf16.mxu0 0
      %5514 = vmatpush1.bf16.msra.mxu0 0
      %5515 = vmatprep.subr.bf16.mxu0 0
      %5516 = vmatpush1.bf16.msra.mxu0 0
      %5517 = vmatprep.subr.bf16.mxu0 0
      %5518 = vmatpush1.bf16.msra.mxu0 0
      %5519 = vmatprep.subr.bf16.mxu0 0
      %5520 = vmatpush1.bf16.msra.mxu0 0
      %5521 = vmatprep.subr.bf16.mxu0 0
      %5522 = vmatpush1.bf16.msra.mxu0 0
      %5523 = vmatprep.subr.bf16.mxu0 0
      %5524 = vmatpush1.bf16.msra.mxu0 0
      %5525 = vmatprep.subr.bf16.mxu0 0
      %5526 = vmatpush1.bf16.msra.mxu0 0
      %5527 = vmatprep.subr.bf16.mxu0 0
      %5528 = vmatpush1.bf16.msra.mxu0 0
      %5529 = vmatprep.subr.bf16.mxu0 0
      %5530 = vmatpush1.bf16.msra.mxu0 0
      %5531 = vmatprep.subr.bf16.mxu0 0
      %5532 = vmatpush1.bf16.msra.mxu0 0
      %5533 = vmatprep.mubr.bf16.mxu0 0
      %5534 = vmatmul.mubr.bf16.gmra.mrb[0].mxu0 %v5499
      %v5535 = vpop.f32.mrb[0].mxu0
      %v5536 = vadd.f32 0.0, %v5535
      %v5537 = vpop.f32.mrb[0].mxu0
      %v5538 = vadd.f32 0.0, %v5537
      %v5539 = vpop.f32.mrb[0].mxu0
      %v5540 = vadd.f32 0.0, %v5539
      %v5541 = vpop.f32.mrb[0].mxu0
      %v5542 = vadd.f32 0.0, %v5541
      %5543 = vdwg.mxu0
      %v5544 = vadd.f32 %v5058, %v5536
      %v5545 = vadd.f32 %v5059, %v5538
      %v5546 = vadd.f32 %v5060, %v5540
      %v5547 = vadd.f32 %v5061, %v5542
      %v5548 = vpack.c.bf16 %v5546, %v5544
      %v5549 = vpack.c.bf16 %v5547, %v5545
      %v5552 = vunpack.c.l.b16 %v5548
      %v5553 = vunpack.c.l.b16 %v5549
      %v5554 = vunpack.c.h.b16 %v5548
      %v5555 = vunpack.c.h.b16 %v5549
      %v5556 = vpack.c.b16 %v5553, %v5552
      %v5557 = vpack.c.b16 %v5555, %v5554
      %5560 = vst [vmem:[%s239] sm:$0xff] %v5556
      %5561 = vst [vmem:[%s239 + $0x8] sm:$0xff] %v5557
      %v5562 = vunpack.c.l.bf16 %v5548
      %v5563 = vunpack.c.l.bf16 %v5549
      %v5564 = vunpack.c.h.bf16 %v5548
      %v5565 = vunpack.c.h.bf16 %v5549
      %v5566 = vadd.f32 %v5562, %v5563
      %5567 = vadd.xlane.f32.xlu0 %v5566
      %v5568 = vpop.xlane.xlu0 %5567
      %v5569 = vadd.f32 %v5564, %v5565
      %5570 = vadd.xlane.f32.xlu0 %v5569
      %v5571 = vpop.xlane.xlu0 %5570
      %v5572 = vmul.f32 %v5562, %v5562
      %v5573 = vmul.f32 %v5563, %v5563
      %v5574 = vmul.f32 %v5564, %v5564
      %v5575 = vmul.f32 %v5565, %v5565
      %v5576 = vadd.f32 %v5572, %v5573
      %5577 = vadd.xlane.f32.xlu0 %v5576
      %v5578 = vpop.xlane.xlu0 %5577
      %v5579 = vadd.f32 %v5574, %v5575
      %5580 = vadd.xlane.f32.xlu0 %v5579
      %v5581 = vpop.xlane.xlu0 %5580
      %v5582 = vsel %vm931, %v5568, %v5578
      %v5583 = vsel %vm931, %v5571, %v5581
      %vm5584 = vcmask 15360
      %5585 = vst.msk [vmem:[%s245] sm:$0xff] %vm5584, %v5582
      %5586 = vst.msk [vmem:[%s245 + $0x8] sm:$0xff] %vm5584, %v5583
      %s5587 = smul.u32 2, %s17
      %p5588 = scmp.lt.s32.totalorder %s5587, 3
      %s5589 = scalar_select %p5588, %s5587, 3
      %s5590 = smul.addr %s5589, 2
      %s5591 = smul.addr %s5590, 4
      %s5592 = scalar_lea.vmem %s4, %s5591
      %s5593 = smul.u32 2, %s17
      %p5594 = scmp.lt.s32.totalorder %s5593, 3
      %s5595 = scalar_select %p5594, %s5593, 3
      %s5596 = smul.addr %s5595, 8
      %s5597 = scalar_lea.vmem %s5, %s5596
      // Predicated region
      $region37: #{bottleneck_forward.5} parent=35 // pred_check
        %p5598 = pneg %p124
      $region38: #{bottleneck_forward.5} parent=35 // pred_check_branch
        %5600 = sbr.rel (%p5598) target = $region40
      $region39: #{bottleneck_forward.5} parent=35 // pred_region
        %s5601 = smul.u32 2, %s17
      $region40: #{bottleneck_forward.5} parent=35 // pred_fallthru
        _
      // Predicated region
      $region41: #{bottleneck_forward.5} parent=35 // pred_check
        %p5602 = pneg %p150
      $region42: #{bottleneck_forward.5} parent=35 // pred_check_branch
        %5604 = sbr.rel (%p5602) target = $region44
      $region43: #{bottleneck_forward.5} parent=35 // pred_region
        %s5605 = smul.u32 2, %s17
      $region44: #{bottleneck_forward.5} parent=35 // pred_fallthru
        _
    $region36: #{bottleneck_forward.5} parent=5 // pred_fallthru
      _
    %p5606 = scmp.le.s32.totalorder 2, %s12
    // Predicated region
    $region45: #{bottleneck_forward.5} parent=5 // pred_check
      %p5607 = pneg %p5606
    $region46: #{bottleneck_forward.5} parent=5 // pred_check_branch
      %5609 = sbr.rel (%p5607) target = $region48
    $region47: #{bottleneck_forward.5} parent=5 // pred_region
      %s5610 = ssub.s32 %s12, 2
      // Predicated region
      $region49: #{bottleneck_forward.5} parent=47 // pred_check
        %p5611 = pneg %p130
      $region50: #{bottleneck_forward.5} parent=47 // pred_check_branch
        %5613 = sbr.rel (%p5611) target = $region52
      $region51: #{bottleneck_forward.5} parent=47 // pred_region
        %s5614 = smul.u32 2, %s18
        %p5615 = scmp.lt.s32.totalorder %s5614, 3
        %s5616 = scalar_select %p5615, %s5614, 3
        %s5617 = smul.addr %s5616, 2
        %s5618 = smul.addr %s5617, 4
        %s5619 = scalar_lea.vmem %s4, %s5618
      $region52: #{bottleneck_forward.5} parent=47 // pred_fallthru
        _
      // Predicated region
      $region53: #{bottleneck_forward.5} parent=47 // pred_check
        %p5620 = pneg %p156
      $region54: #{bottleneck_forward.5} parent=47 // pred_check_branch
        %5622 = sbr.rel (%p5620) target = $region56
      $region55: #{bottleneck_forward.5} parent=47 // pred_region
        %s5623 = smul.u32 2, %s18
        %p5624 = scmp.lt.s32.totalorder %s5623, 3
        %s5625 = scalar_select %p5624, %s5623, 3
        %s5626 = smul.addr %s5625, 8
        %s5627 = scalar_lea.vmem %s5, %s5626
      $region56: #{bottleneck_forward.5} parent=47 // pred_fallthru
        _
    $region48: #{bottleneck_forward.5} parent=5 // pred_fallthru
      _
  $region6: #{bottleneck_forward.5} parent=0 // loop_footer
    %s16 = sadd.s32 1, %s12
  $region7: #{bottleneck_forward.5} parent=0 // loop_footer_branch
    %11 = sbr.rel target = $region3
  $region8: #{bottleneck_forward.5} parent=0 // loop_exit
    _

</llo_original>
